<compile_context>
chip_gen: v7x
topology: tpu7x:2x2x1
jax: 0.10.0
libtpu: 0.0.40
codegen_flags: <defaults>
</compile_context>

<pallas_src>
import jax
import jax.numpy as jnp
from jax.experimental import pallas as pl
from jax.experimental.pallas import tpu as pltpu


HIDDEN = 768      # BERT hidden size (fixed by nn.Linear(768, 256))
MID = 256         # classification head intermediate size
VOCAB = 1024      # synthetic vocab for the embedding table (lane-aligned)


def _fused_kernel(hist_ref, inv_ref, table_ref, wp_ref, bp_ref,
                  w1_ref, b1_ref, w2_ref, b2_ref, out_ref):
    """Pool (histogram @ table) + pooler + classification head, fully fused."""
    # Encoder stand-in: masked-sum pool as a dense MXU matmul
    # (b_tile, VOCAB) bf16 @ (VOCAB, H) bf16 -> (b_tile, H), f32 accumulate.
    pooled_sum = jnp.dot(hist_ref[...], table_ref[...],
                         preferred_element_type=jnp.float32)

    # Mean pool: scale by the precomputed 1/token_count.
    pooled = pooled_sum * inv_ref[...]                          # (b_tile, H) f32

    # BERT pooler: dense(768 -> 768) + tanh (bf16 MXU, f32 acc, tanh on EUP).
    pooled = jnp.tanh(
        jnp.dot(pooled.astype(jnp.bfloat16), wp_ref[...],
                preferred_element_type=jnp.float32) + bp_ref[...])

    # Dropout(p=0.2): identity in eval/inference mode.

    # linear1: 768 -> 256 (bf16 MXU, f32 accumulate).
    h1 = jnp.dot(pooled.astype(jnp.bfloat16), w1_ref[...],
                 preferred_element_type=jnp.float32) + b1_ref[...]

    # linear2: 256 -> 1 on the VPU (multiply + lane reduce); avoids a
    # degenerate N=1 MXU matmul and a 1-lane masked store from the MXU.
    h2 = jnp.sum(h1 * w2_ref[...], axis=-1, keepdims=True) + b2_ref[...]

    out_ref[...] = jax.nn.sigmoid(h2)


def bert_sent_class_forward(ids, mask, params, *, b_tile=8):
    """ids: (B, S) int32, mask: (B, S) {0,1}. Returns (B, 1) f32 in [0, 1]."""
    B, S = ids.shape
    vocab, hidden = params["emb_table"].shape

    # Per-example masked vocab histogram (cheap scatter-add: reads ids+mask,
    # writes B*VOCAB).  Replaces the (B, S, 768) gathered-activation stream.
    mask_f = mask.astype(jnp.float32)
    hist = jnp.zeros((B, vocab), jnp.float32).at[
        jnp.arange(B)[:, None], ids].add(mask_f)
    counts = jnp.sum(mask_f, axis=1, keepdims=True)
    inv_count = 1.0 / jnp.maximum(counts, 1.0)                  # (B, 1) f32

    # Round the batch up to a multiple of b_tile (padded rows: hist=0,
    # inv=0 -> finite outputs, sliced off below).  b_tile is a multiple of 8
    # to satisfy the (8, 128) sublane tiling constraint.
    n_tiles = -(-B // b_tile)
    b_pad = n_tiles * b_tile
    if b_pad != B:
        hist = jnp.pad(hist, ((0, b_pad - B), (0, 0)))
        inv_count = jnp.pad(inv_count, ((0, b_pad - B), (0, 0)))

    const2 = lambda b: (0, 0)   # resident table / weights (fetched once)

    out = pl.pallas_call(
        _fused_kernel,
        out_shape=jax.ShapeDtypeStruct((b_pad, 1), jnp.float32),
        grid_spec=pltpu.PrefetchScalarGridSpec(
            num_scalar_prefetch=0,
            grid=(n_tiles,),
            in_specs=[
                # streamed per-batch-tile inputs
                pl.BlockSpec((b_tile, vocab), lambda b: (b, 0)),   # histogram
                pl.BlockSpec((b_tile, 1), lambda b: (b, 0)),       # 1/count
                # resident embedding table + weights
                pl.BlockSpec((vocab, hidden), const2),             # emb table
                pl.BlockSpec((hidden, hidden), const2),            # pooler W
                pl.BlockSpec((1, hidden), const2),                 # pooler b
                pl.BlockSpec((hidden, MID), const2),               # linear1 W
                pl.BlockSpec((1, MID), const2),                    # linear1 b
                pl.BlockSpec((1, MID), const2),                    # linear2 W
                pl.BlockSpec((1, 1), const2),                      # linear2 b
            ],
            out_specs=pl.BlockSpec((b_tile, 1), lambda b: (b, 0)),
        ),
        # Total VMEM footprint (< 8 MiB, double-buffered) fits every
        # generation's default scoped VMEM, so no vmem_limit_bytes override
        # and no single-buffering of resident weights is required.
        compiler_params=pltpu.CompilerParams(
            dimension_semantics=("parallel",)),
    )(
        hist.astype(jnp.bfloat16), inv_count,
        params["emb_table"],
        params["w_pool"], params["b_pool"],
        params["w1"], params["b1"],
        params["w2"], params["b2"],
    )
    return out[:B]


def init_params(key):
    ks = jax.random.split(key, 6)
    return {
        # synthetic token embedding table (bf16: native MXU path, VMEM-resident)
        "emb_table": (0.02 * jax.random.normal(ks[0], (VOCAB, HIDDEN), jnp.float32)
                      ).astype(jnp.bfloat16),
        # pooler dense 768 -> 768, stored (in, out); matmul weights in bf16
        "w_pool": (jax.random.normal(ks[1], (HIDDEN, HIDDEN), jnp.float32)
                   / jnp.sqrt(HIDDEN)).astype(jnp.bfloat16),
        "b_pool": jnp.zeros((1, HIDDEN), jnp.float32),
        # linear1: 768 -> 256
        "w1": (jax.random.normal(ks[2], (HIDDEN, MID), jnp.float32)
               / jnp.sqrt(HIDDEN)).astype(jnp.bfloat16),
        "b1": 0.01 * jax.random.normal(ks[3], (1, MID), jnp.float32),
        # linear2: 256 -> 1 stored as a (1, 256) row (VPU multiply + reduce)
        "w2": (jax.random.normal(ks[4], (1, MID), jnp.float32) / jnp.sqrt(MID)),
        "b2": 0.01 * jax.random.normal(ks[5], (1, 1), jnp.float32),
    }


def _reference_forward(ids, mask, params):
    """Pure-JAX reference (f32, explicit gather) for a numerical sanity check."""
    emb = params["emb_table"][ids].astype(jnp.float32)           # (B, S, H)
    m = mask.astype(jnp.float32)                                 # (B, S)
    summed = jnp.einsum("bsh,bs->bh", emb, m)
    inv = 1.0 / jnp.maximum(jnp.sum(m, axis=1, keepdims=True), 1.0)
    pooled = summed * inv
    pooled = jnp.tanh(pooled @ params["w_pool"].astype(jnp.float32)
                      + params["b_pool"])
    h1 = pooled @ params["w1"].astype(jnp.float32) + params["b1"]
    h2 = jnp.sum(h1 * params["w2"], axis=-1, keepdims=True) + params["b2"]
    return jax.nn.sigmoid(h2)


if __name__ == "__main__":
    key = jax.random.PRNGKey(0)
    pkey, ikey, lkey = jax.random.split(key, 3)

    params = init_params(pkey)

    # Small shapes that still exercise multiple batch tiles AND the new
    # batch-padding path: B=18 with b_tile=8 -> 3 grid tiles (padded to 24).
    B, S = 18, 128
    ids = jax.random.randint(ikey, (B, S), minval=0, maxval=VOCAB,
                             dtype=jnp.int32)
    lengths = jax.random.randint(lkey, (B, 1), minval=1, maxval=S + 1,
                                 dtype=jnp.int32)
    mask = (jnp.arange(S, dtype=jnp.int32)[None, :] < lengths).astype(jnp.int32)

    out = bert_sent_class_forward(ids, mask, params)
    out = jax.block_until_ready(out)

    ref = _reference_forward(ids, mask, params)

    assert out.shape == (B, 1), out.shape
    assert bool(jnp.all(jnp.isfinite(out)))
    assert bool(jnp.all((out >= 0.0) & (out <= 1.0)))
    assert bool(jnp.allclose(out, ref, atol=2e-2, rtol=2e-2))
    print("KERNEL_OK")
</pallas_src>

<mosaic_0001>
module attributes {stable_mosaic.version = 11 : i64} {
  func.func @_fused_kernel(%arg0: i32, %arg1: memref<8x1024xbf16, #tpu.memory_space<vmem>>, %arg2: memref<8x1xf32, #tpu.memory_space<vmem>>, %arg3: memref<1024x768xbf16, #tpu.memory_space<vmem>>, %arg4: memref<768x768xbf16, #tpu.memory_space<vmem>>, %arg5: memref<1x768xf32, #tpu.memory_space<vmem>>, %arg6: memref<768x256xbf16, #tpu.memory_space<vmem>>, %arg7: memref<1x256xf32, #tpu.memory_space<vmem>>, %arg8: memref<1x256xf32, #tpu.memory_space<vmem>>, %arg9: memref<1x1xf32, #tpu.memory_space<vmem>>, %arg10: memref<8x1xf32, #tpu.memory_space<vmem>>) attributes {dimension_semantics = [#tpu.dimension_semantics<parallel>], iteration_bounds = array<i64: 3>, scalar_prefetch = 0 : i64, scratch_operands = 0 : i64, tpu.core_type = #tpu.core_type<tc>, window_params = [{transform_indices = @transform_0, window_bounds = array<i64: 8, 1024>}, {transform_indices = @transform_1, window_bounds = array<i64: 8, 1>}, {pipeline_mode = #tpu.pipeline_mode<synchronous>, transform_indices = @transform_2, window_bounds = array<i64: 1024, 768>}, {pipeline_mode = #tpu.pipeline_mode<synchronous>, transform_indices = @transform_3, window_bounds = array<i64: 768, 768>}, {pipeline_mode = #tpu.pipeline_mode<synchronous>, transform_indices = @transform_4, window_bounds = array<i64: 1, 768>}, {pipeline_mode = #tpu.pipeline_mode<synchronous>, transform_indices = @transform_5, window_bounds = array<i64: 768, 256>}, {pipeline_mode = #tpu.pipeline_mode<synchronous>, transform_indices = @transform_6, window_bounds = array<i64: 1, 256>}, {pipeline_mode = #tpu.pipeline_mode<synchronous>, transform_indices = @transform_7, window_bounds = array<i64: 1, 256>}, {pipeline_mode = #tpu.pipeline_mode<synchronous>, transform_indices = @transform_8, window_bounds = array<i64: 1, 1>}, {transform_indices = @transform_9, window_bounds = array<i64: 8, 1>}]} {
    %c0 = arith.constant 0 : index
    %c0_0 = arith.constant 0 : index
    %0 = vector.load %arg1[%c0, %c0_0] : memref<8x1024xbf16, #tpu.memory_space<vmem>>, vector<8x1024xbf16>
    %c0_1 = arith.constant 0 : index
    %c0_2 = arith.constant 0 : index
    %1 = vector.load %arg3[%c0_1, %c0_2] : memref<1024x768xbf16, #tpu.memory_space<vmem>>, vector<1024x768xbf16>
    %cst = arith.constant dense<0.000000e+00> : vector<8x768xf32>
    %2 = tpu.matmul %0, %1, %cst {dimension_numbers = #tpu.dot_dimension_numbers<[1], [0], [0], [1], [0, 0, 1, 1], [], []>} : vector<8x1024xbf16>, vector<1024x768xbf16>, vector<8x768xf32> -> vector<8x768xf32>
    %c0_3 = arith.constant 0 : index
    %c0_4 = arith.constant 0 : index
    %3 = vector.load %arg2[%c0_3, %c0_4] : memref<8x1xf32, #tpu.memory_space<vmem>>, vector<8x1xf32>
    %4 = vector.broadcast %3 : vector<8x1xf32> to vector<8x768xf32>
    %5 = arith.mulf %2, %4 : vector<8x768xf32>
    %6 = arith.truncf %5 : vector<8x768xf32> to vector<8x768xbf16>
    %c0_5 = arith.constant 0 : index
    %c0_6 = arith.constant 0 : index
    %7 = vector.load %arg4[%c0_5, %c0_6] : memref<768x768xbf16, #tpu.memory_space<vmem>>, vector<768x768xbf16>
    %cst_7 = arith.constant dense<0.000000e+00> : vector<8x768xf32>
    %8 = tpu.matmul %6, %7, %cst_7 {dimension_numbers = #tpu.dot_dimension_numbers<[1], [0], [0], [1], [0, 0, 1, 1], [], []>} : vector<8x768xbf16>, vector<768x768xbf16>, vector<8x768xf32> -> vector<8x768xf32>
    %c0_8 = arith.constant 0 : index
    %c0_9 = arith.constant 0 : index
    %9 = vector.load %arg5[%c0_8, %c0_9] : memref<1x768xf32, #tpu.memory_space<vmem>>, vector<1x768xf32>
    %10 = vector.broadcast %9 : vector<1x768xf32> to vector<8x768xf32>
    %11 = arith.addf %8, %10 : vector<8x768xf32>
    %12 = math.tanh %11 : vector<8x768xf32>
    %13 = arith.truncf %12 : vector<8x768xf32> to vector<8x768xbf16>
    %c0_10 = arith.constant 0 : index
    %c0_11 = arith.constant 0 : index
    %14 = vector.load %arg6[%c0_10, %c0_11] : memref<768x256xbf16, #tpu.memory_space<vmem>>, vector<768x256xbf16>
    %cst_12 = arith.constant dense<0.000000e+00> : vector<8x256xf32>
    %15 = tpu.matmul %13, %14, %cst_12 {dimension_numbers = #tpu.dot_dimension_numbers<[1], [0], [0], [1], [0, 0, 1, 1], [], []>} : vector<8x768xbf16>, vector<768x256xbf16>, vector<8x256xf32> -> vector<8x256xf32>
    %c0_13 = arith.constant 0 : index
    %c0_14 = arith.constant 0 : index
    %16 = vector.load %arg7[%c0_13, %c0_14] : memref<1x256xf32, #tpu.memory_space<vmem>>, vector<1x256xf32>
    %17 = vector.broadcast %16 : vector<1x256xf32> to vector<8x256xf32>
    %18 = arith.addf %15, %17 : vector<8x256xf32>
    %c0_15 = arith.constant 0 : index
    %c0_16 = arith.constant 0 : index
    %19 = vector.load %arg8[%c0_15, %c0_16] : memref<1x256xf32, #tpu.memory_space<vmem>>, vector<1x256xf32>
    %20 = vector.broadcast %19 : vector<1x256xf32> to vector<8x256xf32>
    %21 = arith.mulf %18, %20 : vector<8x256xf32>
    %cst_17 = arith.constant dense<0.000000e+00> : vector<8xf32>
    %22 = vector.multi_reduction <add>, %21, %cst_17 [1] : vector<8x256xf32> to vector<8xf32>
    %23 = vector.shape_cast %22 : vector<8xf32> to vector<8x1xf32>
    %c0_18 = arith.constant 0 : index
    %c0_19 = arith.constant 0 : index
    %24 = vector.load %arg9[%c0_18, %c0_19] : memref<1x1xf32, #tpu.memory_space<vmem>>, vector<1x1xf32>
    %25 = vector.broadcast %24 : vector<1x1xf32> to vector<8x1xf32>
    %26 = arith.addf %23, %25 : vector<8x1xf32>
    %27 = arith.negf %26 : vector<8x1xf32>
    %28 = math.exp %27 : vector<8x1xf32>
    %cst_20 = arith.constant 1.000000e+00 : f32
    %29 = vector.broadcast %cst_20 : f32 to vector<8x1xf32>
    %30 = arith.addf %29, %28 : vector<8x1xf32>
    %31 = arith.divf %29, %30 : vector<8x1xf32>
    %c0_21 = arith.constant 0 : index
    %c0_22 = arith.constant 0 : index
    %32 = vector.load %arg10[%c0_21, %c0_22] : memref<8x1xf32, #tpu.memory_space<vmem>>, vector<8x1xf32>
    tpu.vector_store %arg10[%c0_21, %c0_22], %31 {strides = array<i32>} : memref<8x1xf32, #tpu.memory_space<vmem>>, vector<8x1xf32>,
    return
  }
  func.func @transform_0(%arg0: i32) -> (i32, i32) {
    %c0_i32 = arith.constant 0 : i32
    %c0_i32_0 = arith.constant 0 : i32
    return %arg0, %c0_i32 : i32, i32
  }
  func.func @transform_1(%arg0: i32) -> (i32, i32) {
    %c0_i32 = arith.constant 0 : i32
    %c0_i32_0 = arith.constant 0 : i32
    return %arg0, %c0_i32 : i32, i32
  }
  func.func @transform_2(%arg0: i32) -> (i32, i32) {
    %c0_i32 = arith.constant 0 : i32
    %c0_i32_0 = arith.constant 0 : i32
    %c0_i32_1 = arith.constant 0 : i32
    return %c0_i32, %c0_i32_0 : i32, i32
  }
  func.func @transform_3(%arg0: i32) -> (i32, i32) {
    %c0_i32 = arith.constant 0 : i32
    %c0_i32_0 = arith.constant 0 : i32
    %c0_i32_1 = arith.constant 0 : i32
    return %c0_i32, %c0_i32_0 : i32, i32
  }
  func.func @transform_4(%arg0: i32) -> (i32, i32) {
    %c0_i32 = arith.constant 0 : i32
    %c0_i32_0 = arith.constant 0 : i32
    %c0_i32_1 = arith.constant 0 : i32
    return %c0_i32, %c0_i32_0 : i32, i32
  }
  func.func @transform_5(%arg0: i32) -> (i32, i32) {
    %c0_i32 = arith.constant 0 : i32
    %c0_i32_0 = arith.constant 0 : i32
    %c0_i32_1 = arith.constant 0 : i32
    return %c0_i32, %c0_i32_0 : i32, i32
  }
  func.func @transform_6(%arg0: i32) -> (i32, i32) {
    %c0_i32 = arith.constant 0 : i32
    %c0_i32_0 = arith.constant 0 : i32
    %c0_i32_1 = arith.constant 0 : i32
    return %c0_i32, %c0_i32_0 : i32, i32
  }
  func.func @transform_7(%arg0: i32) -> (i32, i32) {
    %c0_i32 = arith.constant 0 : i32
    %c0_i32_0 = arith.constant 0 : i32
    %c0_i32_1 = arith.constant 0 : i32
    return %c0_i32, %c0_i32_0 : i32, i32
  }
  func.func @transform_8(%arg0: i32) -> (i32, i32) {
    %c0_i32 = arith.constant 0 : i32
    %c0_i32_0 = arith.constant 0 : i32
    %c0_i32_1 = arith.constant 0 : i32
    return %c0_i32, %c0_i32_0 : i32, i32
  }
  func.func @transform_9(%arg0: i32) -> (i32, i32) {
    %c0_i32 = arith.constant 0 : i32
    %c0_i32_0 = arith.constant 0 : i32
    return %arg0, %c0_i32 : i32, i32
  }
}

</mosaic_0001>

<llo_original>
// kernel: tpu_custom_call.1
$region0: #{tpu_custom_call.1}
  #allocation0 [shape = 'u32[]', space=smem, size = 0x4, offset = 0x4, fixed_abs, tag = 'smem constant byte address 0x4 - core index']
  #allocation1 [shape = 'u32[144,128]{1,0:T(1,128)}', space=vmem, size = 0x12000, scoped, tag = 'internal scratch']
  #allocation2 [shape = 'f32[1,1]{1,0:T(1,128)S(1)}', space=vmem, size = 0x200, scoped, tag = 'scoped memory for tpu_custom_call.1']
  %s0 = inlined_call_operand.hbm [shape: bf16[24,1024], index: 0, kind: input, shape index: {}]
  %s1 = inlined_call_operand.vmem [shape: f32[24,1], index: 1, kind: input, shape index: {}]
  %s2 = inlined_call_operand.hbm [shape: bf16[1024,768], index: 2, kind: input, shape index: {}]
  %s3 = inlined_call_operand.hbm [shape: bf16[768,768], index: 3, kind: input, shape index: {}]
  %s4 = inlined_call_operand.hbm [shape: f32[1,768], index: 4, kind: input, shape index: {}]
  %s5 = inlined_call_operand.hbm [shape: bf16[768,256], index: 5, kind: input, shape index: {}]
  %s6 = inlined_call_operand.hbm [shape: f32[1,256], index: 6, kind: input, shape index: {}]
  %s7 = inlined_call_operand.hbm [shape: f32[1,256], index: 7, kind: input, shape index: {}]
  %s8 = inlined_call_operand.<no memory space> [shape: f32[1,1], index: 8, kind: input, shape index: {}]
  %s9 = inlined_call_operand.vmem [shape: f32[24,1], index: 9, kind: output, shape index: {}]
  %s10 = sld [smem:[#allocation0]]
  $region97: #{tpu_custom_call.1} parent=0
    _
  %s12 = ssub.s32 1, %s10
  %s13 = scalar_select 0, %s12, %s10
  %v14 = vstv %s8
  %15 = vst [vmem:[#allocation2] sm:$0x1] %v14
  $region1: #{tpu_custom_call.1} parent=0
    #allocation3 [shape = 'u8[32768]{0}', space=vmem, size = 0x8000, scoped, tag = 'input window, operand 0']
    #allocation4 [shape = 's32[2]{0}', space=sflag, size = 0x8, scoped, tag = 'scoped memory for tpu_custom_call.1']
    #allocation5 [shape = 'u8[1572864]{0}', space=vmem, size = 0x180000, scoped, tag = 'input window, operand 2, single buffered']
    #allocation6 [shape = 's32[1]{0}', space=sflag, size = 0x4, scoped, tag = 'scoped memory for tpu_custom_call.1']
    #allocation7 [shape = 'u8[1179648]{0}', space=vmem, size = 0x120000, scoped, tag = 'input window, operand 3, single buffered']
    #allocation8 [shape = 'u8[3072]{0}', space=vmem, size = 0xc00, scoped, tag = 'input window, operand 4, single buffered']
    #allocation9 [shape = 's32[1]{0}', space=sflag, size = 0x4, scoped, tag = 'scoped memory for tpu_custom_call.1']
    #allocation10 [shape = 'u8[393216]{0}', space=vmem, size = 0x60000, scoped, tag = 'input window, operand 5, single buffered']
    #allocation11 [shape = 'u8[1024]{0}', space=vmem, size = 0x400, scoped, tag = 'input window, operand 6, single buffered']
    #allocation12 [shape = 's32[1]{0}', space=sflag, size = 0x4, scoped, tag = 'scoped memory for tpu_custom_call.1']
    #allocation13 [shape = 'u8[1024]{0}', space=vmem, size = 0x400, scoped, tag = 'input window, operand 7, single buffered']
    %16 = vsyncpa [#allocation4], 0
    %s17 = scalar_lea.sflag [#allocation4], 1
    %18 = vsyncpa %s17, 0
    %19 = vsyncpa [#allocation6], 0
    %20 = vsyncpa [#allocation9], 0
    %21 = vsyncpa [#allocation12], 0
    loop: start=0, step=1, limit=5
    $region2: #{tpu_custom_call.1} parent=1 // loop_pre_header
      _
    $region3: #{tpu_custom_call.1} parent=1 // loop_header
      %s23 = sphi 0, %s27
      %p24 = scmp.ge.s32.totalorder %s23, 5
      %s33 = sphi 0, %s35
      %s36 = sphi 0, %s33
      %s37 = sphi 0, %s36
      %s53 = sphi 0, %s37
      %s59 = sphi 0, %s61
      %s62 = sphi 0, %s59
      %s63 = sphi 0, %s62
      %s79 = sphi 0, %s63
      %s83 = sphi 0, %s83
      %s85 = sphi 0, %s83
      %s86 = sphi 0, %s85
      %s100 = sphi 0, %s86
      %s104 = sphi 0, %s104
      %s106 = sphi 0, %s104
      %s107 = sphi 0, %s106
      %s121 = sphi 0, %s107
      %s125 = sphi 0, %s125
      %s127 = sphi 0, %s125
      %s128 = sphi 0, %s127
      %s142 = sphi 0, %s128
      %s146 = sphi 0, %s146
      %s148 = sphi 0, %s146
      %s149 = sphi 0, %s148
      %s163 = sphi 0, %s149
      %s167 = sphi 0, %s167
      %s169 = sphi 0, %s167
      %s170 = sphi 0, %s169
      %s184 = sphi 0, %s170
      %s188 = sphi 0, %s188
      %s190 = sphi 0, %s188
      %s191 = sphi 0, %s190
      %s205 = sphi 0, %s191
      %s209 = sphi 0, %s209
      %s211 = sphi 0, %s209
      %s212 = sphi 0, %s211
      %s226 = sphi 0, %s212
      %s232 = sphi 0, %s234
      %s235 = sphi 0, %s232
      %s236 = sphi 0, %s235
      %s252 = sphi 0, %s236
    $region4: #{tpu_custom_call.1} parent=1 // loop_header_branch
      %26 = sbr.rel (%p24) target = $region8
    $region5: #{tpu_custom_call.1} parent=1 // loop_body
      %s28 = ssub.s32 %s23, 1
      %s29 = ssub.s32 %s23, 2
      %s30 = sadd.s32 %s23, 1
      %s31 = ssub.s32 %s23, %s30
      %p32 = scmp.eq.s32.totalorder %s31, 0
      %s34 = sadd.s32 %s33, 1
      %s35 = scalar_select %p32, %s33, %s34
      %p38 = pneg %p32
      %p39 = scmp.eq.s32.totalorder %s23, 2
      %p40 = por %p38, %p39
      %p41 = scmp.ne.s32.totalorder %s33, %s36
      %p42 = scmp.eq.s32.totalorder %s23, 0
      %p43 = por %p41, %p42
      %p44 = scmp.ne.s32.totalorder %s33, %s36
      %p45 = scmp.eq.s32.totalorder %s28, 2
      %p46 = por %p44, %p45
      %p47 = scmp.ne.s32.totalorder %s36, %s37
      %p48 = scmp.eq.s32.totalorder %s28, 0
      %p49 = por %p47, %p48
      %p50 = scmp.ne.s32.totalorder %s36, %s37
      %p51 = scmp.eq.s32.totalorder %s29, 2
      %p52 = por %p50, %p51
      %p54 = scmp.ne.s32.totalorder %s37, %s53
      %p55 = scmp.eq.s32.totalorder %s29, 0
      %p56 = por %p54, %p55
      %s57 = ssub.s32 %s23, %s30
      %p58 = scmp.eq.s32.totalorder %s57, 0
      %s60 = sadd.s32 %s59, 1
      %s61 = scalar_select %p58, %s59, %s60
      %p64 = pneg %p58
      %p65 = scmp.eq.s32.totalorder %s23, 2
      %p66 = por %p64, %p65
      %p67 = scmp.ne.s32.totalorder %s59, %s62
      %p68 = scmp.eq.s32.totalorder %s23, 0
      %p69 = por %p67, %p68
      %p70 = scmp.ne.s32.totalorder %s59, %s62
      %p71 = scmp.eq.s32.totalorder %s28, 2
      %p72 = por %p70, %p71
      %p73 = scmp.ne.s32.totalorder %s62, %s63
      %p74 = scmp.eq.s32.totalorder %s28, 0
      %p75 = por %p73, %p74
      %p76 = scmp.ne.s32.totalorder %s62, %s63
      %p77 = scmp.eq.s32.totalorder %s29, 2
      %p78 = por %p76, %p77
      %p80 = scmp.ne.s32.totalorder %s63, %s79
      %p81 = scmp.eq.s32.totalorder %s29, 0
      %p82 = por %p80, %p81
      %s84 = sadd.s32 %s83, 1
      %p87 = scmp.eq.s32.totalorder %s23, 2
      %p88 = scmp.ne.s32.totalorder %s83, %s85
      %p89 = scmp.eq.s32.totalorder %s23, 0
      %p90 = por %p88, %p89
      %p91 = scmp.ne.s32.totalorder %s83, %s85
      %p92 = scmp.eq.s32.totalorder %s28, 2
      %p93 = por %p91, %p92
      %p94 = scmp.ne.s32.totalorder %s85, %s86
      %p95 = scmp.eq.s32.totalorder %s28, 0
      %p96 = por %p94, %p95
      %p97 = scmp.ne.s32.totalorder %s85, %s86
      %p98 = scmp.eq.s32.totalorder %s29, 2
      %p99 = por %p97, %p98
      %p101 = scmp.ne.s32.totalorder %s86, %s100
      %p102 = scmp.eq.s32.totalorder %s29, 0
      %p103 = por %p101, %p102
      %s105 = sadd.s32 %s104, 1
      %p108 = scmp.eq.s32.totalorder %s23, 2
      %p109 = scmp.ne.s32.totalorder %s104, %s106
      %p110 = scmp.eq.s32.totalorder %s23, 0
      %p111 = por %p109, %p110
      %p112 = scmp.ne.s32.totalorder %s104, %s106
      %p113 = scmp.eq.s32.totalorder %s28, 2
      %p114 = por %p112, %p113
      %p115 = scmp.ne.s32.totalorder %s106, %s107
      %p116 = scmp.eq.s32.totalorder %s28, 0
      %p117 = por %p115, %p116
      %p118 = scmp.ne.s32.totalorder %s106, %s107
      %p119 = scmp.eq.s32.totalorder %s29, 2
      %p120 = por %p118, %p119
      %p122 = scmp.ne.s32.totalorder %s107, %s121
      %p123 = scmp.eq.s32.totalorder %s29, 0
      %p124 = por %p122, %p123
      %s126 = sadd.s32 %s125, 1
      %p129 = scmp.eq.s32.totalorder %s23, 2
      %p130 = scmp.ne.s32.totalorder %s125, %s127
      %p131 = scmp.eq.s32.totalorder %s23, 0
      %p132 = por %p130, %p131
      %p133 = scmp.ne.s32.totalorder %s125, %s127
      %p134 = scmp.eq.s32.totalorder %s28, 2
      %p135 = por %p133, %p134
      %p136 = scmp.ne.s32.totalorder %s127, %s128
      %p137 = scmp.eq.s32.totalorder %s28, 0
      %p138 = por %p136, %p137
      %p139 = scmp.ne.s32.totalorder %s127, %s128
      %p140 = scmp.eq.s32.totalorder %s29, 2
      %p141 = por %p139, %p140
      %p143 = scmp.ne.s32.totalorder %s128, %s142
      %p144 = scmp.eq.s32.totalorder %s29, 0
      %p145 = por %p143, %p144
      %s147 = sadd.s32 %s146, 1
      %p150 = scmp.eq.s32.totalorder %s23, 2
      %p151 = scmp.ne.s32.totalorder %s146, %s148
      %p152 = scmp.eq.s32.totalorder %s23, 0
      %p153 = por %p151, %p152
      %p154 = scmp.ne.s32.totalorder %s146, %s148
      %p155 = scmp.eq.s32.totalorder %s28, 2
      %p156 = por %p154, %p155
      %p157 = scmp.ne.s32.totalorder %s148, %s149
      %p158 = scmp.eq.s32.totalorder %s28, 0
      %p159 = por %p157, %p158
      %p160 = scmp.ne.s32.totalorder %s148, %s149
      %p161 = scmp.eq.s32.totalorder %s29, 2
      %p162 = por %p160, %p161
      %p164 = scmp.ne.s32.totalorder %s149, %s163
      %p165 = scmp.eq.s32.totalorder %s29, 0
      %p166 = por %p164, %p165
      %s168 = sadd.s32 %s167, 1
      %p171 = scmp.eq.s32.totalorder %s23, 2
      %p172 = scmp.ne.s32.totalorder %s167, %s169
      %p173 = scmp.eq.s32.totalorder %s23, 0
      %p174 = por %p172, %p173
      %p175 = scmp.ne.s32.totalorder %s167, %s169
      %p176 = scmp.eq.s32.totalorder %s28, 2
      %p177 = por %p175, %p176
      %p178 = scmp.ne.s32.totalorder %s169, %s170
      %p179 = scmp.eq.s32.totalorder %s28, 0
      %p180 = por %p178, %p179
      %p181 = scmp.ne.s32.totalorder %s169, %s170
      %p182 = scmp.eq.s32.totalorder %s29, 2
      %p183 = por %p181, %p182
      %p185 = scmp.ne.s32.totalorder %s170, %s184
      %p186 = scmp.eq.s32.totalorder %s29, 0
      %p187 = por %p185, %p186
      %s189 = sadd.s32 %s188, 1
      %p192 = scmp.eq.s32.totalorder %s23, 2
      %p193 = scmp.ne.s32.totalorder %s188, %s190
      %p194 = scmp.eq.s32.totalorder %s23, 0
      %p195 = por %p193, %p194
      %p196 = scmp.ne.s32.totalorder %s188, %s190
      %p197 = scmp.eq.s32.totalorder %s28, 2
      %p198 = por %p196, %p197
      %p199 = scmp.ne.s32.totalorder %s190, %s191
      %p200 = scmp.eq.s32.totalorder %s28, 0
      %p201 = por %p199, %p200
      %p202 = scmp.ne.s32.totalorder %s190, %s191
      %p203 = scmp.eq.s32.totalorder %s29, 2
      %p204 = por %p202, %p203
      %p206 = scmp.ne.s32.totalorder %s191, %s205
      %p207 = scmp.eq.s32.totalorder %s29, 0
      %p208 = por %p206, %p207
      %s210 = sadd.s32 %s209, 1
      %p213 = scmp.eq.s32.totalorder %s23, 2
      %p214 = scmp.ne.s32.totalorder %s209, %s211
      %p215 = scmp.eq.s32.totalorder %s23, 0
      %p216 = por %p214, %p215
      %p217 = scmp.ne.s32.totalorder %s209, %s211
      %p218 = scmp.eq.s32.totalorder %s28, 2
      %p219 = por %p217, %p218
      %p220 = scmp.ne.s32.totalorder %s211, %s212
      %p221 = scmp.eq.s32.totalorder %s28, 0
      %p222 = por %p220, %p221
      %p223 = scmp.ne.s32.totalorder %s211, %s212
      %p224 = scmp.eq.s32.totalorder %s29, 2
      %p225 = por %p223, %p224
      %p227 = scmp.ne.s32.totalorder %s212, %s226
      %p228 = scmp.eq.s32.totalorder %s29, 0
      %p229 = por %p227, %p228
      %s230 = ssub.s32 %s23, %s30
      %p231 = scmp.eq.s32.totalorder %s230, 0
      %s233 = sadd.s32 %s232, 1
      %s234 = scalar_select %p231, %s232, %s233
      %p237 = pneg %p231
      %p238 = scmp.eq.s32.totalorder %s23, 2
      %p239 = por %p237, %p238
      %p240 = scmp.ne.s32.totalorder %s232, %s235
      %p241 = scmp.eq.s32.totalorder %s23, 0
      %p242 = por %p240, %p241
      %p243 = scmp.ne.s32.totalorder %s232, %s235
      %p244 = scmp.eq.s32.totalorder %s28, 2
      %p245 = por %p243, %p244
      %p246 = scmp.ne.s32.totalorder %s235, %s236
      %p247 = scmp.eq.s32.totalorder %s28, 0
      %p248 = por %p246, %p247
      %p249 = scmp.ne.s32.totalorder %s235, %s236
      %p250 = scmp.eq.s32.totalorder %s29, 2
      %p251 = por %p249, %p250
      %p253 = scmp.ne.s32.totalorder %s236, %s252
      %p254 = scmp.eq.s32.totalorder %s29, 0
      %p255 = por %p253, %p254
      %p256 = scmp.le.s32.totalorder 1, %s23
      %p257 = scmp.lt.s32.totalorder %s23, 4
      %p258 = pnand %p256, %p257
      %p259 = pneg %p258
      // Predicated region
      $region9: #{tpu_custom_call.1} parent=5 // pred_check
        _
      $region10: #{tpu_custom_call.1} parent=5 // pred_check_branch
        %261 = sbr.rel (%p258) target = $region12
      $region11: #{tpu_custom_call.1} parent=5 // pred_region
        %s262 = ssub.s32 %s23, 1
        // Predicated region
        $region13: #{tpu_custom_call.1} parent=11 // pred_check
          %p263 = pneg %p96
        $region14: #{tpu_custom_call.1} parent=11 // pred_check_branch
          %265 = sbr.rel (%p263) target = $region16
        $region15: #{tpu_custom_call.1} parent=11 // pred_region
          %s267 = ssub.s32 49152, 49152
          %268 = vsyncadd [#allocation6], %s267
          %s269 = sshll.u32 [#allocation5], 4
          %s270 = int_to_ptr.vmem [resolvable:$true] %s269
          %275 = dma.hbm_to_vmem [thread:$0]  %s2, 49152, %s270, [#allocation6], 384, 384, 24
        $region16: #{tpu_custom_call.1} parent=11 // pred_fallthru
          _
        // Predicated region
        $region17: #{tpu_custom_call.1} parent=11 // pred_check
          %p276 = pneg %p117
        $region18: #{tpu_custom_call.1} parent=11 // pred_check_branch
          %278 = sbr.rel (%p276) target = $region20
        $region19: #{tpu_custom_call.1} parent=11 // pred_region
          %s280 = ssub.s32 36864, 36864
          %281 = vsyncadd [#allocation6], %s280
          %s282 = sshll.u32 [#allocation7], 4
          %s283 = int_to_ptr.vmem [resolvable:$true] %s282
          %288 = dma.hbm_to_vmem [thread:$0]  %s3, 36864, %s283, [#allocation6], 384, 384, 24
        $region20: #{tpu_custom_call.1} parent=11 // pred_fallthru
          _
        // Predicated region
        $region21: #{tpu_custom_call.1} parent=11 // pred_check
          %p289 = pneg %p138
        $region22: #{tpu_custom_call.1} parent=11 // pred_check_branch
          %291 = sbr.rel (%p289) target = $region24
        $region23: #{tpu_custom_call.1} parent=11 // pred_region
          %s293 = ssub.s32 96, 96
          %294 = vsyncadd [#allocation9], %s293
          %s296 = sshll.u32 [#allocation8], 4
          %s297 = int_to_ptr.vmem [resolvable:$true] %s296
          %299 = dma.hbm_to_vmem [thread:$0]  %s4, 96, %s297, [#allocation9]
        $region24: #{tpu_custom_call.1} parent=11 // pred_fallthru
          _
        // Predicated region
        $region25: #{tpu_custom_call.1} parent=11 // pred_check
          %p300 = pneg %p159
        $region26: #{tpu_custom_call.1} parent=11 // pred_check_branch
          %302 = sbr.rel (%p300) target = $region28
        $region27: #{tpu_custom_call.1} parent=11 // pred_region
          %s304 = ssub.s32 12288, 12288
          %305 = vsyncadd [#allocation9], %s304
          %s306 = sshll.u32 [#allocation10], 4
          %s307 = int_to_ptr.vmem [resolvable:$true] %s306
          %312 = dma.hbm_to_vmem [thread:$0]  %s5, 12288, %s307, [#allocation9], 128, 128, 8
        $region28: #{tpu_custom_call.1} parent=11 // pred_fallthru
          _
        // Predicated region
        $region29: #{tpu_custom_call.1} parent=11 // pred_check
          %p313 = pneg %p180
        $region30: #{tpu_custom_call.1} parent=11 // pred_check_branch
          %315 = sbr.rel (%p313) target = $region32
        $region31: #{tpu_custom_call.1} parent=11 // pred_region
          %s317 = ssub.s32 32, 32
          %318 = vsyncadd [#allocation12], %s317
          %s320 = sshll.u32 [#allocation11], 4
          %s321 = int_to_ptr.vmem [resolvable:$true] %s320
          %323 = dma.hbm_to_vmem [thread:$0]  %s6, 32, %s321, [#allocation12]
        $region32: #{tpu_custom_call.1} parent=11 // pred_fallthru
          _
        // Predicated region
        $region33: #{tpu_custom_call.1} parent=11 // pred_check
          %p324 = pneg %p201
        $region34: #{tpu_custom_call.1} parent=11 // pred_check_branch
          %326 = sbr.rel (%p324) target = $region36
        $region35: #{tpu_custom_call.1} parent=11 // pred_region
          %s328 = ssub.s32 32, 32
          %329 = vsyncadd [#allocation12], %s328
          %s331 = sshll.u32 [#allocation13], 4
          %s332 = int_to_ptr.vmem [resolvable:$true] %s331
          %334 = dma.hbm_to_vmem [thread:$0]  %s7, 32, %s332, [#allocation12]
        $region36: #{tpu_custom_call.1} parent=11 // pred_fallthru
          _
        // Predicated region
        $region37: #{tpu_custom_call.1} parent=11 // pred_check
          %p335 = pneg %p222
        $region38: #{tpu_custom_call.1} parent=11 // pred_check_branch
          %337 = sbr.rel (%p335) target = $region40
        $region39: #{tpu_custom_call.1} parent=11 // pred_region
          _
        $region40: #{tpu_custom_call.1} parent=11 // pred_fallthru
          _
      $region12: #{tpu_custom_call.1} parent=5 // pred_fallthru
        _
      %p338 = scmp.lt.s32.totalorder %s23, 3
      // Predicated region
      $region41: #{tpu_custom_call.1} parent=5 // pred_check
        %p339 = pneg %p338
      $region42: #{tpu_custom_call.1} parent=5 // pred_check_branch
        %341 = sbr.rel (%p339) target = $region44
      $region43: #{tpu_custom_call.1} parent=5 // pred_region
        // Predicated region
        $region45: #{tpu_custom_call.1} parent=43 // pred_check
          %p342 = pneg %p43
        $region46: #{tpu_custom_call.1} parent=43 // pred_check_branch
          %344 = sbr.rel (%p342) target = $region48
        $region47: #{tpu_custom_call.1} parent=43 // pred_region
          %s345 = sand.u32 %s33, 1
          %s346 = scalar_lea.sflag [#allocation4], %s345
          %s347 = sand.u32 %s33, 1
          %s348 = smul.addr %s347, 32
          %s349 = scalar_lea.vmem [#allocation3], %s348
          %s351 = ssub.s32 512, 512
          %352 = vsyncadd %s346, %s351
          %s353 = smul.addr %s23, 8
          %s354 = smul.addr %s353, 64
          %s355 = scalar_lea.hbm %s0, %s354
          %s357 = sshll.u32 %s349, 4
          %s358 = int_to_ptr.vmem [resolvable:$true] %s357
          %360 = dma.hbm_to_vmem [thread:$0]  %s355, 512, %s358, %s346
        $region48: #{tpu_custom_call.1} parent=43 // pred_fallthru
          _
        // Predicated region
        $region49: #{tpu_custom_call.1} parent=43 // pred_check
          %p361 = pneg %p69
        $region50: #{tpu_custom_call.1} parent=43 // pred_check_branch
          %363 = sbr.rel (%p361) target = $region52
        $region51: #{tpu_custom_call.1} parent=43 // pred_region
          %p364 = scmp.lt.s32.totalorder %s23, 2
          %s365 = scalar_select %p364, %s23, 2
          %s366 = smul.addr %s365, 8
          %s367 = scalar_lea.vmem %s1, %s366
        $region52: #{tpu_custom_call.1} parent=43 // pred_fallthru
          _
      $region44: #{tpu_custom_call.1} parent=5 // pred_fallthru
        _
      %p368 = scmp.le.s32.totalorder 1, %s23
      %p369 = scmp.lt.s32.totalorder %s23, 4
      %p370 = pnand %p368, %p369
      %p371 = pneg %p370
      // Predicated region
      $region53: #{tpu_custom_call.1} parent=5 // pred_check
        _
      $region54: #{tpu_custom_call.1} parent=5 // pred_check_branch
        %373 = sbr.rel (%p370) target = $region56
      $region55: #{tpu_custom_call.1} parent=5 // pred_region
        %s374 = ssub.s32 %s23, 1
        %s375 = sand.u32 %s36, 1
        %s376 = scalar_lea.sflag [#allocation4], %s375
        %s377 = sand.u32 %s36, 1
        %s378 = smul.addr %s377, 32
        %s379 = scalar_lea.vmem [#allocation3], %s378
        // Predicated region
        $region57: #{tpu_custom_call.1} parent=55 // pred_check
          %p380 = pneg %p49
        $region58: #{tpu_custom_call.1} parent=55 // pred_check_branch
          %382 = sbr.rel (%p380) target = $region60
        $region59: #{tpu_custom_call.1} parent=55 // pred_region
          %383 = dma.done %s376, 512
        $region60: #{tpu_custom_call.1} parent=55 // pred_fallthru
          _
        // Predicated region
        $region61: #{tpu_custom_call.1} parent=55 // pred_check
          %p384 = pneg %p96
        $region62: #{tpu_custom_call.1} parent=55 // pred_check_branch
          %386 = sbr.rel (%p384) target = $region64
        $region63: #{tpu_custom_call.1} parent=55 // pred_region
          %387 = dma.done [#allocation6], 49152
        $region64: #{tpu_custom_call.1} parent=55 // pred_fallthru
          _
        // Predicated region
        $region65: #{tpu_custom_call.1} parent=55 // pred_check
          %p388 = pneg %p117
        $region66: #{tpu_custom_call.1} parent=55 // pred_check_branch
          %390 = sbr.rel (%p388) target = $region68
        $region67: #{tpu_custom_call.1} parent=55 // pred_region
          %391 = dma.done [#allocation6], 36864
        $region68: #{tpu_custom_call.1} parent=55 // pred_fallthru
          _
        // Predicated region
        $region69: #{tpu_custom_call.1} parent=55 // pred_check
          %p392 = pneg %p138
        $region70: #{tpu_custom_call.1} parent=55 // pred_check_branch
          %394 = sbr.rel (%p392) target = $region72
        $region71: #{tpu_custom_call.1} parent=55 // pred_region
          %395 = dma.done [#allocation9], 96
        $region72: #{tpu_custom_call.1} parent=55 // pred_fallthru
          _
        // Predicated region
        $region73: #{tpu_custom_call.1} parent=55 // pred_check
          %p396 = pneg %p159
        $region74: #{tpu_custom_call.1} parent=55 // pred_check_branch
          %398 = sbr.rel (%p396) target = $region76
        $region75: #{tpu_custom_call.1} parent=55 // pred_region
          %399 = dma.done [#allocation9], 12288
        $region76: #{tpu_custom_call.1} parent=55 // pred_fallthru
          _
        // Predicated region
        $region77: #{tpu_custom_call.1} parent=55 // pred_check
          %p400 = pneg %p180
        $region78: #{tpu_custom_call.1} parent=55 // pred_check_branch
          %402 = sbr.rel (%p400) target = $region80
        $region79: #{tpu_custom_call.1} parent=55 // pred_region
          %403 = dma.done [#allocation12], 32
        $region80: #{tpu_custom_call.1} parent=55 // pred_fallthru
          _
        // Predicated region
        $region81: #{tpu_custom_call.1} parent=55 // pred_check
          %p404 = pneg %p201
        $region82: #{tpu_custom_call.1} parent=55 // pred_check_branch
          %406 = sbr.rel (%p404) target = $region84
        $region83: #{tpu_custom_call.1} parent=55 // pred_region
          %407 = dma.done [#allocation12], 32
        $region84: #{tpu_custom_call.1} parent=55 // pred_fallthru
          _
        %s408 = sand.u32 %s36, 1
        %s409 = scalar_lea.sflag [#allocation4], %s408
        %s410 = sand.u32 %s36, 1
        %s411 = smul.addr %s410, 32
        %s412 = scalar_lea.vmem [#allocation3], %s411
        %p413 = pneg %p49
        %p414 = pneg %p46
        %p415 = scmp.lt.s32.totalorder %s28, 2
        %s416 = scalar_select %p415, %s28, 2
        %s417 = smul.addr %s416, 8
        %s418 = scalar_lea.vmem %s1, %s417
        %p419 = pneg %p75
        %p420 = pneg %p72
        %p421 = pneg %p96
        %p422 = pneg %p93
        %p423 = pneg %p117
        %p424 = pneg %p114
        %p425 = pneg %p138
        %p426 = pneg %p135
        %p427 = pneg %p159
        %p428 = pneg %p156
        %p429 = pneg %p180
        %p430 = pneg %p177
        %p431 = pneg %p201
        %p432 = pneg %p198
        %p433 = pneg %p222
        %p434 = pneg %p219
        %p435 = pneg %p248
        %p436 = pneg %p245
        %p437 = scmp.lt.s32.totalorder %s28, 2
        %s438 = scalar_select %p437, %s28, 2
        %s439 = smul.addr %s438, 8
        %s440 = scalar_lea.vmem %s9, %s439
        %p441 = scmp.lt.s32.totalorder %s28, 2
        %s442 = scalar_select %p441, %s28, 2
        %s443 = smul.addr %s442, 8
        %s444 = scalar_lea.vmem %s1, %s443
        %p445 = scmp.lt.s32.totalorder %s28, 2
        %s446 = scalar_select %p445, %s28, 2
        %s447 = smul.addr %s446, 8
        %s448 = scalar_lea.vmem %s9, %s447
        %v449 = vld [vmem:[%s379] sm:$0xff]
        %v450 = vld [vmem:[%s379 + $0x8] sm:$0xff]
        %v451 = vld [vmem:[%s379 + $0x10] sm:$0xff]
        %v452 = vld [vmem:[%s379 + $0x18] sm:$0xff]
        %v453 = vld [vmem:[#allocation5] sm:$0xff]
        %v454 = vld [vmem:[#allocation5 + $0x8] sm:$0xff]
        %v455 = vld [vmem:[#allocation5 + $0x10] sm:$0xff]
        %v456 = vld [vmem:[#allocation5 + $0x18] sm:$0xff]
        %v457 = vld [vmem:[#allocation5 + $0x20] sm:$0xff]
        %v458 = vld [vmem:[#allocation5 + $0x28] sm:$0xff]
        %v459 = vld [vmem:[#allocation5 + $0x30] sm:$0xff]
        %v460 = vld [vmem:[#allocation5 + $0x38] sm:$0xff]
        %v461 = vld [vmem:[#allocation5 + $0x40] sm:$0xff]
        %v462 = vld [vmem:[#allocation5 + $0x48] sm:$0xff]
        %v463 = vld [vmem:[#allocation5 + $0x50] sm:$0xff]
        %v464 = vld [vmem:[#allocation5 + $0x58] sm:$0xff]
        %v465 = vld [vmem:[#allocation5 + $0x60] sm:$0xff]
        %v466 = vld [vmem:[#allocation5 + $0x68] sm:$0xff]
        %v467 = vld [vmem:[#allocation5 + $0x70] sm:$0xff]
        %v468 = vld [vmem:[#allocation5 + $0x78] sm:$0xff]
        %v469 = vld [vmem:[#allocation5 + $0x80] sm:$0xff]
        %v470 = vld [vmem:[#allocation5 + $0x88] sm:$0xff]
        %v471 = vld [vmem:[#allocation5 + $0x90] sm:$0xff]
        %v472 = vld [vmem:[#allocation5 + $0x98] sm:$0xff]
        %v473 = vld [vmem:[#allocation5 + $0xa0] sm:$0xff]
        %v474 = vld [vmem:[#allocation5 + $0xa8] sm:$0xff]
        %v475 = vld [vmem:[#allocation5 + $0xb0] sm:$0xff]
        %v476 = vld [vmem:[#allocation5 + $0xb8] sm:$0xff]
        %v477 = vld [vmem:[#allocation5 + $0xc0] sm:$0xff]
        %v478 = vld [vmem:[#allocation5 + $0xc8] sm:$0xff]
        %v479 = vld [vmem:[#allocation5 + $0xd0] sm:$0xff]
        %v480 = vld [vmem:[#allocation5 + $0xd8] sm:$0xff]
        %v481 = vld [vmem:[#allocation5 + $0xe0] sm:$0xff]
        %v482 = vld [vmem:[#allocation5 + $0xe8] sm:$0xff]
        %v483 = vld [vmem:[#allocation5 + $0xf0] sm:$0xff]
        %v484 = vld [vmem:[#allocation5 + $0xf8] sm:$0xff]
        %v485 = vld [vmem:[#allocation5 + $0x100] sm:$0xff]
        %v486 = vld [vmem:[#allocation5 + $0x108] sm:$0xff]
        %v487 = vld [vmem:[#allocation5 + $0x110] sm:$0xff]
        %v488 = vld [vmem:[#allocation5 + $0x118] sm:$0xff]
        %v489 = vld [vmem:[#allocation5 + $0x120] sm:$0xff]
        %v490 = vld [vmem:[#allocation5 + $0x128] sm:$0xff]
        %v491 = vld [vmem:[#allocation5 + $0x130] sm:$0xff]
        %v492 = vld [vmem:[#allocation5 + $0x138] sm:$0xff]
        %v493 = vld [vmem:[#allocation5 + $0x140] sm:$0xff]
        %v494 = vld [vmem:[#allocation5 + $0x148] sm:$0xff]
        %v495 = vld [vmem:[#allocation5 + $0x150] sm:$0xff]
        %v496 = vld [vmem:[#allocation5 + $0x158] sm:$0xff]
        %v497 = vld [vmem:[#allocation5 + $0x160] sm:$0xff]
        %v498 = vld [vmem:[#allocation5 + $0x168] sm:$0xff]
        %v499 = vld [vmem:[#allocation5 + $0x170] sm:$0xff]
        %v500 = vld [vmem:[#allocation5 + $0x178] sm:$0xff]
        %v501 = vld [vmem:[#allocation5 + $0x180] sm:$0xff]
        %v502 = vld [vmem:[#allocation5 + $0x188] sm:$0xff]
        %v503 = vld [vmem:[#allocation5 + $0x190] sm:$0xff]
        %v504 = vld [vmem:[#allocation5 + $0x198] sm:$0xff]
        %v505 = vld [vmem:[#allocation5 + $0x1a0] sm:$0xff]
        %v506 = vld [vmem:[#allocation5 + $0x1a8] sm:$0xff]
        %v507 = vld [vmem:[#allocation5 + $0x1b0] sm:$0xff]
        %v508 = vld [vmem:[#allocation5 + $0x1b8] sm:$0xff]
        %v509 = vld [vmem:[#allocation5 + $0x1c0] sm:$0xff]
        %v510 = vld [vmem:[#allocation5 + $0x1c8] sm:$0xff]
        %v511 = vld [vmem:[#allocation5 + $0x1d0] sm:$0xff]
        %v512 = vld [vmem:[#allocation5 + $0x1d8] sm:$0xff]
        %v513 = vld [vmem:[#allocation5 + $0x1e0] sm:$0xff]
        %v514 = vld [vmem:[#allocation5 + $0x1e8] sm:$0xff]
        %v515 = vld [vmem:[#allocation5 + $0x1f0] sm:$0xff]
        %v516 = vld [vmem:[#allocation5 + $0x1f8] sm:$0xff]
        %v517 = vld [vmem:[#allocation5 + $0x200] sm:$0xff]
        %v518 = vld [vmem:[#allocation5 + $0x208] sm:$0xff]
        %v519 = vld [vmem:[#allocation5 + $0x210] sm:$0xff]
        %v520 = vld [vmem:[#allocation5 + $0x218] sm:$0xff]
        %v521 = vld [vmem:[#allocation5 + $0x220] sm:$0xff]
        %v522 = vld [vmem:[#allocation5 + $0x228] sm:$0xff]
        %v523 = vld [vmem:[#allocation5 + $0x230] sm:$0xff]
        %v524 = vld [vmem:[#allocation5 + $0x238] sm:$0xff]
        %v525 = vld [vmem:[#allocation5 + $0x240] sm:$0xff]
        %v526 = vld [vmem:[#allocation5 + $0x248] sm:$0xff]
        %v527 = vld [vmem:[#allocation5 + $0x250] sm:$0xff]
        %v528 = vld [vmem:[#allocation5 + $0x258] sm:$0xff]
        %v529 = vld [vmem:[#allocation5 + $0x260] sm:$0xff]
        %v530 = vld [vmem:[#allocation5 + $0x268] sm:$0xff]
        %v531 = vld [vmem:[#allocation5 + $0x270] sm:$0xff]
        %v532 = vld [vmem:[#allocation5 + $0x278] sm:$0xff]
        %v533 = vld [vmem:[#allocation5 + $0x280] sm:$0xff]
        %v534 = vld [vmem:[#allocation5 + $0x288] sm:$0xff]
        %v535 = vld [vmem:[#allocation5 + $0x290] sm:$0xff]
        %v536 = vld [vmem:[#allocation5 + $0x298] sm:$0xff]
        %v537 = vld [vmem:[#allocation5 + $0x2a0] sm:$0xff]
        %v538 = vld [vmem:[#allocation5 + $0x2a8] sm:$0xff]
        %v539 = vld [vmem:[#allocation5 + $0x2b0] sm:$0xff]
        %v540 = vld [vmem:[#allocation5 + $0x2b8] sm:$0xff]
        %v541 = vld [vmem:[#allocation5 + $0x2c0] sm:$0xff]
        %v542 = vld [vmem:[#allocation5 + $0x2c8] sm:$0xff]
        %v543 = vld [vmem:[#allocation5 + $0x2d0] sm:$0xff]
        %v544 = vld [vmem:[#allocation5 + $0x2d8] sm:$0xff]
        %v545 = vld [vmem:[#allocation5 + $0x2e0] sm:$0xff]
        %v546 = vld [vmem:[#allocation5 + $0x2e8] sm:$0xff]
        %v547 = vld [vmem:[#allocation5 + $0x2f0] sm:$0xff]
        %v548 = vld [vmem:[#allocation5 + $0x2f8] sm:$0xff]
        %v549 = vld [vmem:[#allocation5 + $0x300] sm:$0xff]
        %v550 = vld [vmem:[#allocation5 + $0x308] sm:$0xff]
        %v551 = vld [vmem:[#allocation5 + $0x310] sm:$0xff]
        %v552 = vld [vmem:[#allocation5 + $0x318] sm:$0xff]
        %v553 = vld [vmem:[#allocation5 + $0x320] sm:$0xff]
        %v554 = vld [vmem:[#allocation5 + $0x328] sm:$0xff]
        %v555 = vld [vmem:[#allocation5 + $0x330] sm:$0xff]
        %v556 = vld [vmem:[#allocation5 + $0x338] sm:$0xff]
        %v557 = vld [vmem:[#allocation5 + $0x340] sm:$0xff]
        %v558 = vld [vmem:[#allocation5 + $0x348] sm:$0xff]
        %v559 = vld [vmem:[#allocation5 + $0x350] sm:$0xff]
        %v560 = vld [vmem:[#allocation5 + $0x358] sm:$0xff]
        %v561 = vld [vmem:[#allocation5 + $0x360] sm:$0xff]
        %v562 = vld [vmem:[#allocation5 + $0x368] sm:$0xff]
        %v563 = vld [vmem:[#allocation5 + $0x370] sm:$0xff]
        %v564 = vld [vmem:[#allocation5 + $0x378] sm:$0xff]
        %v565 = vld [vmem:[#allocation5 + $0x380] sm:$0xff]
        %v566 = vld [vmem:[#allocation5 + $0x388] sm:$0xff]
        %v567 = vld [vmem:[#allocation5 + $0x390] sm:$0xff]
        %v568 = vld [vmem:[#allocation5 + $0x398] sm:$0xff]
        %v569 = vld [vmem:[#allocation5 + $0x3a0] sm:$0xff]
        %v570 = vld [vmem:[#allocation5 + $0x3a8] sm:$0xff]
        %v571 = vld [vmem:[#allocation5 + $0x3b0] sm:$0xff]
        %v572 = vld [vmem:[#allocation5 + $0x3b8] sm:$0xff]
        %v573 = vld [vmem:[#allocation5 + $0x3c0] sm:$0xff]
        %v574 = vld [vmem:[#allocation5 + $0x3c8] sm:$0xff]
        %v575 = vld [vmem:[#allocation5 + $0x3d0] sm:$0xff]
        %v576 = vld [vmem:[#allocation5 + $0x3d8] sm:$0xff]
        %v577 = vld [vmem:[#allocation5 + $0x3e0] sm:$0xff]
        %v578 = vld [vmem:[#allocation5 + $0x3e8] sm:$0xff]
        %v579 = vld [vmem:[#allocation5 + $0x3f0] sm:$0xff]
        %v580 = vld [vmem:[#allocation5 + $0x3f8] sm:$0xff]
        %v581 = vld [vmem:[#allocation5 + $0x400] sm:$0xff]
        %v582 = vld [vmem:[#allocation5 + $0x408] sm:$0xff]
        %v583 = vld [vmem:[#allocation5 + $0x410] sm:$0xff]
        %v584 = vld [vmem:[#allocation5 + $0x418] sm:$0xff]
        %v585 = vld [vmem:[#allocation5 + $0x420] sm:$0xff]
        %v586 = vld [vmem:[#allocation5 + $0x428] sm:$0xff]
        %v587 = vld [vmem:[#allocation5 + $0x430] sm:$0xff]
        %v588 = vld [vmem:[#allocation5 + $0x438] sm:$0xff]
        %v589 = vld [vmem:[#allocation5 + $0x440] sm:$0xff]
        %v590 = vld [vmem:[#allocation5 + $0x448] sm:$0xff]
        %v591 = vld [vmem:[#allocation5 + $0x450] sm:$0xff]
        %v592 = vld [vmem:[#allocation5 + $0x458] sm:$0xff]
        %v593 = vld [vmem:[#allocation5 + $0x460] sm:$0xff]
        %v594 = vld [vmem:[#allocation5 + $0x468] sm:$0xff]
        %v595 = vld [vmem:[#allocation5 + $0x470] sm:$0xff]
        %v596 = vld [vmem:[#allocation5 + $0x478] sm:$0xff]
        %v597 = vld [vmem:[#allocation5 + $0x480] sm:$0xff]
        %v598 = vld [vmem:[#allocation5 + $0x488] sm:$0xff]
        %v599 = vld [vmem:[#allocation5 + $0x490] sm:$0xff]
        %v600 = vld [vmem:[#allocation5 + $0x498] sm:$0xff]
        %v601 = vld [vmem:[#allocation5 + $0x4a0] sm:$0xff]
        %v602 = vld [vmem:[#allocation5 + $0x4a8] sm:$0xff]
        %v603 = vld [vmem:[#allocation5 + $0x4b0] sm:$0xff]
        %v604 = vld [vmem:[#allocation5 + $0x4b8] sm:$0xff]
        %v605 = vld [vmem:[#allocation5 + $0x4c0] sm:$0xff]
        %v606 = vld [vmem:[#allocation5 + $0x4c8] sm:$0xff]
        %v607 = vld [vmem:[#allocation5 + $0x4d0] sm:$0xff]
        %v608 = vld [vmem:[#allocation5 + $0x4d8] sm:$0xff]
        %v609 = vld [vmem:[#allocation5 + $0x4e0] sm:$0xff]
        %v610 = vld [vmem:[#allocation5 + $0x4e8] sm:$0xff]
        %v611 = vld [vmem:[#allocation5 + $0x4f0] sm:$0xff]
        %v612 = vld [vmem:[#allocation5 + $0x4f8] sm:$0xff]
        %v613 = vld [vmem:[#allocation5 + $0x500] sm:$0xff]
        %v614 = vld [vmem:[#allocation5 + $0x508] sm:$0xff]
        %v615 = vld [vmem:[#allocation5 + $0x510] sm:$0xff]
        %v616 = vld [vmem:[#allocation5 + $0x518] sm:$0xff]
        %v617 = vld [vmem:[#allocation5 + $0x520] sm:$0xff]
        %v618 = vld [vmem:[#allocation5 + $0x528] sm:$0xff]
        %v619 = vld [vmem:[#allocation5 + $0x530] sm:$0xff]
        %v620 = vld [vmem:[#allocation5 + $0x538] sm:$0xff]
        %v621 = vld [vmem:[#allocation5 + $0x540] sm:$0xff]
        %v622 = vld [vmem:[#allocation5 + $0x548] sm:$0xff]
        %v623 = vld [vmem:[#allocation5 + $0x550] sm:$0xff]
        %v624 = vld [vmem:[#allocation5 + $0x558] sm:$0xff]
        %v625 = vld [vmem:[#allocation5 + $0x560] sm:$0xff]
        %v626 = vld [vmem:[#allocation5 + $0x568] sm:$0xff]
        %v627 = vld [vmem:[#allocation5 + $0x570] sm:$0xff]
        %v628 = vld [vmem:[#allocation5 + $0x578] sm:$0xff]
        %v629 = vld [vmem:[#allocation5 + $0x580] sm:$0xff]
        %v630 = vld [vmem:[#allocation5 + $0x588] sm:$0xff]
        %v631 = vld [vmem:[#allocation5 + $0x590] sm:$0xff]
        %v632 = vld [vmem:[#allocation5 + $0x598] sm:$0xff]
        %v633 = vld [vmem:[#allocation5 + $0x5a0] sm:$0xff]
        %v634 = vld [vmem:[#allocation5 + $0x5a8] sm:$0xff]
        %v635 = vld [vmem:[#allocation5 + $0x5b0] sm:$0xff]
        %v636 = vld [vmem:[#allocation5 + $0x5b8] sm:$0xff]
        %v637 = vld [vmem:[#allocation5 + $0x5c0] sm:$0xff]
        %v638 = vld [vmem:[#allocation5 + $0x5c8] sm:$0xff]
        %v639 = vld [vmem:[#allocation5 + $0x5d0] sm:$0xff]
        %v640 = vld [vmem:[#allocation5 + $0x5d8] sm:$0xff]
        %v641 = vld [vmem:[#allocation5 + $0x5e0] sm:$0xff]
        %v642 = vld [vmem:[#allocation5 + $0x5e8] sm:$0xff]
        %v643 = vld [vmem:[#allocation5 + $0x5f0] sm:$0xff]
        %v644 = vld [vmem:[#allocation5 + $0x5f8] sm:$0xff]
        %v645 = vld [vmem:[#allocation5 + $0x600] sm:$0xff]
        %v646 = vld [vmem:[#allocation5 + $0x608] sm:$0xff]
        %v647 = vld [vmem:[#allocation5 + $0x610] sm:$0xff]
        %v648 = vld [vmem:[#allocation5 + $0x618] sm:$0xff]
        %v649 = vld [vmem:[#allocation5 + $0x620] sm:$0xff]
        %v650 = vld [vmem:[#allocation5 + $0x628] sm:$0xff]
        %v651 = vld [vmem:[#allocation5 + $0x630] sm:$0xff]
        %v652 = vld [vmem:[#allocation5 + $0x638] sm:$0xff]
        %v653 = vld [vmem:[#allocation5 + $0x640] sm:$0xff]
        %v654 = vld [vmem:[#allocation5 + $0x648] sm:$0xff]
        %v655 = vld [vmem:[#allocation5 + $0x650] sm:$0xff]
        %v656 = vld [vmem:[#allocation5 + $0x658] sm:$0xff]
        %v657 = vld [vmem:[#allocation5 + $0x660] sm:$0xff]
        %v658 = vld [vmem:[#allocation5 + $0x668] sm:$0xff]
        %v659 = vld [vmem:[#allocation5 + $0x670] sm:$0xff]
        %v660 = vld [vmem:[#allocation5 + $0x678] sm:$0xff]
        %v661 = vld [vmem:[#allocation5 + $0x680] sm:$0xff]
        %v662 = vld [vmem:[#allocation5 + $0x688] sm:$0xff]
        %v663 = vld [vmem:[#allocation5 + $0x690] sm:$0xff]
        %v664 = vld [vmem:[#allocation5 + $0x698] sm:$0xff]
        %v665 = vld [vmem:[#allocation5 + $0x6a0] sm:$0xff]
        %v666 = vld [vmem:[#allocation5 + $0x6a8] sm:$0xff]
        %v667 = vld [vmem:[#allocation5 + $0x6b0] sm:$0xff]
        %v668 = vld [vmem:[#allocation5 + $0x6b8] sm:$0xff]
        %v669 = vld [vmem:[#allocation5 + $0x6c0] sm:$0xff]
        %v670 = vld [vmem:[#allocation5 + $0x6c8] sm:$0xff]
        %v671 = vld [vmem:[#allocation5 + $0x6d0] sm:$0xff]
        %v672 = vld [vmem:[#allocation5 + $0x6d8] sm:$0xff]
        %v673 = vld [vmem:[#allocation5 + $0x6e0] sm:$0xff]
        %v674 = vld [vmem:[#allocation5 + $0x6e8] sm:$0xff]
        %v675 = vld [vmem:[#allocation5 + $0x6f0] sm:$0xff]
        %v676 = vld [vmem:[#allocation5 + $0x6f8] sm:$0xff]
        %v677 = vld [vmem:[#allocation5 + $0x700] sm:$0xff]
        %v678 = vld [vmem:[#allocation5 + $0x708] sm:$0xff]
        %v679 = vld [vmem:[#allocation5 + $0x710] sm:$0xff]
        %v680 = vld [vmem:[#allocation5 + $0x718] sm:$0xff]
        %v681 = vld [vmem:[#allocation5 + $0x720] sm:$0xff]
        %v682 = vld [vmem:[#allocation5 + $0x728] sm:$0xff]
        %v683 = vld [vmem:[#allocation5 + $0x730] sm:$0xff]
        %v684 = vld [vmem:[#allocation5 + $0x738] sm:$0xff]
        %v685 = vld [vmem:[#allocation5 + $0x740] sm:$0xff]
        %v686 = vld [vmem:[#allocation5 + $0x748] sm:$0xff]
        %v687 = vld [vmem:[#allocation5 + $0x750] sm:$0xff]
        %v688 = vld [vmem:[#allocation5 + $0x758] sm:$0xff]
        %v689 = vld [vmem:[#allocation5 + $0x760] sm:$0xff]
        %v690 = vld [vmem:[#allocation5 + $0x768] sm:$0xff]
        %v691 = vld [vmem:[#allocation5 + $0x770] sm:$0xff]
        %v692 = vld [vmem:[#allocation5 + $0x778] sm:$0xff]
        %v693 = vld [vmem:[#allocation5 + $0x780] sm:$0xff]
        %v694 = vld [vmem:[#allocation5 + $0x788] sm:$0xff]
        %v695 = vld [vmem:[#allocation5 + $0x790] sm:$0xff]
        %v696 = vld [vmem:[#allocation5 + $0x798] sm:$0xff]
        %v697 = vld [vmem:[#allocation5 + $0x7a0] sm:$0xff]
        %v698 = vld [vmem:[#allocation5 + $0x7a8] sm:$0xff]
        %v699 = vld [vmem:[#allocation5 + $0x7b0] sm:$0xff]
        %v700 = vld [vmem:[#allocation5 + $0x7b8] sm:$0xff]
        %v701 = vld [vmem:[#allocation5 + $0x7c0] sm:$0xff]
        %v702 = vld [vmem:[#allocation5 + $0x7c8] sm:$0xff]
        %v703 = vld [vmem:[#allocation5 + $0x7d0] sm:$0xff]
        %v704 = vld [vmem:[#allocation5 + $0x7d8] sm:$0xff]
        %v705 = vld [vmem:[#allocation5 + $0x7e0] sm:$0xff]
        %v706 = vld [vmem:[#allocation5 + $0x7e8] sm:$0xff]
        %v707 = vld [vmem:[#allocation5 + $0x7f0] sm:$0xff]
        %v708 = vld [vmem:[#allocation5 + $0x7f8] sm:$0xff]
        %v709 = vld [vmem:[#allocation5 + $0x800] sm:$0xff]
        %v710 = vld [vmem:[#allocation5 + $0x808] sm:$0xff]
        %v711 = vld [vmem:[#allocation5 + $0x810] sm:$0xff]
        %v712 = vld [vmem:[#allocation5 + $0x818] sm:$0xff]
        %v713 = vld [vmem:[#allocation5 + $0x820] sm:$0xff]
        %v714 = vld [vmem:[#allocation5 + $0x828] sm:$0xff]
        %v715 = vld [vmem:[#allocation5 + $0x830] sm:$0xff]
        %v716 = vld [vmem:[#allocation5 + $0x838] sm:$0xff]
        %v717 = vld [vmem:[#allocation5 + $0x840] sm:$0xff]
        %v718 = vld [vmem:[#allocation5 + $0x848] sm:$0xff]
        %v719 = vld [vmem:[#allocation5 + $0x850] sm:$0xff]
        %v720 = vld [vmem:[#allocation5 + $0x858] sm:$0xff]
        %v721 = vld [vmem:[#allocation5 + $0x860] sm:$0xff]
        %v722 = vld [vmem:[#allocation5 + $0x868] sm:$0xff]
        %v723 = vld [vmem:[#allocation5 + $0x870] sm:$0xff]
        %v724 = vld [vmem:[#allocation5 + $0x878] sm:$0xff]
        %v725 = vld [vmem:[#allocation5 + $0x880] sm:$0xff]
        %v726 = vld [vmem:[#allocation5 + $0x888] sm:$0xff]
        %v727 = vld [vmem:[#allocation5 + $0x890] sm:$0xff]
        %v728 = vld [vmem:[#allocation5 + $0x898] sm:$0xff]
        %v729 = vld [vmem:[#allocation5 + $0x8a0] sm:$0xff]
        %v730 = vld [vmem:[#allocation5 + $0x8a8] sm:$0xff]
        %v731 = vld [vmem:[#allocation5 + $0x8b0] sm:$0xff]
        %v732 = vld [vmem:[#allocation5 + $0x8b8] sm:$0xff]
        %v733 = vld [vmem:[#allocation5 + $0x8c0] sm:$0xff]
        %v734 = vld [vmem:[#allocation5 + $0x8c8] sm:$0xff]
        %v735 = vld [vmem:[#allocation5 + $0x8d0] sm:$0xff]
        %v736 = vld [vmem:[#allocation5 + $0x8d8] sm:$0xff]
        %v737 = vld [vmem:[#allocation5 + $0x8e0] sm:$0xff]
        %v738 = vld [vmem:[#allocation5 + $0x8e8] sm:$0xff]
        %v739 = vld [vmem:[#allocation5 + $0x8f0] sm:$0xff]
        %v740 = vld [vmem:[#allocation5 + $0x8f8] sm:$0xff]
        %v741 = vld [vmem:[#allocation5 + $0x900] sm:$0xff]
        %v742 = vld [vmem:[#allocation5 + $0x908] sm:$0xff]
        %v743 = vld [vmem:[#allocation5 + $0x910] sm:$0xff]
        %v744 = vld [vmem:[#allocation5 + $0x918] sm:$0xff]
        %v745 = vld [vmem:[#allocation5 + $0x920] sm:$0xff]
        %v746 = vld [vmem:[#allocation5 + $0x928] sm:$0xff]
        %v747 = vld [vmem:[#allocation5 + $0x930] sm:$0xff]
        %v748 = vld [vmem:[#allocation5 + $0x938] sm:$0xff]
        %v749 = vld [vmem:[#allocation5 + $0x940] sm:$0xff]
        %v750 = vld [vmem:[#allocation5 + $0x948] sm:$0xff]
        %v751 = vld [vmem:[#allocation5 + $0x950] sm:$0xff]
        %v752 = vld [vmem:[#allocation5 + $0x958] sm:$0xff]
        %v753 = vld [vmem:[#allocation5 + $0x960] sm:$0xff]
        %v754 = vld [vmem:[#allocation5 + $0x968] sm:$0xff]
        %v755 = vld [vmem:[#allocation5 + $0x970] sm:$0xff]
        %v756 = vld [vmem:[#allocation5 + $0x978] sm:$0xff]
        %v757 = vld [vmem:[#allocation5 + $0x980] sm:$0xff]
        %v758 = vld [vmem:[#allocation5 + $0x988] sm:$0xff]
        %v759 = vld [vmem:[#allocation5 + $0x990] sm:$0xff]
        %v760 = vld [vmem:[#allocation5 + $0x998] sm:$0xff]
        %v761 = vld [vmem:[#allocation5 + $0x9a0] sm:$0xff]
        %v762 = vld [vmem:[#allocation5 + $0x9a8] sm:$0xff]
        %v763 = vld [vmem:[#allocation5 + $0x9b0] sm:$0xff]
        %v764 = vld [vmem:[#allocation5 + $0x9b8] sm:$0xff]
        %v765 = vld [vmem:[#allocation5 + $0x9c0] sm:$0xff]
        %v766 = vld [vmem:[#allocation5 + $0x9c8] sm:$0xff]
        %v767 = vld [vmem:[#allocation5 + $0x9d0] sm:$0xff]
        %v768 = vld [vmem:[#allocation5 + $0x9d8] sm:$0xff]
        %v769 = vld [vmem:[#allocation5 + $0x9e0] sm:$0xff]
        %v770 = vld [vmem:[#allocation5 + $0x9e8] sm:$0xff]
        %v771 = vld [vmem:[#allocation5 + $0x9f0] sm:$0xff]
        %v772 = vld [vmem:[#allocation5 + $0x9f8] sm:$0xff]
        %v773 = vld [vmem:[#allocation5 + $0xa00] sm:$0xff]
        %v774 = vld [vmem:[#allocation5 + $0xa08] sm:$0xff]
        %v775 = vld [vmem:[#allocation5 + $0xa10] sm:$0xff]
        %v776 = vld [vmem:[#allocation5 + $0xa18] sm:$0xff]
        %v777 = vld [vmem:[#allocation5 + $0xa20] sm:$0xff]
        %v778 = vld [vmem:[#allocation5 + $0xa28] sm:$0xff]
        %v779 = vld [vmem:[#allocation5 + $0xa30] sm:$0xff]
        %v780 = vld [vmem:[#allocation5 + $0xa38] sm:$0xff]
        %v781 = vld [vmem:[#allocation5 + $0xa40] sm:$0xff]
        %v782 = vld [vmem:[#allocation5 + $0xa48] sm:$0xff]
        %v783 = vld [vmem:[#allocation5 + $0xa50] sm:$0xff]
        %v784 = vld [vmem:[#allocation5 + $0xa58] sm:$0xff]
        %v785 = vld [vmem:[#allocation5 + $0xa60] sm:$0xff]
        %v786 = vld [vmem:[#allocation5 + $0xa68] sm:$0xff]
        %v787 = vld [vmem:[#allocation5 + $0xa70] sm:$0xff]
        %v788 = vld [vmem:[#allocation5 + $0xa78] sm:$0xff]
        %v789 = vld [vmem:[#allocation5 + $0xa80] sm:$0xff]
        %v790 = vld [vmem:[#allocation5 + $0xa88] sm:$0xff]
        %v791 = vld [vmem:[#allocation5 + $0xa90] sm:$0xff]
        %v792 = vld [vmem:[#allocation5 + $0xa98] sm:$0xff]
        %v793 = vld [vmem:[#allocation5 + $0xaa0] sm:$0xff]
        %v794 = vld [vmem:[#allocation5 + $0xaa8] sm:$0xff]
        %v795 = vld [vmem:[#allocation5 + $0xab0] sm:$0xff]
        %v796 = vld [vmem:[#allocation5 + $0xab8] sm:$0xff]
        %v797 = vld [vmem:[#allocation5 + $0xac0] sm:$0xff]
        %v798 = vld [vmem:[#allocation5 + $0xac8] sm:$0xff]
        %v799 = vld [vmem:[#allocation5 + $0xad0] sm:$0xff]
        %v800 = vld [vmem:[#allocation5 + $0xad8] sm:$0xff]
        %v801 = vld [vmem:[#allocation5 + $0xae0] sm:$0xff]
        %v802 = vld [vmem:[#allocation5 + $0xae8] sm:$0xff]
        %v803 = vld [vmem:[#allocation5 + $0xaf0] sm:$0xff]
        %v804 = vld [vmem:[#allocation5 + $0xaf8] sm:$0xff]
        %v805 = vld [vmem:[#allocation5 + $0xb00] sm:$0xff]
        %v806 = vld [vmem:[#allocation5 + $0xb08] sm:$0xff]
        %v807 = vld [vmem:[#allocation5 + $0xb10] sm:$0xff]
        %v808 = vld [vmem:[#allocation5 + $0xb18] sm:$0xff]
        %v809 = vld [vmem:[#allocation5 + $0xb20] sm:$0xff]
        %v810 = vld [vmem:[#allocation5 + $0xb28] sm:$0xff]
        %v811 = vld [vmem:[#allocation5 + $0xb30] sm:$0xff]
        %v812 = vld [vmem:[#allocation5 + $0xb38] sm:$0xff]
        %v813 = vld [vmem:[#allocation5 + $0xb40] sm:$0xff]
        %v814 = vld [vmem:[#allocation5 + $0xb48] sm:$0xff]
        %v815 = vld [vmem:[#allocation5 + $0xb50] sm:$0xff]
        %v816 = vld [vmem:[#allocation5 + $0xb58] sm:$0xff]
        %v817 = vld [vmem:[#allocation5 + $0xb60] sm:$0xff]
        %v818 = vld [vmem:[#allocation5 + $0xb68] sm:$0xff]
        %v819 = vld [vmem:[#allocation5 + $0xb70] sm:$0xff]
        %v820 = vld [vmem:[#allocation5 + $0xb78] sm:$0xff]
        %v821 = vld [vmem:[#allocation5 + $0xb80] sm:$0xff]
        %v822 = vld [vmem:[#allocation5 + $0xb88] sm:$0xff]
        %v823 = vld [vmem:[#allocation5 + $0xb90] sm:$0xff]
        %v824 = vld [vmem:[#allocation5 + $0xb98] sm:$0xff]
        %v825 = vld [vmem:[#allocation5 + $0xba0] sm:$0xff]
        %v826 = vld [vmem:[#allocation5 + $0xba8] sm:$0xff]
        %v827 = vld [vmem:[#allocation5 + $0xbb0] sm:$0xff]
        %v828 = vld [vmem:[#allocation5 + $0xbb8] sm:$0xff]
        %v829 = vld [vmem:[#allocation5 + $0xbc0] sm:$0xff]
        %v830 = vld [vmem:[#allocation5 + $0xbc8] sm:$0xff]
        %v831 = vld [vmem:[#allocation5 + $0xbd0] sm:$0xff]
        %v832 = vld [vmem:[#allocation5 + $0xbd8] sm:$0xff]
        %v833 = vld [vmem:[#allocation5 + $0xbe0] sm:$0xff]
        %v834 = vld [vmem:[#allocation5 + $0xbe8] sm:$0xff]
        %v835 = vld [vmem:[#allocation5 + $0xbf0] sm:$0xff]
        %v836 = vld [vmem:[#allocation5 + $0xbf8] sm:$0xff]
        %v841 = vunpack.c.l.b16 %v449
        %v842 = vunpack.c.h.b16 %v449
        %v843 = vunpack.c.l.b16 %v450
        %v844 = vunpack.c.h.b16 %v450
        %v845 = vunpack.c.l.b16 %v451
        %v846 = vunpack.c.h.b16 %v451
        %v847 = vunpack.c.l.b16 %v452
        %v848 = vunpack.c.h.b16 %v452
        %v849 = vpack.c.b16 %v841, %v841
        %v850 = vpack.c.b16 %v842, %v842
        %v851 = vpack.c.b16 %v843, %v843
        %v852 = vpack.c.b16 %v844, %v844
        %v853 = vpack.c.b16 %v845, %v845
        %v854 = vpack.c.b16 %v846, %v846
        %v855 = vpack.c.b16 %v847, %v847
        %v856 = vpack.c.b16 %v848, %v848
        %v1249 = vunpack.c.l.b16 %v453
        %v1250 = vunpack.c.h.b16 %v453
        %v1251 = vunpack.c.l.b16 %v454
        %v1252 = vunpack.c.h.b16 %v454
        %v1253 = vunpack.c.l.b16 %v455
        %v1254 = vunpack.c.h.b16 %v455
        %v1255 = vunpack.c.l.b16 %v456
        %v1256 = vunpack.c.h.b16 %v456
        %v1257 = vunpack.c.l.b16 %v457
        %v1258 = vunpack.c.h.b16 %v457
        %v1259 = vunpack.c.l.b16 %v458
        %v1260 = vunpack.c.h.b16 %v458
        %v1261 = vunpack.c.l.b16 %v459
        %v1262 = vunpack.c.h.b16 %v459
        %v1263 = vunpack.c.l.b16 %v460
        %v1264 = vunpack.c.h.b16 %v460
        %v1265 = vunpack.c.l.b16 %v461
        %v1266 = vunpack.c.h.b16 %v461
        %v1267 = vunpack.c.l.b16 %v462
        %v1268 = vunpack.c.h.b16 %v462
        %v1269 = vunpack.c.l.b16 %v463
        %v1270 = vunpack.c.h.b16 %v463
        %v1271 = vunpack.c.l.b16 %v464
        %v1272 = vunpack.c.h.b16 %v464
        %v1273 = vunpack.c.l.b16 %v465
        %v1274 = vunpack.c.h.b16 %v465
        %v1275 = vunpack.c.l.b16 %v466
        %v1276 = vunpack.c.h.b16 %v466
        %v1277 = vunpack.c.l.b16 %v467
        %v1278 = vunpack.c.h.b16 %v467
        %v1279 = vunpack.c.l.b16 %v468
        %v1280 = vunpack.c.h.b16 %v468
        %v1281 = vunpack.c.l.b16 %v469
        %v1282 = vunpack.c.h.b16 %v469
        %v1283 = vunpack.c.l.b16 %v470
        %v1284 = vunpack.c.h.b16 %v470
        %v1285 = vunpack.c.l.b16 %v471
        %v1286 = vunpack.c.h.b16 %v471
        %v1287 = vunpack.c.l.b16 %v472
        %v1288 = vunpack.c.h.b16 %v472
        %v1289 = vunpack.c.l.b16 %v473
        %v1290 = vunpack.c.h.b16 %v473
        %v1291 = vunpack.c.l.b16 %v474
        %v1292 = vunpack.c.h.b16 %v474
        %v1293 = vunpack.c.l.b16 %v475
        %v1294 = vunpack.c.h.b16 %v475
        %v1295 = vunpack.c.l.b16 %v476
        %v1296 = vunpack.c.h.b16 %v476
        %v1297 = vunpack.c.l.b16 %v477
        %v1298 = vunpack.c.h.b16 %v477
        %v1299 = vunpack.c.l.b16 %v478
        %v1300 = vunpack.c.h.b16 %v478
        %v1301 = vunpack.c.l.b16 %v479
        %v1302 = vunpack.c.h.b16 %v479
        %v1303 = vunpack.c.l.b16 %v480
        %v1304 = vunpack.c.h.b16 %v480
        %v1305 = vunpack.c.l.b16 %v481
        %v1306 = vunpack.c.h.b16 %v481
        %v1307 = vunpack.c.l.b16 %v482
        %v1308 = vunpack.c.h.b16 %v482
        %v1309 = vunpack.c.l.b16 %v483
        %v1310 = vunpack.c.h.b16 %v483
        %v1311 = vunpack.c.l.b16 %v484
        %v1312 = vunpack.c.h.b16 %v484
        %v1313 = vunpack.c.l.b16 %v485
        %v1314 = vunpack.c.h.b16 %v485
        %v1315 = vunpack.c.l.b16 %v486
        %v1316 = vunpack.c.h.b16 %v486
        %v1317 = vunpack.c.l.b16 %v487
        %v1318 = vunpack.c.h.b16 %v487
        %v1319 = vunpack.c.l.b16 %v488
        %v1320 = vunpack.c.h.b16 %v488
        %v1321 = vunpack.c.l.b16 %v489
        %v1322 = vunpack.c.h.b16 %v489
        %v1323 = vunpack.c.l.b16 %v490
        %v1324 = vunpack.c.h.b16 %v490
        %v1325 = vunpack.c.l.b16 %v491
        %v1326 = vunpack.c.h.b16 %v491
        %v1327 = vunpack.c.l.b16 %v492
        %v1328 = vunpack.c.h.b16 %v492
        %v1329 = vunpack.c.l.b16 %v493
        %v1330 = vunpack.c.h.b16 %v493
        %v1331 = vunpack.c.l.b16 %v494
        %v1332 = vunpack.c.h.b16 %v494
        %v1333 = vunpack.c.l.b16 %v495
        %v1334 = vunpack.c.h.b16 %v495
        %v1335 = vunpack.c.l.b16 %v496
        %v1336 = vunpack.c.h.b16 %v496
        %v1337 = vunpack.c.l.b16 %v497
        %v1338 = vunpack.c.h.b16 %v497
        %v1339 = vunpack.c.l.b16 %v498
        %v1340 = vunpack.c.h.b16 %v498
        %v1341 = vunpack.c.l.b16 %v499
        %v1342 = vunpack.c.h.b16 %v499
        %v1343 = vunpack.c.l.b16 %v500
        %v1344 = vunpack.c.h.b16 %v500
        %v1345 = vunpack.c.l.b16 %v501
        %v1346 = vunpack.c.h.b16 %v501
        %v1347 = vunpack.c.l.b16 %v502
        %v1348 = vunpack.c.h.b16 %v502
        %v1349 = vunpack.c.l.b16 %v503
        %v1350 = vunpack.c.h.b16 %v503
        %v1351 = vunpack.c.l.b16 %v504
        %v1352 = vunpack.c.h.b16 %v504
        %v1353 = vunpack.c.l.b16 %v505
        %v1354 = vunpack.c.h.b16 %v505
        %v1355 = vunpack.c.l.b16 %v506
        %v1356 = vunpack.c.h.b16 %v506
        %v1357 = vunpack.c.l.b16 %v507
        %v1358 = vunpack.c.h.b16 %v507
        %v1359 = vunpack.c.l.b16 %v508
        %v1360 = vunpack.c.h.b16 %v508
        %v1361 = vunpack.c.l.b16 %v509
        %v1362 = vunpack.c.h.b16 %v509
        %v1363 = vunpack.c.l.b16 %v510
        %v1364 = vunpack.c.h.b16 %v510
        %v1365 = vunpack.c.l.b16 %v511
        %v1366 = vunpack.c.h.b16 %v511
        %v1367 = vunpack.c.l.b16 %v512
        %v1368 = vunpack.c.h.b16 %v512
        %v1369 = vunpack.c.l.b16 %v513
        %v1370 = vunpack.c.h.b16 %v513
        %v1371 = vunpack.c.l.b16 %v514
        %v1372 = vunpack.c.h.b16 %v514
        %v1373 = vunpack.c.l.b16 %v515
        %v1374 = vunpack.c.h.b16 %v515
        %v1375 = vunpack.c.l.b16 %v516
        %v1376 = vunpack.c.h.b16 %v516
        %v1377 = vunpack.c.l.b16 %v517
        %v1378 = vunpack.c.h.b16 %v517
        %v1379 = vunpack.c.l.b16 %v518
        %v1380 = vunpack.c.h.b16 %v518
        %v1381 = vunpack.c.l.b16 %v519
        %v1382 = vunpack.c.h.b16 %v519
        %v1383 = vunpack.c.l.b16 %v520
        %v1384 = vunpack.c.h.b16 %v520
        %v1385 = vunpack.c.l.b16 %v521
        %v1386 = vunpack.c.h.b16 %v521
        %v1387 = vunpack.c.l.b16 %v522
        %v1388 = vunpack.c.h.b16 %v522
        %v1389 = vunpack.c.l.b16 %v523
        %v1390 = vunpack.c.h.b16 %v523
        %v1391 = vunpack.c.l.b16 %v524
        %v1392 = vunpack.c.h.b16 %v524
        %v1393 = vunpack.c.l.b16 %v525
        %v1394 = vunpack.c.h.b16 %v525
        %v1395 = vunpack.c.l.b16 %v526
        %v1396 = vunpack.c.h.b16 %v526
        %v1397 = vunpack.c.l.b16 %v527
        %v1398 = vunpack.c.h.b16 %v527
        %v1399 = vunpack.c.l.b16 %v528
        %v1400 = vunpack.c.h.b16 %v528
        %v1401 = vunpack.c.l.b16 %v529
        %v1402 = vunpack.c.h.b16 %v529
        %v1403 = vunpack.c.l.b16 %v530
        %v1404 = vunpack.c.h.b16 %v530
        %v1405 = vunpack.c.l.b16 %v531
        %v1406 = vunpack.c.h.b16 %v531
        %v1407 = vunpack.c.l.b16 %v532
        %v1408 = vunpack.c.h.b16 %v532
        %v1409 = vunpack.c.l.b16 %v533
        %v1410 = vunpack.c.h.b16 %v533
        %v1411 = vunpack.c.l.b16 %v534
        %v1412 = vunpack.c.h.b16 %v534
        %v1413 = vunpack.c.l.b16 %v535
        %v1414 = vunpack.c.h.b16 %v535
        %v1415 = vunpack.c.l.b16 %v536
        %v1416 = vunpack.c.h.b16 %v536
        %v1417 = vunpack.c.l.b16 %v537
        %v1418 = vunpack.c.h.b16 %v537
        %v1419 = vunpack.c.l.b16 %v538
        %v1420 = vunpack.c.h.b16 %v538
        %v1421 = vunpack.c.l.b16 %v539
        %v1422 = vunpack.c.h.b16 %v539
        %v1423 = vunpack.c.l.b16 %v540
        %v1424 = vunpack.c.h.b16 %v540
        %v1425 = vunpack.c.l.b16 %v541
        %v1426 = vunpack.c.h.b16 %v541
        %v1427 = vunpack.c.l.b16 %v542
        %v1428 = vunpack.c.h.b16 %v542
        %v1429 = vunpack.c.l.b16 %v543
        %v1430 = vunpack.c.h.b16 %v543
        %v1431 = vunpack.c.l.b16 %v544
        %v1432 = vunpack.c.h.b16 %v544
        %v1433 = vunpack.c.l.b16 %v545
        %v1434 = vunpack.c.h.b16 %v545
        %v1435 = vunpack.c.l.b16 %v546
        %v1436 = vunpack.c.h.b16 %v546
        %v1437 = vunpack.c.l.b16 %v547
        %v1438 = vunpack.c.h.b16 %v547
        %v1439 = vunpack.c.l.b16 %v548
        %v1440 = vunpack.c.h.b16 %v548
        %v1441 = vunpack.c.l.b16 %v549
        %v1442 = vunpack.c.h.b16 %v549
        %v1443 = vunpack.c.l.b16 %v550
        %v1444 = vunpack.c.h.b16 %v550
        %v1445 = vunpack.c.l.b16 %v551
        %v1446 = vunpack.c.h.b16 %v551
        %v1447 = vunpack.c.l.b16 %v552
        %v1448 = vunpack.c.h.b16 %v552
        %v1449 = vunpack.c.l.b16 %v553
        %v1450 = vunpack.c.h.b16 %v553
        %v1451 = vunpack.c.l.b16 %v554
        %v1452 = vunpack.c.h.b16 %v554
        %v1453 = vunpack.c.l.b16 %v555
        %v1454 = vunpack.c.h.b16 %v555
        %v1455 = vunpack.c.l.b16 %v556
        %v1456 = vunpack.c.h.b16 %v556
        %v1457 = vunpack.c.l.b16 %v557
        %v1458 = vunpack.c.h.b16 %v557
        %v1459 = vunpack.c.l.b16 %v558
        %v1460 = vunpack.c.h.b16 %v558
        %v1461 = vunpack.c.l.b16 %v559
        %v1462 = vunpack.c.h.b16 %v559
        %v1463 = vunpack.c.l.b16 %v560
        %v1464 = vunpack.c.h.b16 %v560
        %v1465 = vunpack.c.l.b16 %v561
        %v1466 = vunpack.c.h.b16 %v561
        %v1467 = vunpack.c.l.b16 %v562
        %v1468 = vunpack.c.h.b16 %v562
        %v1469 = vunpack.c.l.b16 %v563
        %v1470 = vunpack.c.h.b16 %v563
        %v1471 = vunpack.c.l.b16 %v564
        %v1472 = vunpack.c.h.b16 %v564
        %v1473 = vunpack.c.l.b16 %v565
        %v1474 = vunpack.c.h.b16 %v565
        %v1475 = vunpack.c.l.b16 %v566
        %v1476 = vunpack.c.h.b16 %v566
        %v1477 = vunpack.c.l.b16 %v567
        %v1478 = vunpack.c.h.b16 %v567
        %v1479 = vunpack.c.l.b16 %v568
        %v1480 = vunpack.c.h.b16 %v568
        %v1481 = vunpack.c.l.b16 %v569
        %v1482 = vunpack.c.h.b16 %v569
        %v1483 = vunpack.c.l.b16 %v570
        %v1484 = vunpack.c.h.b16 %v570
        %v1485 = vunpack.c.l.b16 %v571
        %v1486 = vunpack.c.h.b16 %v571
        %v1487 = vunpack.c.l.b16 %v572
        %v1488 = vunpack.c.h.b16 %v572
        %v1489 = vunpack.c.l.b16 %v573
        %v1490 = vunpack.c.h.b16 %v573
        %v1491 = vunpack.c.l.b16 %v574
        %v1492 = vunpack.c.h.b16 %v574
        %v1493 = vunpack.c.l.b16 %v575
        %v1494 = vunpack.c.h.b16 %v575
        %v1495 = vunpack.c.l.b16 %v576
        %v1496 = vunpack.c.h.b16 %v576
        %v1497 = vunpack.c.l.b16 %v577
        %v1498 = vunpack.c.h.b16 %v577
        %v1499 = vunpack.c.l.b16 %v578
        %v1500 = vunpack.c.h.b16 %v578
        %v1501 = vunpack.c.l.b16 %v579
        %v1502 = vunpack.c.h.b16 %v579
        %v1503 = vunpack.c.l.b16 %v580
        %v1504 = vunpack.c.h.b16 %v580
        %v1505 = vunpack.c.l.b16 %v581
        %v1506 = vunpack.c.h.b16 %v581
        %v1507 = vunpack.c.l.b16 %v582
        %v1508 = vunpack.c.h.b16 %v582
        %v1509 = vunpack.c.l.b16 %v583
        %v1510 = vunpack.c.h.b16 %v583
        %v1511 = vunpack.c.l.b16 %v584
        %v1512 = vunpack.c.h.b16 %v584
        %v1513 = vunpack.c.l.b16 %v585
        %v1514 = vunpack.c.h.b16 %v585
        %v1515 = vunpack.c.l.b16 %v586
        %v1516 = vunpack.c.h.b16 %v586
        %v1517 = vunpack.c.l.b16 %v587
        %v1518 = vunpack.c.h.b16 %v587
        %v1519 = vunpack.c.l.b16 %v588
        %v1520 = vunpack.c.h.b16 %v588
        %v1521 = vunpack.c.l.b16 %v589
        %v1522 = vunpack.c.h.b16 %v589
        %v1523 = vunpack.c.l.b16 %v590
        %v1524 = vunpack.c.h.b16 %v590
        %v1525 = vunpack.c.l.b16 %v591
        %v1526 = vunpack.c.h.b16 %v591
        %v1527 = vunpack.c.l.b16 %v592
        %v1528 = vunpack.c.h.b16 %v592
        %v1529 = vunpack.c.l.b16 %v593
        %v1530 = vunpack.c.h.b16 %v593
        %v1531 = vunpack.c.l.b16 %v594
        %v1532 = vunpack.c.h.b16 %v594
        %v1533 = vunpack.c.l.b16 %v595
        %v1534 = vunpack.c.h.b16 %v595
        %v1535 = vunpack.c.l.b16 %v596
        %v1536 = vunpack.c.h.b16 %v596
        %v1537 = vunpack.c.l.b16 %v597
        %v1538 = vunpack.c.h.b16 %v597
        %v1539 = vunpack.c.l.b16 %v598
        %v1540 = vunpack.c.h.b16 %v598
        %v1541 = vunpack.c.l.b16 %v599
        %v1542 = vunpack.c.h.b16 %v599
        %v1543 = vunpack.c.l.b16 %v600
        %v1544 = vunpack.c.h.b16 %v600
        %v1545 = vunpack.c.l.b16 %v601
        %v1546 = vunpack.c.h.b16 %v601
        %v1547 = vunpack.c.l.b16 %v602
        %v1548 = vunpack.c.h.b16 %v602
        %v1549 = vunpack.c.l.b16 %v603
        %v1550 = vunpack.c.h.b16 %v603
        %v1551 = vunpack.c.l.b16 %v604
        %v1552 = vunpack.c.h.b16 %v604
        %v1553 = vunpack.c.l.b16 %v605
        %v1554 = vunpack.c.h.b16 %v605
        %v1555 = vunpack.c.l.b16 %v606
        %v1556 = vunpack.c.h.b16 %v606
        %v1557 = vunpack.c.l.b16 %v607
        %v1558 = vunpack.c.h.b16 %v607
        %v1559 = vunpack.c.l.b16 %v608
        %v1560 = vunpack.c.h.b16 %v608
        %v1561 = vunpack.c.l.b16 %v609
        %v1562 = vunpack.c.h.b16 %v609
        %v1563 = vunpack.c.l.b16 %v610
        %v1564 = vunpack.c.h.b16 %v610
        %v1565 = vunpack.c.l.b16 %v611
        %v1566 = vunpack.c.h.b16 %v611
        %v1567 = vunpack.c.l.b16 %v612
        %v1568 = vunpack.c.h.b16 %v612
        %v1569 = vunpack.c.l.b16 %v613
        %v1570 = vunpack.c.h.b16 %v613
        %v1571 = vunpack.c.l.b16 %v614
        %v1572 = vunpack.c.h.b16 %v614
        %v1573 = vunpack.c.l.b16 %v615
        %v1574 = vunpack.c.h.b16 %v615
        %v1575 = vunpack.c.l.b16 %v616
        %v1576 = vunpack.c.h.b16 %v616
        %v1577 = vunpack.c.l.b16 %v617
        %v1578 = vunpack.c.h.b16 %v617
        %v1579 = vunpack.c.l.b16 %v618
        %v1580 = vunpack.c.h.b16 %v618
        %v1581 = vunpack.c.l.b16 %v619
        %v1582 = vunpack.c.h.b16 %v619
        %v1583 = vunpack.c.l.b16 %v620
        %v1584 = vunpack.c.h.b16 %v620
        %v1585 = vunpack.c.l.b16 %v621
        %v1586 = vunpack.c.h.b16 %v621
        %v1587 = vunpack.c.l.b16 %v622
        %v1588 = vunpack.c.h.b16 %v622
        %v1589 = vunpack.c.l.b16 %v623
        %v1590 = vunpack.c.h.b16 %v623
        %v1591 = vunpack.c.l.b16 %v624
        %v1592 = vunpack.c.h.b16 %v624
        %v1593 = vunpack.c.l.b16 %v625
        %v1594 = vunpack.c.h.b16 %v625
        %v1595 = vunpack.c.l.b16 %v626
        %v1596 = vunpack.c.h.b16 %v626
        %v1597 = vunpack.c.l.b16 %v627
        %v1598 = vunpack.c.h.b16 %v627
        %v1599 = vunpack.c.l.b16 %v628
        %v1600 = vunpack.c.h.b16 %v628
        %v1601 = vunpack.c.l.b16 %v629
        %v1602 = vunpack.c.h.b16 %v629
        %v1603 = vunpack.c.l.b16 %v630
        %v1604 = vunpack.c.h.b16 %v630
        %v1605 = vunpack.c.l.b16 %v631
        %v1606 = vunpack.c.h.b16 %v631
        %v1607 = vunpack.c.l.b16 %v632
        %v1608 = vunpack.c.h.b16 %v632
        %v1609 = vunpack.c.l.b16 %v633
        %v1610 = vunpack.c.h.b16 %v633
        %v1611 = vunpack.c.l.b16 %v634
        %v1612 = vunpack.c.h.b16 %v634
        %v1613 = vunpack.c.l.b16 %v635
        %v1614 = vunpack.c.h.b16 %v635
        %v1615 = vunpack.c.l.b16 %v636
        %v1616 = vunpack.c.h.b16 %v636
        %v1617 = vunpack.c.l.b16 %v637
        %v1618 = vunpack.c.h.b16 %v637
        %v1619 = vunpack.c.l.b16 %v638
        %v1620 = vunpack.c.h.b16 %v638
        %v1621 = vunpack.c.l.b16 %v639
        %v1622 = vunpack.c.h.b16 %v639
        %v1623 = vunpack.c.l.b16 %v640
        %v1624 = vunpack.c.h.b16 %v640
        %v1625 = vunpack.c.l.b16 %v641
        %v1626 = vunpack.c.h.b16 %v641
        %v1627 = vunpack.c.l.b16 %v642
        %v1628 = vunpack.c.h.b16 %v642
        %v1629 = vunpack.c.l.b16 %v643
        %v1630 = vunpack.c.h.b16 %v643
        %v1631 = vunpack.c.l.b16 %v644
        %v1632 = vunpack.c.h.b16 %v644
        %v1633 = vunpack.c.l.b16 %v645
        %v1634 = vunpack.c.h.b16 %v645
        %v1635 = vunpack.c.l.b16 %v646
        %v1636 = vunpack.c.h.b16 %v646
        %v1637 = vunpack.c.l.b16 %v647
        %v1638 = vunpack.c.h.b16 %v647
        %v1639 = vunpack.c.l.b16 %v648
        %v1640 = vunpack.c.h.b16 %v648
        %v1641 = vunpack.c.l.b16 %v649
        %v1642 = vunpack.c.h.b16 %v649
        %v1643 = vunpack.c.l.b16 %v650
        %v1644 = vunpack.c.h.b16 %v650
        %v1645 = vunpack.c.l.b16 %v651
        %v1646 = vunpack.c.h.b16 %v651
        %v1647 = vunpack.c.l.b16 %v652
        %v1648 = vunpack.c.h.b16 %v652
        %v1649 = vunpack.c.l.b16 %v653
        %v1650 = vunpack.c.h.b16 %v653
        %v1651 = vunpack.c.l.b16 %v654
        %v1652 = vunpack.c.h.b16 %v654
        %v1653 = vunpack.c.l.b16 %v655
        %v1654 = vunpack.c.h.b16 %v655
        %v1655 = vunpack.c.l.b16 %v656
        %v1656 = vunpack.c.h.b16 %v656
        %v1657 = vunpack.c.l.b16 %v657
        %v1658 = vunpack.c.h.b16 %v657
        %v1659 = vunpack.c.l.b16 %v658
        %v1660 = vunpack.c.h.b16 %v658
        %v1661 = vunpack.c.l.b16 %v659
        %v1662 = vunpack.c.h.b16 %v659
        %v1663 = vunpack.c.l.b16 %v660
        %v1664 = vunpack.c.h.b16 %v660
        %v1665 = vunpack.c.l.b16 %v661
        %v1666 = vunpack.c.h.b16 %v661
        %v1667 = vunpack.c.l.b16 %v662
        %v1668 = vunpack.c.h.b16 %v662
        %v1669 = vunpack.c.l.b16 %v663
        %v1670 = vunpack.c.h.b16 %v663
        %v1671 = vunpack.c.l.b16 %v664
        %v1672 = vunpack.c.h.b16 %v664
        %v1673 = vunpack.c.l.b16 %v665
        %v1674 = vunpack.c.h.b16 %v665
        %v1675 = vunpack.c.l.b16 %v666
        %v1676 = vunpack.c.h.b16 %v666
        %v1677 = vunpack.c.l.b16 %v667
        %v1678 = vunpack.c.h.b16 %v667
        %v1679 = vunpack.c.l.b16 %v668
        %v1680 = vunpack.c.h.b16 %v668
        %v1681 = vunpack.c.l.b16 %v669
        %v1682 = vunpack.c.h.b16 %v669
        %v1683 = vunpack.c.l.b16 %v670
        %v1684 = vunpack.c.h.b16 %v670
        %v1685 = vunpack.c.l.b16 %v671
        %v1686 = vunpack.c.h.b16 %v671
        %v1687 = vunpack.c.l.b16 %v672
        %v1688 = vunpack.c.h.b16 %v672
        %v1689 = vunpack.c.l.b16 %v673
        %v1690 = vunpack.c.h.b16 %v673
        %v1691 = vunpack.c.l.b16 %v674
        %v1692 = vunpack.c.h.b16 %v674
        %v1693 = vunpack.c.l.b16 %v675
        %v1694 = vunpack.c.h.b16 %v675
        %v1695 = vunpack.c.l.b16 %v676
        %v1696 = vunpack.c.h.b16 %v676
        %v1697 = vunpack.c.l.b16 %v677
        %v1698 = vunpack.c.h.b16 %v677
        %v1699 = vunpack.c.l.b16 %v678
        %v1700 = vunpack.c.h.b16 %v678
        %v1701 = vunpack.c.l.b16 %v679
        %v1702 = vunpack.c.h.b16 %v679
        %v1703 = vunpack.c.l.b16 %v680
        %v1704 = vunpack.c.h.b16 %v680
        %v1705 = vunpack.c.l.b16 %v681
        %v1706 = vunpack.c.h.b16 %v681
        %v1707 = vunpack.c.l.b16 %v682
        %v1708 = vunpack.c.h.b16 %v682
        %v1709 = vunpack.c.l.b16 %v683
        %v1710 = vunpack.c.h.b16 %v683
        %v1711 = vunpack.c.l.b16 %v684
        %v1712 = vunpack.c.h.b16 %v684
        %v1713 = vunpack.c.l.b16 %v685
        %v1714 = vunpack.c.h.b16 %v685
        %v1715 = vunpack.c.l.b16 %v686
        %v1716 = vunpack.c.h.b16 %v686
        %v1717 = vunpack.c.l.b16 %v687
        %v1718 = vunpack.c.h.b16 %v687
        %v1719 = vunpack.c.l.b16 %v688
        %v1720 = vunpack.c.h.b16 %v688
        %v1721 = vunpack.c.l.b16 %v689
        %v1722 = vunpack.c.h.b16 %v689
        %v1723 = vunpack.c.l.b16 %v690
        %v1724 = vunpack.c.h.b16 %v690
        %v1725 = vunpack.c.l.b16 %v691
        %v1726 = vunpack.c.h.b16 %v691
        %v1727 = vunpack.c.l.b16 %v692
        %v1728 = vunpack.c.h.b16 %v692
        %v1729 = vunpack.c.l.b16 %v693
        %v1730 = vunpack.c.h.b16 %v693
        %v1731 = vunpack.c.l.b16 %v694
        %v1732 = vunpack.c.h.b16 %v694
        %v1733 = vunpack.c.l.b16 %v695
        %v1734 = vunpack.c.h.b16 %v695
        %v1735 = vunpack.c.l.b16 %v696
        %v1736 = vunpack.c.h.b16 %v696
        %v1737 = vunpack.c.l.b16 %v697
        %v1738 = vunpack.c.h.b16 %v697
        %v1739 = vunpack.c.l.b16 %v698
        %v1740 = vunpack.c.h.b16 %v698
        %v1741 = vunpack.c.l.b16 %v699
        %v1742 = vunpack.c.h.b16 %v699
        %v1743 = vunpack.c.l.b16 %v700
        %v1744 = vunpack.c.h.b16 %v700
        %v1745 = vunpack.c.l.b16 %v701
        %v1746 = vunpack.c.h.b16 %v701
        %v1747 = vunpack.c.l.b16 %v702
        %v1748 = vunpack.c.h.b16 %v702
        %v1749 = vunpack.c.l.b16 %v703
        %v1750 = vunpack.c.h.b16 %v703
        %v1751 = vunpack.c.l.b16 %v704
        %v1752 = vunpack.c.h.b16 %v704
        %v1753 = vunpack.c.l.b16 %v705
        %v1754 = vunpack.c.h.b16 %v705
        %v1755 = vunpack.c.l.b16 %v706
        %v1756 = vunpack.c.h.b16 %v706
        %v1757 = vunpack.c.l.b16 %v707
        %v1758 = vunpack.c.h.b16 %v707
        %v1759 = vunpack.c.l.b16 %v708
        %v1760 = vunpack.c.h.b16 %v708
        %v1761 = vunpack.c.l.b16 %v709
        %v1762 = vunpack.c.h.b16 %v709
        %v1763 = vunpack.c.l.b16 %v710
        %v1764 = vunpack.c.h.b16 %v710
        %v1765 = vunpack.c.l.b16 %v711
        %v1766 = vunpack.c.h.b16 %v711
        %v1767 = vunpack.c.l.b16 %v712
        %v1768 = vunpack.c.h.b16 %v712
        %v1769 = vunpack.c.l.b16 %v713
        %v1770 = vunpack.c.h.b16 %v713
        %v1771 = vunpack.c.l.b16 %v714
        %v1772 = vunpack.c.h.b16 %v714
        %v1773 = vunpack.c.l.b16 %v715
        %v1774 = vunpack.c.h.b16 %v715
        %v1775 = vunpack.c.l.b16 %v716
        %v1776 = vunpack.c.h.b16 %v716
        %v1777 = vunpack.c.l.b16 %v717
        %v1778 = vunpack.c.h.b16 %v717
        %v1779 = vunpack.c.l.b16 %v718
        %v1780 = vunpack.c.h.b16 %v718
        %v1781 = vunpack.c.l.b16 %v719
        %v1782 = vunpack.c.h.b16 %v719
        %v1783 = vunpack.c.l.b16 %v720
        %v1784 = vunpack.c.h.b16 %v720
        %v1785 = vunpack.c.l.b16 %v721
        %v1786 = vunpack.c.h.b16 %v721
        %v1787 = vunpack.c.l.b16 %v722
        %v1788 = vunpack.c.h.b16 %v722
        %v1789 = vunpack.c.l.b16 %v723
        %v1790 = vunpack.c.h.b16 %v723
        %v1791 = vunpack.c.l.b16 %v724
        %v1792 = vunpack.c.h.b16 %v724
        %v1793 = vunpack.c.l.b16 %v725
        %v1794 = vunpack.c.h.b16 %v725
        %v1795 = vunpack.c.l.b16 %v726
        %v1796 = vunpack.c.h.b16 %v726
        %v1797 = vunpack.c.l.b16 %v727
        %v1798 = vunpack.c.h.b16 %v727
        %v1799 = vunpack.c.l.b16 %v728
        %v1800 = vunpack.c.h.b16 %v728
        %v1801 = vunpack.c.l.b16 %v729
        %v1802 = vunpack.c.h.b16 %v729
        %v1803 = vunpack.c.l.b16 %v730
        %v1804 = vunpack.c.h.b16 %v730
        %v1805 = vunpack.c.l.b16 %v731
        %v1806 = vunpack.c.h.b16 %v731
        %v1807 = vunpack.c.l.b16 %v732
        %v1808 = vunpack.c.h.b16 %v732
        %v1809 = vunpack.c.l.b16 %v733
        %v1810 = vunpack.c.h.b16 %v733
        %v1811 = vunpack.c.l.b16 %v734
        %v1812 = vunpack.c.h.b16 %v734
        %v1813 = vunpack.c.l.b16 %v735
        %v1814 = vunpack.c.h.b16 %v735
        %v1815 = vunpack.c.l.b16 %v736
        %v1816 = vunpack.c.h.b16 %v736
        %v1817 = vunpack.c.l.b16 %v737
        %v1818 = vunpack.c.h.b16 %v737
        %v1819 = vunpack.c.l.b16 %v738
        %v1820 = vunpack.c.h.b16 %v738
        %v1821 = vunpack.c.l.b16 %v739
        %v1822 = vunpack.c.h.b16 %v739
        %v1823 = vunpack.c.l.b16 %v740
        %v1824 = vunpack.c.h.b16 %v740
        %v1825 = vunpack.c.l.b16 %v741
        %v1826 = vunpack.c.h.b16 %v741
        %v1827 = vunpack.c.l.b16 %v742
        %v1828 = vunpack.c.h.b16 %v742
        %v1829 = vunpack.c.l.b16 %v743
        %v1830 = vunpack.c.h.b16 %v743
        %v1831 = vunpack.c.l.b16 %v744
        %v1832 = vunpack.c.h.b16 %v744
        %v1833 = vunpack.c.l.b16 %v745
        %v1834 = vunpack.c.h.b16 %v745
        %v1835 = vunpack.c.l.b16 %v746
        %v1836 = vunpack.c.h.b16 %v746
        %v1837 = vunpack.c.l.b16 %v747
        %v1838 = vunpack.c.h.b16 %v747
        %v1839 = vunpack.c.l.b16 %v748
        %v1840 = vunpack.c.h.b16 %v748
        %v1841 = vunpack.c.l.b16 %v749
        %v1842 = vunpack.c.h.b16 %v749
        %v1843 = vunpack.c.l.b16 %v750
        %v1844 = vunpack.c.h.b16 %v750
        %v1845 = vunpack.c.l.b16 %v751
        %v1846 = vunpack.c.h.b16 %v751
        %v1847 = vunpack.c.l.b16 %v752
        %v1848 = vunpack.c.h.b16 %v752
        %v1849 = vunpack.c.l.b16 %v753
        %v1850 = vunpack.c.h.b16 %v753
        %v1851 = vunpack.c.l.b16 %v754
        %v1852 = vunpack.c.h.b16 %v754
        %v1853 = vunpack.c.l.b16 %v755
        %v1854 = vunpack.c.h.b16 %v755
        %v1855 = vunpack.c.l.b16 %v756
        %v1856 = vunpack.c.h.b16 %v756
        %v1857 = vunpack.c.l.b16 %v757
        %v1858 = vunpack.c.h.b16 %v757
        %v1859 = vunpack.c.l.b16 %v758
        %v1860 = vunpack.c.h.b16 %v758
        %v1861 = vunpack.c.l.b16 %v759
        %v1862 = vunpack.c.h.b16 %v759
        %v1863 = vunpack.c.l.b16 %v760
        %v1864 = vunpack.c.h.b16 %v760
        %v1865 = vunpack.c.l.b16 %v761
        %v1866 = vunpack.c.h.b16 %v761
        %v1867 = vunpack.c.l.b16 %v762
        %v1868 = vunpack.c.h.b16 %v762
        %v1869 = vunpack.c.l.b16 %v763
        %v1870 = vunpack.c.h.b16 %v763
        %v1871 = vunpack.c.l.b16 %v764
        %v1872 = vunpack.c.h.b16 %v764
        %v1873 = vunpack.c.l.b16 %v765
        %v1874 = vunpack.c.h.b16 %v765
        %v1875 = vunpack.c.l.b16 %v766
        %v1876 = vunpack.c.h.b16 %v766
        %v1877 = vunpack.c.l.b16 %v767
        %v1878 = vunpack.c.h.b16 %v767
        %v1879 = vunpack.c.l.b16 %v768
        %v1880 = vunpack.c.h.b16 %v768
        %v1881 = vunpack.c.l.b16 %v769
        %v1882 = vunpack.c.h.b16 %v769
        %v1883 = vunpack.c.l.b16 %v770
        %v1884 = vunpack.c.h.b16 %v770
        %v1885 = vunpack.c.l.b16 %v771
        %v1886 = vunpack.c.h.b16 %v771
        %v1887 = vunpack.c.l.b16 %v772
        %v1888 = vunpack.c.h.b16 %v772
        %v1889 = vunpack.c.l.b16 %v773
        %v1890 = vunpack.c.h.b16 %v773
        %v1891 = vunpack.c.l.b16 %v774
        %v1892 = vunpack.c.h.b16 %v774
        %v1893 = vunpack.c.l.b16 %v775
        %v1894 = vunpack.c.h.b16 %v775
        %v1895 = vunpack.c.l.b16 %v776
        %v1896 = vunpack.c.h.b16 %v776
        %v1897 = vunpack.c.l.b16 %v777
        %v1898 = vunpack.c.h.b16 %v777
        %v1899 = vunpack.c.l.b16 %v778
        %v1900 = vunpack.c.h.b16 %v778
        %v1901 = vunpack.c.l.b16 %v779
        %v1902 = vunpack.c.h.b16 %v779
        %v1903 = vunpack.c.l.b16 %v780
        %v1904 = vunpack.c.h.b16 %v780
        %v1905 = vunpack.c.l.b16 %v781
        %v1906 = vunpack.c.h.b16 %v781
        %v1907 = vunpack.c.l.b16 %v782
        %v1908 = vunpack.c.h.b16 %v782
        %v1909 = vunpack.c.l.b16 %v783
        %v1910 = vunpack.c.h.b16 %v783
        %v1911 = vunpack.c.l.b16 %v784
        %v1912 = vunpack.c.h.b16 %v784
        %v1913 = vunpack.c.l.b16 %v785
        %v1914 = vunpack.c.h.b16 %v785
        %v1915 = vunpack.c.l.b16 %v786
        %v1916 = vunpack.c.h.b16 %v786
        %v1917 = vunpack.c.l.b16 %v787
        %v1918 = vunpack.c.h.b16 %v787
        %v1919 = vunpack.c.l.b16 %v788
        %v1920 = vunpack.c.h.b16 %v788
        %v1921 = vunpack.c.l.b16 %v789
        %v1922 = vunpack.c.h.b16 %v789
        %v1923 = vunpack.c.l.b16 %v790
        %v1924 = vunpack.c.h.b16 %v790
        %v1925 = vunpack.c.l.b16 %v791
        %v1926 = vunpack.c.h.b16 %v791
        %v1927 = vunpack.c.l.b16 %v792
        %v1928 = vunpack.c.h.b16 %v792
        %v1929 = vunpack.c.l.b16 %v793
        %v1930 = vunpack.c.h.b16 %v793
        %v1931 = vunpack.c.l.b16 %v794
        %v1932 = vunpack.c.h.b16 %v794
        %v1933 = vunpack.c.l.b16 %v795
        %v1934 = vunpack.c.h.b16 %v795
        %v1935 = vunpack.c.l.b16 %v796
        %v1936 = vunpack.c.h.b16 %v796
        %v1937 = vunpack.c.l.b16 %v797
        %v1938 = vunpack.c.h.b16 %v797
        %v1939 = vunpack.c.l.b16 %v798
        %v1940 = vunpack.c.h.b16 %v798
        %v1941 = vunpack.c.l.b16 %v799
        %v1942 = vunpack.c.h.b16 %v799
        %v1943 = vunpack.c.l.b16 %v800
        %v1944 = vunpack.c.h.b16 %v800
        %v1945 = vunpack.c.l.b16 %v801
        %v1946 = vunpack.c.h.b16 %v801
        %v1947 = vunpack.c.l.b16 %v802
        %v1948 = vunpack.c.h.b16 %v802
        %v1949 = vunpack.c.l.b16 %v803
        %v1950 = vunpack.c.h.b16 %v803
        %v1951 = vunpack.c.l.b16 %v804
        %v1952 = vunpack.c.h.b16 %v804
        %v1953 = vunpack.c.l.b16 %v805
        %v1954 = vunpack.c.h.b16 %v805
        %v1955 = vunpack.c.l.b16 %v806
        %v1956 = vunpack.c.h.b16 %v806
        %v1957 = vunpack.c.l.b16 %v807
        %v1958 = vunpack.c.h.b16 %v807
        %v1959 = vunpack.c.l.b16 %v808
        %v1960 = vunpack.c.h.b16 %v808
        %v1961 = vunpack.c.l.b16 %v809
        %v1962 = vunpack.c.h.b16 %v809
        %v1963 = vunpack.c.l.b16 %v810
        %v1964 = vunpack.c.h.b16 %v810
        %v1965 = vunpack.c.l.b16 %v811
        %v1966 = vunpack.c.h.b16 %v811
        %v1967 = vunpack.c.l.b16 %v812
        %v1968 = vunpack.c.h.b16 %v812
        %v1969 = vunpack.c.l.b16 %v813
        %v1970 = vunpack.c.h.b16 %v813
        %v1971 = vunpack.c.l.b16 %v814
        %v1972 = vunpack.c.h.b16 %v814
        %v1973 = vunpack.c.l.b16 %v815
        %v1974 = vunpack.c.h.b16 %v815
        %v1975 = vunpack.c.l.b16 %v816
        %v1976 = vunpack.c.h.b16 %v816
        %v1977 = vunpack.c.l.b16 %v817
        %v1978 = vunpack.c.h.b16 %v817
        %v1979 = vunpack.c.l.b16 %v818
        %v1980 = vunpack.c.h.b16 %v818
        %v1981 = vunpack.c.l.b16 %v819
        %v1982 = vunpack.c.h.b16 %v819
        %v1983 = vunpack.c.l.b16 %v820
        %v1984 = vunpack.c.h.b16 %v820
        %v1985 = vunpack.c.l.b16 %v821
        %v1986 = vunpack.c.h.b16 %v821
        %v1987 = vunpack.c.l.b16 %v822
        %v1988 = vunpack.c.h.b16 %v822
        %v1989 = vunpack.c.l.b16 %v823
        %v1990 = vunpack.c.h.b16 %v823
        %v1991 = vunpack.c.l.b16 %v824
        %v1992 = vunpack.c.h.b16 %v824
        %v1993 = vunpack.c.l.b16 %v825
        %v1994 = vunpack.c.h.b16 %v825
        %v1995 = vunpack.c.l.b16 %v826
        %v1996 = vunpack.c.h.b16 %v826
        %v1997 = vunpack.c.l.b16 %v827
        %v1998 = vunpack.c.h.b16 %v827
        %v1999 = vunpack.c.l.b16 %v828
        %v2000 = vunpack.c.h.b16 %v828
        %v2001 = vunpack.c.l.b16 %v829
        %v2002 = vunpack.c.h.b16 %v829
        %v2003 = vunpack.c.l.b16 %v830
        %v2004 = vunpack.c.h.b16 %v830
        %v2005 = vunpack.c.l.b16 %v831
        %v2006 = vunpack.c.h.b16 %v831
        %v2007 = vunpack.c.l.b16 %v832
        %v2008 = vunpack.c.h.b16 %v832
        %v2009 = vunpack.c.l.b16 %v833
        %v2010 = vunpack.c.h.b16 %v833
        %v2011 = vunpack.c.l.b16 %v834
        %v2012 = vunpack.c.h.b16 %v834
        %v2013 = vunpack.c.l.b16 %v835
        %v2014 = vunpack.c.h.b16 %v835
        %v2015 = vunpack.c.l.b16 %v836
        %v2016 = vunpack.c.h.b16 %v836
        %v2017 = vpack.c.b16 %v1255, %v1249
        %v2018 = vpack.c.b16 %v1256, %v1250
        %v2019 = vpack.c.b16 %v1257, %v1251
        %v2020 = vpack.c.b16 %v1258, %v1252
        %v2021 = vpack.c.b16 %v1259, %v1253
        %v2022 = vpack.c.b16 %v1260, %v1254
        %v2023 = vpack.c.b16 %v1267, %v1261
        %v2024 = vpack.c.b16 %v1268, %v1262
        %v2025 = vpack.c.b16 %v1269, %v1263
        %v2026 = vpack.c.b16 %v1270, %v1264
        %v2027 = vpack.c.b16 %v1271, %v1265
        %v2028 = vpack.c.b16 %v1272, %v1266
        %v2029 = vpack.c.b16 %v1279, %v1273
        %v2030 = vpack.c.b16 %v1280, %v1274
        %v2031 = vpack.c.b16 %v1281, %v1275
        %v2032 = vpack.c.b16 %v1282, %v1276
        %v2033 = vpack.c.b16 %v1283, %v1277
        %v2034 = vpack.c.b16 %v1284, %v1278
        %v2035 = vpack.c.b16 %v1291, %v1285
        %v2036 = vpack.c.b16 %v1292, %v1286
        %v2037 = vpack.c.b16 %v1293, %v1287
        %v2038 = vpack.c.b16 %v1294, %v1288
        %v2039 = vpack.c.b16 %v1295, %v1289
        %v2040 = vpack.c.b16 %v1296, %v1290
        %v2041 = vpack.c.b16 %v1303, %v1297
        %v2042 = vpack.c.b16 %v1304, %v1298
        %v2043 = vpack.c.b16 %v1305, %v1299
        %v2044 = vpack.c.b16 %v1306, %v1300
        %v2045 = vpack.c.b16 %v1307, %v1301
        %v2046 = vpack.c.b16 %v1308, %v1302
        %v2047 = vpack.c.b16 %v1315, %v1309
        %v2048 = vpack.c.b16 %v1316, %v1310
        %v2049 = vpack.c.b16 %v1317, %v1311
        %v2050 = vpack.c.b16 %v1318, %v1312
        %v2051 = vpack.c.b16 %v1319, %v1313
        %v2052 = vpack.c.b16 %v1320, %v1314
        %v2053 = vpack.c.b16 %v1327, %v1321
        %v2054 = vpack.c.b16 %v1328, %v1322
        %v2055 = vpack.c.b16 %v1329, %v1323
        %v2056 = vpack.c.b16 %v1330, %v1324
        %v2057 = vpack.c.b16 %v1331, %v1325
        %v2058 = vpack.c.b16 %v1332, %v1326
        %v2059 = vpack.c.b16 %v1339, %v1333
        %v2060 = vpack.c.b16 %v1340, %v1334
        %v2061 = vpack.c.b16 %v1341, %v1335
        %v2062 = vpack.c.b16 %v1342, %v1336
        %v2063 = vpack.c.b16 %v1343, %v1337
        %v2064 = vpack.c.b16 %v1344, %v1338
        %v2065 = vpack.c.b16 %v1351, %v1345
        %v2066 = vpack.c.b16 %v1352, %v1346
        %v2067 = vpack.c.b16 %v1353, %v1347
        %v2068 = vpack.c.b16 %v1354, %v1348
        %v2069 = vpack.c.b16 %v1355, %v1349
        %v2070 = vpack.c.b16 %v1356, %v1350
        %v2071 = vpack.c.b16 %v1363, %v1357
        %v2072 = vpack.c.b16 %v1364, %v1358
        %v2073 = vpack.c.b16 %v1365, %v1359
        %v2074 = vpack.c.b16 %v1366, %v1360
        %v2075 = vpack.c.b16 %v1367, %v1361
        %v2076 = vpack.c.b16 %v1368, %v1362
        %v2077 = vpack.c.b16 %v1375, %v1369
        %v2078 = vpack.c.b16 %v1376, %v1370
        %v2079 = vpack.c.b16 %v1377, %v1371
        %v2080 = vpack.c.b16 %v1378, %v1372
        %v2081 = vpack.c.b16 %v1379, %v1373
        %v2082 = vpack.c.b16 %v1380, %v1374
        %v2083 = vpack.c.b16 %v1387, %v1381
        %v2084 = vpack.c.b16 %v1388, %v1382
        %v2085 = vpack.c.b16 %v1389, %v1383
        %v2086 = vpack.c.b16 %v1390, %v1384
        %v2087 = vpack.c.b16 %v1391, %v1385
        %v2088 = vpack.c.b16 %v1392, %v1386
        %v2089 = vpack.c.b16 %v1399, %v1393
        %v2090 = vpack.c.b16 %v1400, %v1394
        %v2091 = vpack.c.b16 %v1401, %v1395
        %v2092 = vpack.c.b16 %v1402, %v1396
        %v2093 = vpack.c.b16 %v1403, %v1397
        %v2094 = vpack.c.b16 %v1404, %v1398
        %v2095 = vpack.c.b16 %v1411, %v1405
        %v2096 = vpack.c.b16 %v1412, %v1406
        %v2097 = vpack.c.b16 %v1413, %v1407
        %v2098 = vpack.c.b16 %v1414, %v1408
        %v2099 = vpack.c.b16 %v1415, %v1409
        %v2100 = vpack.c.b16 %v1416, %v1410
        %v2101 = vpack.c.b16 %v1423, %v1417
        %v2102 = vpack.c.b16 %v1424, %v1418
        %v2103 = vpack.c.b16 %v1425, %v1419
        %v2104 = vpack.c.b16 %v1426, %v1420
        %v2105 = vpack.c.b16 %v1427, %v1421
        %v2106 = vpack.c.b16 %v1428, %v1422
        %v2107 = vpack.c.b16 %v1435, %v1429
        %v2108 = vpack.c.b16 %v1436, %v1430
        %v2109 = vpack.c.b16 %v1437, %v1431
        %v2110 = vpack.c.b16 %v1438, %v1432
        %v2111 = vpack.c.b16 %v1439, %v1433
        %v2112 = vpack.c.b16 %v1440, %v1434
        %v2113 = vpack.c.b16 %v1447, %v1441
        %v2114 = vpack.c.b16 %v1448, %v1442
        %v2115 = vpack.c.b16 %v1449, %v1443
        %v2116 = vpack.c.b16 %v1450, %v1444
        %v2117 = vpack.c.b16 %v1451, %v1445
        %v2118 = vpack.c.b16 %v1452, %v1446
        %v2119 = vpack.c.b16 %v1459, %v1453
        %v2120 = vpack.c.b16 %v1460, %v1454
        %v2121 = vpack.c.b16 %v1461, %v1455
        %v2122 = vpack.c.b16 %v1462, %v1456
        %v2123 = vpack.c.b16 %v1463, %v1457
        %v2124 = vpack.c.b16 %v1464, %v1458
        %v2125 = vpack.c.b16 %v1471, %v1465
        %v2126 = vpack.c.b16 %v1472, %v1466
        %v2127 = vpack.c.b16 %v1473, %v1467
        %v2128 = vpack.c.b16 %v1474, %v1468
        %v2129 = vpack.c.b16 %v1475, %v1469
        %v2130 = vpack.c.b16 %v1476, %v1470
        %v2131 = vpack.c.b16 %v1483, %v1477
        %v2132 = vpack.c.b16 %v1484, %v1478
        %v2133 = vpack.c.b16 %v1485, %v1479
        %v2134 = vpack.c.b16 %v1486, %v1480
        %v2135 = vpack.c.b16 %v1487, %v1481
        %v2136 = vpack.c.b16 %v1488, %v1482
        %v2137 = vpack.c.b16 %v1495, %v1489
        %v2138 = vpack.c.b16 %v1496, %v1490
        %v2139 = vpack.c.b16 %v1497, %v1491
        %v2140 = vpack.c.b16 %v1498, %v1492
        %v2141 = vpack.c.b16 %v1499, %v1493
        %v2142 = vpack.c.b16 %v1500, %v1494
        %v2143 = vpack.c.b16 %v1507, %v1501
        %v2144 = vpack.c.b16 %v1508, %v1502
        %v2145 = vpack.c.b16 %v1509, %v1503
        %v2146 = vpack.c.b16 %v1510, %v1504
        %v2147 = vpack.c.b16 %v1511, %v1505
        %v2148 = vpack.c.b16 %v1512, %v1506
        %v2149 = vpack.c.b16 %v1519, %v1513
        %v2150 = vpack.c.b16 %v1520, %v1514
        %v2151 = vpack.c.b16 %v1521, %v1515
        %v2152 = vpack.c.b16 %v1522, %v1516
        %v2153 = vpack.c.b16 %v1523, %v1517
        %v2154 = vpack.c.b16 %v1524, %v1518
        %v2155 = vpack.c.b16 %v1531, %v1525
        %v2156 = vpack.c.b16 %v1532, %v1526
        %v2157 = vpack.c.b16 %v1533, %v1527
        %v2158 = vpack.c.b16 %v1534, %v1528
        %v2159 = vpack.c.b16 %v1535, %v1529
        %v2160 = vpack.c.b16 %v1536, %v1530
        %v2161 = vpack.c.b16 %v1543, %v1537
        %v2162 = vpack.c.b16 %v1544, %v1538
        %v2163 = vpack.c.b16 %v1545, %v1539
        %v2164 = vpack.c.b16 %v1546, %v1540
        %v2165 = vpack.c.b16 %v1547, %v1541
        %v2166 = vpack.c.b16 %v1548, %v1542
        %v2167 = vpack.c.b16 %v1555, %v1549
        %v2168 = vpack.c.b16 %v1556, %v1550
        %v2169 = vpack.c.b16 %v1557, %v1551
        %v2170 = vpack.c.b16 %v1558, %v1552
        %v2171 = vpack.c.b16 %v1559, %v1553
        %v2172 = vpack.c.b16 %v1560, %v1554
        %v2173 = vpack.c.b16 %v1567, %v1561
        %v2174 = vpack.c.b16 %v1568, %v1562
        %v2175 = vpack.c.b16 %v1569, %v1563
        %v2176 = vpack.c.b16 %v1570, %v1564
        %v2177 = vpack.c.b16 %v1571, %v1565
        %v2178 = vpack.c.b16 %v1572, %v1566
        %v2179 = vpack.c.b16 %v1579, %v1573
        %v2180 = vpack.c.b16 %v1580, %v1574
        %v2181 = vpack.c.b16 %v1581, %v1575
        %v2182 = vpack.c.b16 %v1582, %v1576
        %v2183 = vpack.c.b16 %v1583, %v1577
        %v2184 = vpack.c.b16 %v1584, %v1578
        %v2185 = vpack.c.b16 %v1591, %v1585
        %v2186 = vpack.c.b16 %v1592, %v1586
        %v2187 = vpack.c.b16 %v1593, %v1587
        %v2188 = vpack.c.b16 %v1594, %v1588
        %v2189 = vpack.c.b16 %v1595, %v1589
        %v2190 = vpack.c.b16 %v1596, %v1590
        %v2191 = vpack.c.b16 %v1603, %v1597
        %v2192 = vpack.c.b16 %v1604, %v1598
        %v2193 = vpack.c.b16 %v1605, %v1599
        %v2194 = vpack.c.b16 %v1606, %v1600
        %v2195 = vpack.c.b16 %v1607, %v1601
        %v2196 = vpack.c.b16 %v1608, %v1602
        %v2197 = vpack.c.b16 %v1615, %v1609
        %v2198 = vpack.c.b16 %v1616, %v1610
        %v2199 = vpack.c.b16 %v1617, %v1611
        %v2200 = vpack.c.b16 %v1618, %v1612
        %v2201 = vpack.c.b16 %v1619, %v1613
        %v2202 = vpack.c.b16 %v1620, %v1614
        %v2203 = vpack.c.b16 %v1627, %v1621
        %v2204 = vpack.c.b16 %v1628, %v1622
        %v2205 = vpack.c.b16 %v1629, %v1623
        %v2206 = vpack.c.b16 %v1630, %v1624
        %v2207 = vpack.c.b16 %v1631, %v1625
        %v2208 = vpack.c.b16 %v1632, %v1626
        %v2209 = vpack.c.b16 %v1639, %v1633
        %v2210 = vpack.c.b16 %v1640, %v1634
        %v2211 = vpack.c.b16 %v1641, %v1635
        %v2212 = vpack.c.b16 %v1642, %v1636
        %v2213 = vpack.c.b16 %v1643, %v1637
        %v2214 = vpack.c.b16 %v1644, %v1638
        %v2215 = vpack.c.b16 %v1651, %v1645
        %v2216 = vpack.c.b16 %v1652, %v1646
        %v2217 = vpack.c.b16 %v1653, %v1647
        %v2218 = vpack.c.b16 %v1654, %v1648
        %v2219 = vpack.c.b16 %v1655, %v1649
        %v2220 = vpack.c.b16 %v1656, %v1650
        %v2221 = vpack.c.b16 %v1663, %v1657
        %v2222 = vpack.c.b16 %v1664, %v1658
        %v2223 = vpack.c.b16 %v1665, %v1659
        %v2224 = vpack.c.b16 %v1666, %v1660
        %v2225 = vpack.c.b16 %v1667, %v1661
        %v2226 = vpack.c.b16 %v1668, %v1662
        %v2227 = vpack.c.b16 %v1675, %v1669
        %v2228 = vpack.c.b16 %v1676, %v1670
        %v2229 = vpack.c.b16 %v1677, %v1671
        %v2230 = vpack.c.b16 %v1678, %v1672
        %v2231 = vpack.c.b16 %v1679, %v1673
        %v2232 = vpack.c.b16 %v1680, %v1674
        %v2233 = vpack.c.b16 %v1687, %v1681
        %v2234 = vpack.c.b16 %v1688, %v1682
        %v2235 = vpack.c.b16 %v1689, %v1683
        %v2236 = vpack.c.b16 %v1690, %v1684
        %v2237 = vpack.c.b16 %v1691, %v1685
        %v2238 = vpack.c.b16 %v1692, %v1686
        %v2239 = vpack.c.b16 %v1699, %v1693
        %v2240 = vpack.c.b16 %v1700, %v1694
        %v2241 = vpack.c.b16 %v1701, %v1695
        %v2242 = vpack.c.b16 %v1702, %v1696
        %v2243 = vpack.c.b16 %v1703, %v1697
        %v2244 = vpack.c.b16 %v1704, %v1698
        %v2245 = vpack.c.b16 %v1711, %v1705
        %v2246 = vpack.c.b16 %v1712, %v1706
        %v2247 = vpack.c.b16 %v1713, %v1707
        %v2248 = vpack.c.b16 %v1714, %v1708
        %v2249 = vpack.c.b16 %v1715, %v1709
        %v2250 = vpack.c.b16 %v1716, %v1710
        %v2251 = vpack.c.b16 %v1723, %v1717
        %v2252 = vpack.c.b16 %v1724, %v1718
        %v2253 = vpack.c.b16 %v1725, %v1719
        %v2254 = vpack.c.b16 %v1726, %v1720
        %v2255 = vpack.c.b16 %v1727, %v1721
        %v2256 = vpack.c.b16 %v1728, %v1722
        %v2257 = vpack.c.b16 %v1735, %v1729
        %v2258 = vpack.c.b16 %v1736, %v1730
        %v2259 = vpack.c.b16 %v1737, %v1731
        %v2260 = vpack.c.b16 %v1738, %v1732
        %v2261 = vpack.c.b16 %v1739, %v1733
        %v2262 = vpack.c.b16 %v1740, %v1734
        %v2263 = vpack.c.b16 %v1747, %v1741
        %v2264 = vpack.c.b16 %v1748, %v1742
        %v2265 = vpack.c.b16 %v1749, %v1743
        %v2266 = vpack.c.b16 %v1750, %v1744
        %v2267 = vpack.c.b16 %v1751, %v1745
        %v2268 = vpack.c.b16 %v1752, %v1746
        %v2269 = vpack.c.b16 %v1759, %v1753
        %v2270 = vpack.c.b16 %v1760, %v1754
        %v2271 = vpack.c.b16 %v1761, %v1755
        %v2272 = vpack.c.b16 %v1762, %v1756
        %v2273 = vpack.c.b16 %v1763, %v1757
        %v2274 = vpack.c.b16 %v1764, %v1758
        %v2275 = vpack.c.b16 %v1771, %v1765
        %v2276 = vpack.c.b16 %v1772, %v1766
        %v2277 = vpack.c.b16 %v1773, %v1767
        %v2278 = vpack.c.b16 %v1774, %v1768
        %v2279 = vpack.c.b16 %v1775, %v1769
        %v2280 = vpack.c.b16 %v1776, %v1770
        %v2281 = vpack.c.b16 %v1783, %v1777
        %v2282 = vpack.c.b16 %v1784, %v1778
        %v2283 = vpack.c.b16 %v1785, %v1779
        %v2284 = vpack.c.b16 %v1786, %v1780
        %v2285 = vpack.c.b16 %v1787, %v1781
        %v2286 = vpack.c.b16 %v1788, %v1782
        %v2287 = vpack.c.b16 %v1795, %v1789
        %v2288 = vpack.c.b16 %v1796, %v1790
        %v2289 = vpack.c.b16 %v1797, %v1791
        %v2290 = vpack.c.b16 %v1798, %v1792
        %v2291 = vpack.c.b16 %v1799, %v1793
        %v2292 = vpack.c.b16 %v1800, %v1794
        %v2293 = vpack.c.b16 %v1807, %v1801
        %v2294 = vpack.c.b16 %v1808, %v1802
        %v2295 = vpack.c.b16 %v1809, %v1803
        %v2296 = vpack.c.b16 %v1810, %v1804
        %v2297 = vpack.c.b16 %v1811, %v1805
        %v2298 = vpack.c.b16 %v1812, %v1806
        %v2299 = vpack.c.b16 %v1819, %v1813
        %v2300 = vpack.c.b16 %v1820, %v1814
        %v2301 = vpack.c.b16 %v1821, %v1815
        %v2302 = vpack.c.b16 %v1822, %v1816
        %v2303 = vpack.c.b16 %v1823, %v1817
        %v2304 = vpack.c.b16 %v1824, %v1818
        %v2305 = vpack.c.b16 %v1831, %v1825
        %v2306 = vpack.c.b16 %v1832, %v1826
        %v2307 = vpack.c.b16 %v1833, %v1827
        %v2308 = vpack.c.b16 %v1834, %v1828
        %v2309 = vpack.c.b16 %v1835, %v1829
        %v2310 = vpack.c.b16 %v1836, %v1830
        %v2311 = vpack.c.b16 %v1843, %v1837
        %v2312 = vpack.c.b16 %v1844, %v1838
        %v2313 = vpack.c.b16 %v1845, %v1839
        %v2314 = vpack.c.b16 %v1846, %v1840
        %v2315 = vpack.c.b16 %v1847, %v1841
        %v2316 = vpack.c.b16 %v1848, %v1842
        %v2317 = vpack.c.b16 %v1855, %v1849
        %v2318 = vpack.c.b16 %v1856, %v1850
        %v2319 = vpack.c.b16 %v1857, %v1851
        %v2320 = vpack.c.b16 %v1858, %v1852
        %v2321 = vpack.c.b16 %v1859, %v1853
        %v2322 = vpack.c.b16 %v1860, %v1854
        %v2323 = vpack.c.b16 %v1867, %v1861
        %v2324 = vpack.c.b16 %v1868, %v1862
        %v2325 = vpack.c.b16 %v1869, %v1863
        %v2326 = vpack.c.b16 %v1870, %v1864
        %v2327 = vpack.c.b16 %v1871, %v1865
        %v2328 = vpack.c.b16 %v1872, %v1866
        %v2329 = vpack.c.b16 %v1879, %v1873
        %v2330 = vpack.c.b16 %v1880, %v1874
        %v2331 = vpack.c.b16 %v1881, %v1875
        %v2332 = vpack.c.b16 %v1882, %v1876
        %v2333 = vpack.c.b16 %v1883, %v1877
        %v2334 = vpack.c.b16 %v1884, %v1878
        %v2335 = vpack.c.b16 %v1891, %v1885
        %v2336 = vpack.c.b16 %v1892, %v1886
        %v2337 = vpack.c.b16 %v1893, %v1887
        %v2338 = vpack.c.b16 %v1894, %v1888
        %v2339 = vpack.c.b16 %v1895, %v1889
        %v2340 = vpack.c.b16 %v1896, %v1890
        %v2341 = vpack.c.b16 %v1903, %v1897
        %v2342 = vpack.c.b16 %v1904, %v1898
        %v2343 = vpack.c.b16 %v1905, %v1899
        %v2344 = vpack.c.b16 %v1906, %v1900
        %v2345 = vpack.c.b16 %v1907, %v1901
        %v2346 = vpack.c.b16 %v1908, %v1902
        %v2347 = vpack.c.b16 %v1915, %v1909
        %v2348 = vpack.c.b16 %v1916, %v1910
        %v2349 = vpack.c.b16 %v1917, %v1911
        %v2350 = vpack.c.b16 %v1918, %v1912
        %v2351 = vpack.c.b16 %v1919, %v1913
        %v2352 = vpack.c.b16 %v1920, %v1914
        %v2353 = vpack.c.b16 %v1927, %v1921
        %v2354 = vpack.c.b16 %v1928, %v1922
        %v2355 = vpack.c.b16 %v1929, %v1923
        %v2356 = vpack.c.b16 %v1930, %v1924
        %v2357 = vpack.c.b16 %v1931, %v1925
        %v2358 = vpack.c.b16 %v1932, %v1926
        %v2359 = vpack.c.b16 %v1939, %v1933
        %v2360 = vpack.c.b16 %v1940, %v1934
        %v2361 = vpack.c.b16 %v1941, %v1935
        %v2362 = vpack.c.b16 %v1942, %v1936
        %v2363 = vpack.c.b16 %v1943, %v1937
        %v2364 = vpack.c.b16 %v1944, %v1938
        %v2365 = vpack.c.b16 %v1951, %v1945
        %v2366 = vpack.c.b16 %v1952, %v1946
        %v2367 = vpack.c.b16 %v1953, %v1947
        %v2368 = vpack.c.b16 %v1954, %v1948
        %v2369 = vpack.c.b16 %v1955, %v1949
        %v2370 = vpack.c.b16 %v1956, %v1950
        %v2371 = vpack.c.b16 %v1963, %v1957
        %v2372 = vpack.c.b16 %v1964, %v1958
        %v2373 = vpack.c.b16 %v1965, %v1959
        %v2374 = vpack.c.b16 %v1966, %v1960
        %v2375 = vpack.c.b16 %v1967, %v1961
        %v2376 = vpack.c.b16 %v1968, %v1962
        %v2377 = vpack.c.b16 %v1975, %v1969
        %v2378 = vpack.c.b16 %v1976, %v1970
        %v2379 = vpack.c.b16 %v1977, %v1971
        %v2380 = vpack.c.b16 %v1978, %v1972
        %v2381 = vpack.c.b16 %v1979, %v1973
        %v2382 = vpack.c.b16 %v1980, %v1974
        %v2383 = vpack.c.b16 %v1987, %v1981
        %v2384 = vpack.c.b16 %v1988, %v1982
        %v2385 = vpack.c.b16 %v1989, %v1983
        %v2386 = vpack.c.b16 %v1990, %v1984
        %v2387 = vpack.c.b16 %v1991, %v1985
        %v2388 = vpack.c.b16 %v1992, %v1986
        %v2389 = vpack.c.b16 %v1999, %v1993
        %v2390 = vpack.c.b16 %v2000, %v1994
        %v2391 = vpack.c.b16 %v2001, %v1995
        %v2392 = vpack.c.b16 %v2002, %v1996
        %v2393 = vpack.c.b16 %v2003, %v1997
        %v2394 = vpack.c.b16 %v2004, %v1998
        %v2395 = vpack.c.b16 %v2011, %v2005
        %v2396 = vpack.c.b16 %v2012, %v2006
        %v2397 = vpack.c.b16 %v2013, %v2007
        %v2398 = vpack.c.b16 %v2014, %v2008
        %v2399 = vpack.c.b16 %v2015, %v2009
        %v2400 = vpack.c.b16 %v2016, %v2010
        %2785 = vmatprep.subr.bf16.mxu0 %v2018
        %2786 = vmatpush1.bf16.msra.mxu0 %v2017
        %2787 = vmatprep.subr.bf16.mxu0 %v2024
        %2788 = vmatpush1.bf16.msra.mxu0 %v2023
        %2789 = vmatprep.subr.bf16.mxu0 %v2030
        %2790 = vmatpush1.bf16.msra.mxu0 %v2029
        %2791 = vmatprep.subr.bf16.mxu0 %v2036
        %2792 = vmatpush1.bf16.msra.mxu0 %v2035
        %2793 = vmatprep.subr.bf16.mxu0 %v2042
        %2794 = vmatpush1.bf16.msra.mxu0 %v2041
        %2795 = vmatprep.subr.bf16.mxu0 %v2048
        %2796 = vmatpush1.bf16.msra.mxu0 %v2047
        %2797 = vmatprep.subr.bf16.mxu0 %v2054
        %2798 = vmatpush1.bf16.msra.mxu0 %v2053
        %2799 = vmatprep.subr.bf16.mxu0 %v2060
        %2800 = vmatpush1.bf16.msra.mxu0 %v2059
        %2801 = vmatprep.subr.bf16.mxu0 %v2066
        %2802 = vmatpush1.bf16.msra.mxu0 %v2065
        %2803 = vmatprep.subr.bf16.mxu0 %v2072
        %2804 = vmatpush1.bf16.msra.mxu0 %v2071
        %2805 = vmatprep.subr.bf16.mxu0 %v2078
        %2806 = vmatpush1.bf16.msra.mxu0 %v2077
        %2807 = vmatprep.subr.bf16.mxu0 %v2084
        %2808 = vmatpush1.bf16.msra.mxu0 %v2083
        %2809 = vmatprep.subr.bf16.mxu0 %v2090
        %2810 = vmatpush1.bf16.msra.mxu0 %v2089
        %2811 = vmatprep.subr.bf16.mxu0 %v2096
        %2812 = vmatpush1.bf16.msra.mxu0 %v2095
        %2813 = vmatprep.subr.bf16.mxu0 %v2102
        %2814 = vmatpush1.bf16.msra.mxu0 %v2101
        %2815 = vmatprep.subr.bf16.mxu0 %v2108
        %2816 = vmatpush1.bf16.msra.mxu0 %v2107
        %2817 = vmatprep.mubr.bf16.mxu0 %v850
        %2818 = vmatmul.mubr.bf16.gmra.mrb[0].mxu0 %v849
        %v2819 = vpop.f32.mrb[0].mxu0
        %v2820 = vadd.f32 0.0, %v2819
        %v2821 = vpop.f32.mrb[0].mxu0
        %v2822 = vadd.f32 0.0, %v2821
        %v2823 = vpop.f32.mrb[0].mxu0
        %v2824 = vpop.f32.mrb[0].mxu0
        %2825 = vdwg.mxu0
        %2826 = vmatprep.subr.bf16.mxu0 %v2114
        %2827 = vmatpush1.bf16.msra.mxu0 %v2113
        %2828 = vmatprep.subr.bf16.mxu0 %v2120
        %2829 = vmatpush1.bf16.msra.mxu0 %v2119
        %2830 = vmatprep.subr.bf16.mxu0 %v2126
        %2831 = vmatpush1.bf16.msra.mxu0 %v2125
        %2832 = vmatprep.subr.bf16.mxu0 %v2132
        %2833 = vmatpush1.bf16.msra.mxu0 %v2131
        %2834 = vmatprep.subr.bf16.mxu0 %v2138
        %2835 = vmatpush1.bf16.msra.mxu0 %v2137
        %2836 = vmatprep.subr.bf16.mxu0 %v2144
        %2837 = vmatpush1.bf16.msra.mxu0 %v2143
        %2838 = vmatprep.subr.bf16.mxu0 %v2150
        %2839 = vmatpush1.bf16.msra.mxu0 %v2149
        %2840 = vmatprep.subr.bf16.mxu0 %v2156
        %2841 = vmatpush1.bf16.msra.mxu0 %v2155
        %2842 = vmatprep.subr.bf16.mxu0 %v2162
        %2843 = vmatpush1.bf16.msra.mxu0 %v2161
        %2844 = vmatprep.subr.bf16.mxu0 %v2168
        %2845 = vmatpush1.bf16.msra.mxu0 %v2167
        %2846 = vmatprep.subr.bf16.mxu0 %v2174
        %2847 = vmatpush1.bf16.msra.mxu0 %v2173
        %2848 = vmatprep.subr.bf16.mxu0 %v2180
        %2849 = vmatpush1.bf16.msra.mxu0 %v2179
        %2850 = vmatprep.subr.bf16.mxu0 %v2186
        %2851 = vmatpush1.bf16.msra.mxu0 %v2185
        %2852 = vmatprep.subr.bf16.mxu0 %v2192
        %2853 = vmatpush1.bf16.msra.mxu0 %v2191
        %2854 = vmatprep.subr.bf16.mxu0 %v2198
        %2855 = vmatpush1.bf16.msra.mxu0 %v2197
        %2856 = vmatprep.subr.bf16.mxu0 %v2204
        %2857 = vmatpush1.bf16.msra.mxu0 %v2203
        %2858 = vmatprep.mubr.bf16.mxu0 %v852
        %2859 = vmatmul.mubr.bf16.gmra.mrb[0].mxu0 %v851
        %v2860 = vpop.f32.mrb[0].mxu0
        %v2861 = vadd.f32 %v2820, %v2860
        %v2862 = vpop.f32.mrb[0].mxu0
        %v2863 = vadd.f32 %v2822, %v2862
        %v2864 = vpop.f32.mrb[0].mxu0
        %v2865 = vpop.f32.mrb[0].mxu0
        %2866 = vdwg.mxu0
        %2867 = vmatprep.subr.bf16.mxu0 %v2210
        %2868 = vmatpush1.bf16.msra.mxu0 %v2209
        %2869 = vmatprep.subr.bf16.mxu0 %v2216
        %2870 = vmatpush1.bf16.msra.mxu0 %v2215
        %2871 = vmatprep.subr.bf16.mxu0 %v2222
        %2872 = vmatpush1.bf16.msra.mxu0 %v2221
        %2873 = vmatprep.subr.bf16.mxu0 %v2228
        %2874 = vmatpush1.bf16.msra.mxu0 %v2227
        %2875 = vmatprep.subr.bf16.mxu0 %v2234
        %2876 = vmatpush1.bf16.msra.mxu0 %v2233
        %2877 = vmatprep.subr.bf16.mxu0 %v2240
        %2878 = vmatpush1.bf16.msra.mxu0 %v2239
        %2879 = vmatprep.subr.bf16.mxu0 %v2246
        %2880 = vmatpush1.bf16.msra.mxu0 %v2245
        %2881 = vmatprep.subr.bf16.mxu0 %v2252
        %2882 = vmatpush1.bf16.msra.mxu0 %v2251
        %2883 = vmatprep.subr.bf16.mxu0 %v2258
        %2884 = vmatpush1.bf16.msra.mxu0 %v2257
        %2885 = vmatprep.subr.bf16.mxu0 %v2264
        %2886 = vmatpush1.bf16.msra.mxu0 %v2263
        %2887 = vmatprep.subr.bf16.mxu0 %v2270
        %2888 = vmatpush1.bf16.msra.mxu0 %v2269
        %2889 = vmatprep.subr.bf16.mxu0 %v2276
        %2890 = vmatpush1.bf16.msra.mxu0 %v2275
        %2891 = vmatprep.subr.bf16.mxu0 %v2282
        %2892 = vmatpush1.bf16.msra.mxu0 %v2281
        %2893 = vmatprep.subr.bf16.mxu0 %v2288
        %2894 = vmatpush1.bf16.msra.mxu0 %v2287
        %2895 = vmatprep.subr.bf16.mxu0 %v2294
        %2896 = vmatpush1.bf16.msra.mxu0 %v2293
        %2897 = vmatprep.subr.bf16.mxu0 %v2300
        %2898 = vmatpush1.bf16.msra.mxu0 %v2299
        %2899 = vmatprep.mubr.bf16.mxu0 %v854
        %2900 = vmatmul.mubr.bf16.gmra.mrb[0].mxu0 %v853
        %v2901 = vpop.f32.mrb[0].mxu0
        %v2902 = vadd.f32 %v2861, %v2901
        %v2903 = vpop.f32.mrb[0].mxu0
        %v2904 = vadd.f32 %v2863, %v2903
        %v2905 = vpop.f32.mrb[0].mxu0
        %v2906 = vpop.f32.mrb[0].mxu0
        %2907 = vdwg.mxu0
        %2908 = vmatprep.subr.bf16.mxu0 %v2306
        %2909 = vmatpush1.bf16.msra.mxu0 %v2305
        %2910 = vmatprep.subr.bf16.mxu0 %v2312
        %2911 = vmatpush1.bf16.msra.mxu0 %v2311
        %2912 = vmatprep.subr.bf16.mxu0 %v2318
        %2913 = vmatpush1.bf16.msra.mxu0 %v2317
        %2914 = vmatprep.subr.bf16.mxu0 %v2324
        %2915 = vmatpush1.bf16.msra.mxu0 %v2323
        %2916 = vmatprep.subr.bf16.mxu0 %v2330
        %2917 = vmatpush1.bf16.msra.mxu0 %v2329
        %2918 = vmatprep.subr.bf16.mxu0 %v2336
        %2919 = vmatpush1.bf16.msra.mxu0 %v2335
        %2920 = vmatprep.subr.bf16.mxu0 %v2342
        %2921 = vmatpush1.bf16.msra.mxu0 %v2341
        %2922 = vmatprep.subr.bf16.mxu0 %v2348
        %2923 = vmatpush1.bf16.msra.mxu0 %v2347
        %2924 = vmatprep.subr.bf16.mxu0 %v2354
        %2925 = vmatpush1.bf16.msra.mxu0 %v2353
        %2926 = vmatprep.subr.bf16.mxu0 %v2360
        %2927 = vmatpush1.bf16.msra.mxu0 %v2359
        %2928 = vmatprep.subr.bf16.mxu0 %v2366
        %2929 = vmatpush1.bf16.msra.mxu0 %v2365
        %2930 = vmatprep.subr.bf16.mxu0 %v2372
        %2931 = vmatpush1.bf16.msra.mxu0 %v2371
        %2932 = vmatprep.subr.bf16.mxu0 %v2378
        %2933 = vmatpush1.bf16.msra.mxu0 %v2377
        %2934 = vmatprep.subr.bf16.mxu0 %v2384
        %2935 = vmatpush1.bf16.msra.mxu0 %v2383
        %2936 = vmatprep.subr.bf16.mxu0 %v2390
        %2937 = vmatpush1.bf16.msra.mxu0 %v2389
        %2938 = vmatprep.subr.bf16.mxu0 %v2396
        %2939 = vmatpush1.bf16.msra.mxu0 %v2395
        %2940 = vmatprep.mubr.bf16.mxu0 %v856
        %2941 = vmatmul.mubr.bf16.gmra.mrb[0].mxu0 %v855
        %v2942 = vpop.f32.mrb[0].mxu0
        %v2943 = vadd.f32 %v2902, %v2942
        %v2944 = vpop.f32.mrb[0].mxu0
        %v2945 = vadd.f32 %v2904, %v2944
        %v2946 = vpop.f32.mrb[0].mxu0
        %v2947 = vpop.f32.mrb[0].mxu0
        %2948 = vdwg.mxu0
        %2949 = vmatprep.subr.bf16.mxu0 %v2020
        %2950 = vmatpush1.bf16.msra.mxu0 %v2019
        %2951 = vmatprep.subr.bf16.mxu0 %v2026
        %2952 = vmatpush1.bf16.msra.mxu0 %v2025
        %2953 = vmatprep.subr.bf16.mxu0 %v2032
        %2954 = vmatpush1.bf16.msra.mxu0 %v2031
        %2955 = vmatprep.subr.bf16.mxu0 %v2038
        %2956 = vmatpush1.bf16.msra.mxu0 %v2037
        %2957 = vmatprep.subr.bf16.mxu0 %v2044
        %2958 = vmatpush1.bf16.msra.mxu0 %v2043
        %2959 = vmatprep.subr.bf16.mxu0 %v2050
        %2960 = vmatpush1.bf16.msra.mxu0 %v2049
        %2961 = vmatprep.subr.bf16.mxu0 %v2056
        %2962 = vmatpush1.bf16.msra.mxu0 %v2055
        %2963 = vmatprep.subr.bf16.mxu0 %v2062
        %2964 = vmatpush1.bf16.msra.mxu0 %v2061
        %2965 = vmatprep.subr.bf16.mxu0 %v2068
        %2966 = vmatpush1.bf16.msra.mxu0 %v2067
        %2967 = vmatprep.subr.bf16.mxu0 %v2074
        %2968 = vmatpush1.bf16.msra.mxu0 %v2073
        %2969 = vmatprep.subr.bf16.mxu0 %v2080
        %2970 = vmatpush1.bf16.msra.mxu0 %v2079
        %2971 = vmatprep.subr.bf16.mxu0 %v2086
        %2972 = vmatpush1.bf16.msra.mxu0 %v2085
        %2973 = vmatprep.subr.bf16.mxu0 %v2092
        %2974 = vmatpush1.bf16.msra.mxu0 %v2091
        %2975 = vmatprep.subr.bf16.mxu0 %v2098
        %2976 = vmatpush1.bf16.msra.mxu0 %v2097
        %2977 = vmatprep.subr.bf16.mxu0 %v2104
        %2978 = vmatpush1.bf16.msra.mxu0 %v2103
        %2979 = vmatprep.subr.bf16.mxu0 %v2110
        %2980 = vmatpush1.bf16.msra.mxu0 %v2109
        %2981 = vmatprep.mubr.bf16.mxu0 %v850
        %2982 = vmatmul.mubr.bf16.gmra.mrb[0].mxu0 %v849
        %v2983 = vpop.f32.mrb[0].mxu0
        %v2984 = vadd.f32 0.0, %v2983
        %v2985 = vpop.f32.mrb[0].mxu0
        %v2986 = vadd.f32 0.0, %v2985
        %v2987 = vpop.f32.mrb[0].mxu0
        %v2988 = vpop.f32.mrb[0].mxu0
        %2989 = vdwg.mxu0
        %2990 = vmatprep.subr.bf16.mxu0 %v2116
        %2991 = vmatpush1.bf16.msra.mxu0 %v2115
        %2992 = vmatprep.subr.bf16.mxu0 %v2122
        %2993 = vmatpush1.bf16.msra.mxu0 %v2121
        %2994 = vmatprep.subr.bf16.mxu0 %v2128
        %2995 = vmatpush1.bf16.msra.mxu0 %v2127
        %2996 = vmatprep.subr.bf16.mxu0 %v2134
        %2997 = vmatpush1.bf16.msra.mxu0 %v2133
        %2998 = vmatprep.subr.bf16.mxu0 %v2140
        %2999 = vmatpush1.bf16.msra.mxu0 %v2139
        %3000 = vmatprep.subr.bf16.mxu0 %v2146
        %3001 = vmatpush1.bf16.msra.mxu0 %v2145
        %3002 = vmatprep.subr.bf16.mxu0 %v2152
        %3003 = vmatpush1.bf16.msra.mxu0 %v2151
        %3004 = vmatprep.subr.bf16.mxu0 %v2158
        %3005 = vmatpush1.bf16.msra.mxu0 %v2157
        %3006 = vmatprep.subr.bf16.mxu0 %v2164
        %3007 = vmatpush1.bf16.msra.mxu0 %v2163
        %3008 = vmatprep.subr.bf16.mxu0 %v2170
        %3009 = vmatpush1.bf16.msra.mxu0 %v2169
        %3010 = vmatprep.subr.bf16.mxu0 %v2176
        %3011 = vmatpush1.bf16.msra.mxu0 %v2175
        %3012 = vmatprep.subr.bf16.mxu0 %v2182
        %3013 = vmatpush1.bf16.msra.mxu0 %v2181
        %3014 = vmatprep.subr.bf16.mxu0 %v2188
        %3015 = vmatpush1.bf16.msra.mxu0 %v2187
        %3016 = vmatprep.subr.bf16.mxu0 %v2194
        %3017 = vmatpush1.bf16.msra.mxu0 %v2193
        %3018 = vmatprep.subr.bf16.mxu0 %v2200
        %3019 = vmatpush1.bf16.msra.mxu0 %v2199
        %3020 = vmatprep.subr.bf16.mxu0 %v2206
        %3021 = vmatpush1.bf16.msra.mxu0 %v2205
        %3022 = vmatprep.mubr.bf16.mxu0 %v852
        %3023 = vmatmul.mubr.bf16.gmra.mrb[0].mxu0 %v851
        %v3024 = vpop.f32.mrb[0].mxu0
        %v3025 = vadd.f32 %v2984, %v3024
        %v3026 = vpop.f32.mrb[0].mxu0
        %v3027 = vadd.f32 %v2986, %v3026
        %v3028 = vpop.f32.mrb[0].mxu0
        %v3029 = vpop.f32.mrb[0].mxu0
        %3030 = vdwg.mxu0
        %3031 = vmatprep.subr.bf16.mxu0 %v2212
        %3032 = vmatpush1.bf16.msra.mxu0 %v2211
        %3033 = vmatprep.subr.bf16.mxu0 %v2218
        %3034 = vmatpush1.bf16.msra.mxu0 %v2217
        %3035 = vmatprep.subr.bf16.mxu0 %v2224
        %3036 = vmatpush1.bf16.msra.mxu0 %v2223
        %3037 = vmatprep.subr.bf16.mxu0 %v2230
        %3038 = vmatpush1.bf16.msra.mxu0 %v2229
        %3039 = vmatprep.subr.bf16.mxu0 %v2236
        %3040 = vmatpush1.bf16.msra.mxu0 %v2235
        %3041 = vmatprep.subr.bf16.mxu0 %v2242
        %3042 = vmatpush1.bf16.msra.mxu0 %v2241
        %3043 = vmatprep.subr.bf16.mxu0 %v2248
        %3044 = vmatpush1.bf16.msra.mxu0 %v2247
        %3045 = vmatprep.subr.bf16.mxu0 %v2254
        %3046 = vmatpush1.bf16.msra.mxu0 %v2253
        %3047 = vmatprep.subr.bf16.mxu0 %v2260
        %3048 = vmatpush1.bf16.msra.mxu0 %v2259
        %3049 = vmatprep.subr.bf16.mxu0 %v2266
        %3050 = vmatpush1.bf16.msra.mxu0 %v2265
        %3051 = vmatprep.subr.bf16.mxu0 %v2272
        %3052 = vmatpush1.bf16.msra.mxu0 %v2271
        %3053 = vmatprep.subr.bf16.mxu0 %v2278
        %3054 = vmatpush1.bf16.msra.mxu0 %v2277
        %3055 = vmatprep.subr.bf16.mxu0 %v2284
        %3056 = vmatpush1.bf16.msra.mxu0 %v2283
        %3057 = vmatprep.subr.bf16.mxu0 %v2290
        %3058 = vmatpush1.bf16.msra.mxu0 %v2289
        %3059 = vmatprep.subr.bf16.mxu0 %v2296
        %3060 = vmatpush1.bf16.msra.mxu0 %v2295
        %3061 = vmatprep.subr.bf16.mxu0 %v2302
        %3062 = vmatpush1.bf16.msra.mxu0 %v2301
        %3063 = vmatprep.mubr.bf16.mxu0 %v854
        %3064 = vmatmul.mubr.bf16.gmra.mrb[0].mxu0 %v853
        %v3065 = vpop.f32.mrb[0].mxu0
        %v3066 = vadd.f32 %v3025, %v3065
        %v3067 = vpop.f32.mrb[0].mxu0
        %v3068 = vadd.f32 %v3027, %v3067
        %v3069 = vpop.f32.mrb[0].mxu0
        %v3070 = vpop.f32.mrb[0].mxu0
        %3071 = vdwg.mxu0
        %3072 = vmatprep.subr.bf16.mxu0 %v2308
        %3073 = vmatpush1.bf16.msra.mxu0 %v2307
        %3074 = vmatprep.subr.bf16.mxu0 %v2314
        %3075 = vmatpush1.bf16.msra.mxu0 %v2313
        %3076 = vmatprep.subr.bf16.mxu0 %v2320
        %3077 = vmatpush1.bf16.msra.mxu0 %v2319
        %3078 = vmatprep.subr.bf16.mxu0 %v2326
        %3079 = vmatpush1.bf16.msra.mxu0 %v2325
        %3080 = vmatprep.subr.bf16.mxu0 %v2332
        %3081 = vmatpush1.bf16.msra.mxu0 %v2331
        %3082 = vmatprep.subr.bf16.mxu0 %v2338
        %3083 = vmatpush1.bf16.msra.mxu0 %v2337
        %3084 = vmatprep.subr.bf16.mxu0 %v2344
        %3085 = vmatpush1.bf16.msra.mxu0 %v2343
        %3086 = vmatprep.subr.bf16.mxu0 %v2350
        %3087 = vmatpush1.bf16.msra.mxu0 %v2349
        %3088 = vmatprep.subr.bf16.mxu0 %v2356
        %3089 = vmatpush1.bf16.msra.mxu0 %v2355
        %3090 = vmatprep.subr.bf16.mxu0 %v2362
        %3091 = vmatpush1.bf16.msra.mxu0 %v2361
        %3092 = vmatprep.subr.bf16.mxu0 %v2368
        %3093 = vmatpush1.bf16.msra.mxu0 %v2367
        %3094 = vmatprep.subr.bf16.mxu0 %v2374
        %3095 = vmatpush1.bf16.msra.mxu0 %v2373
        %3096 = vmatprep.subr.bf16.mxu0 %v2380
        %3097 = vmatpush1.bf16.msra.mxu0 %v2379
        %3098 = vmatprep.subr.bf16.mxu0 %v2386
        %3099 = vmatpush1.bf16.msra.mxu0 %v2385
        %3100 = vmatprep.subr.bf16.mxu0 %v2392
        %3101 = vmatpush1.bf16.msra.mxu0 %v2391
        %3102 = vmatprep.subr.bf16.mxu0 %v2398
        %3103 = vmatpush1.bf16.msra.mxu0 %v2397
        %3104 = vmatprep.mubr.bf16.mxu0 %v856
        %3105 = vmatmul.mubr.bf16.gmra.mrb[0].mxu0 %v855
        %v3106 = vpop.f32.mrb[0].mxu0
        %v3107 = vadd.f32 %v3066, %v3106
        %v3108 = vpop.f32.mrb[0].mxu0
        %v3109 = vadd.f32 %v3068, %v3108
        %v3110 = vpop.f32.mrb[0].mxu0
        %v3111 = vpop.f32.mrb[0].mxu0
        %3112 = vdwg.mxu0
        %3113 = vmatprep.subr.bf16.mxu0 %v2022
        %3114 = vmatpush1.bf16.msra.mxu0 %v2021
        %3115 = vmatprep.subr.bf16.mxu0 %v2028
        %3116 = vmatpush1.bf16.msra.mxu0 %v2027
        %3117 = vmatprep.subr.bf16.mxu0 %v2034
        %3118 = vmatpush1.bf16.msra.mxu0 %v2033
        %3119 = vmatprep.subr.bf16.mxu0 %v2040
        %3120 = vmatpush1.bf16.msra.mxu0 %v2039
        %3121 = vmatprep.subr.bf16.mxu0 %v2046
        %3122 = vmatpush1.bf16.msra.mxu0 %v2045
        %3123 = vmatprep.subr.bf16.mxu0 %v2052
        %3124 = vmatpush1.bf16.msra.mxu0 %v2051
        %3125 = vmatprep.subr.bf16.mxu0 %v2058
        %3126 = vmatpush1.bf16.msra.mxu0 %v2057
        %3127 = vmatprep.subr.bf16.mxu0 %v2064
        %3128 = vmatpush1.bf16.msra.mxu0 %v2063
        %3129 = vmatprep.subr.bf16.mxu0 %v2070
        %3130 = vmatpush1.bf16.msra.mxu0 %v2069
        %3131 = vmatprep.subr.bf16.mxu0 %v2076
        %3132 = vmatpush1.bf16.msra.mxu0 %v2075
        %3133 = vmatprep.subr.bf16.mxu0 %v2082
        %3134 = vmatpush1.bf16.msra.mxu0 %v2081
        %3135 = vmatprep.subr.bf16.mxu0 %v2088
        %3136 = vmatpush1.bf16.msra.mxu0 %v2087
        %3137 = vmatprep.subr.bf16.mxu0 %v2094
        %3138 = vmatpush1.bf16.msra.mxu0 %v2093
        %3139 = vmatprep.subr.bf16.mxu0 %v2100
        %3140 = vmatpush1.bf16.msra.mxu0 %v2099
        %3141 = vmatprep.subr.bf16.mxu0 %v2106
        %3142 = vmatpush1.bf16.msra.mxu0 %v2105
        %3143 = vmatprep.subr.bf16.mxu0 %v2112
        %3144 = vmatpush1.bf16.msra.mxu0 %v2111
        %3145 = vmatprep.mubr.bf16.mxu0 %v850
        %3146 = vmatmul.mubr.bf16.gmra.mrb[0].mxu0 %v849
        %v3147 = vpop.f32.mrb[0].mxu0
        %v3148 = vadd.f32 0.0, %v3147
        %v3149 = vpop.f32.mrb[0].mxu0
        %v3150 = vadd.f32 0.0, %v3149
        %v3151 = vpop.f32.mrb[0].mxu0
        %v3152 = vpop.f32.mrb[0].mxu0
        %3153 = vdwg.mxu0
        %3154 = vmatprep.subr.bf16.mxu0 %v2118
        %3155 = vmatpush1.bf16.msra.mxu0 %v2117
        %3156 = vmatprep.subr.bf16.mxu0 %v2124
        %3157 = vmatpush1.bf16.msra.mxu0 %v2123
        %3158 = vmatprep.subr.bf16.mxu0 %v2130
        %3159 = vmatpush1.bf16.msra.mxu0 %v2129
        %3160 = vmatprep.subr.bf16.mxu0 %v2136
        %3161 = vmatpush1.bf16.msra.mxu0 %v2135
        %3162 = vmatprep.subr.bf16.mxu0 %v2142
        %3163 = vmatpush1.bf16.msra.mxu0 %v2141
        %3164 = vmatprep.subr.bf16.mxu0 %v2148
        %3165 = vmatpush1.bf16.msra.mxu0 %v2147
        %3166 = vmatprep.subr.bf16.mxu0 %v2154
        %3167 = vmatpush1.bf16.msra.mxu0 %v2153
        %3168 = vmatprep.subr.bf16.mxu0 %v2160
        %3169 = vmatpush1.bf16.msra.mxu0 %v2159
        %3170 = vmatprep.subr.bf16.mxu0 %v2166
        %3171 = vmatpush1.bf16.msra.mxu0 %v2165
        %3172 = vmatprep.subr.bf16.mxu0 %v2172
        %3173 = vmatpush1.bf16.msra.mxu0 %v2171
        %3174 = vmatprep.subr.bf16.mxu0 %v2178
        %3175 = vmatpush1.bf16.msra.mxu0 %v2177
        %3176 = vmatprep.subr.bf16.mxu0 %v2184
        %3177 = vmatpush1.bf16.msra.mxu0 %v2183
        %3178 = vmatprep.subr.bf16.mxu0 %v2190
        %3179 = vmatpush1.bf16.msra.mxu0 %v2189
        %3180 = vmatprep.subr.bf16.mxu0 %v2196
        %3181 = vmatpush1.bf16.msra.mxu0 %v2195
        %3182 = vmatprep.subr.bf16.mxu0 %v2202
        %3183 = vmatpush1.bf16.msra.mxu0 %v2201
        %3184 = vmatprep.subr.bf16.mxu0 %v2208
        %3185 = vmatpush1.bf16.msra.mxu0 %v2207
        %3186 = vmatprep.mubr.bf16.mxu0 %v852
        %3187 = vmatmul.mubr.bf16.gmra.mrb[0].mxu0 %v851
        %v3188 = vpop.f32.mrb[0].mxu0
        %v3189 = vadd.f32 %v3148, %v3188
        %v3190 = vpop.f32.mrb[0].mxu0
        %v3191 = vadd.f32 %v3150, %v3190
        %v3192 = vpop.f32.mrb[0].mxu0
        %v3193 = vpop.f32.mrb[0].mxu0
        %3194 = vdwg.mxu0
        %3195 = vmatprep.subr.bf16.mxu0 %v2214
        %3196 = vmatpush1.bf16.msra.mxu0 %v2213
        %3197 = vmatprep.subr.bf16.mxu0 %v2220
        %3198 = vmatpush1.bf16.msra.mxu0 %v2219
        %3199 = vmatprep.subr.bf16.mxu0 %v2226
        %3200 = vmatpush1.bf16.msra.mxu0 %v2225
        %3201 = vmatprep.subr.bf16.mxu0 %v2232
        %3202 = vmatpush1.bf16.msra.mxu0 %v2231
        %3203 = vmatprep.subr.bf16.mxu0 %v2238
        %3204 = vmatpush1.bf16.msra.mxu0 %v2237
        %3205 = vmatprep.subr.bf16.mxu0 %v2244
        %3206 = vmatpush1.bf16.msra.mxu0 %v2243
        %3207 = vmatprep.subr.bf16.mxu0 %v2250
        %3208 = vmatpush1.bf16.msra.mxu0 %v2249
        %3209 = vmatprep.subr.bf16.mxu0 %v2256
        %3210 = vmatpush1.bf16.msra.mxu0 %v2255
        %3211 = vmatprep.subr.bf16.mxu0 %v2262
        %3212 = vmatpush1.bf16.msra.mxu0 %v2261
        %3213 = vmatprep.subr.bf16.mxu0 %v2268
        %3214 = vmatpush1.bf16.msra.mxu0 %v2267
        %3215 = vmatprep.subr.bf16.mxu0 %v2274
        %3216 = vmatpush1.bf16.msra.mxu0 %v2273
        %3217 = vmatprep.subr.bf16.mxu0 %v2280
        %3218 = vmatpush1.bf16.msra.mxu0 %v2279
        %3219 = vmatprep.subr.bf16.mxu0 %v2286
        %3220 = vmatpush1.bf16.msra.mxu0 %v2285
        %3221 = vmatprep.subr.bf16.mxu0 %v2292
        %3222 = vmatpush1.bf16.msra.mxu0 %v2291
        %3223 = vmatprep.subr.bf16.mxu0 %v2298
        %3224 = vmatpush1.bf16.msra.mxu0 %v2297
        %3225 = vmatprep.subr.bf16.mxu0 %v2304
        %3226 = vmatpush1.bf16.msra.mxu0 %v2303
        %3227 = vmatprep.mubr.bf16.mxu0 %v854
        %3228 = vmatmul.mubr.bf16.gmra.mrb[0].mxu0 %v853
        %v3229 = vpop.f32.mrb[0].mxu0
        %v3230 = vadd.f32 %v3189, %v3229
        %v3231 = vpop.f32.mrb[0].mxu0
        %v3232 = vadd.f32 %v3191, %v3231
        %v3233 = vpop.f32.mrb[0].mxu0
        %v3234 = vpop.f32.mrb[0].mxu0
        %3235 = vdwg.mxu0
        %3236 = vmatprep.subr.bf16.mxu0 %v2310
        %3237 = vmatpush1.bf16.msra.mxu0 %v2309
        %3238 = vmatprep.subr.bf16.mxu0 %v2316
        %3239 = vmatpush1.bf16.msra.mxu0 %v2315
        %3240 = vmatprep.subr.bf16.mxu0 %v2322
        %3241 = vmatpush1.bf16.msra.mxu0 %v2321
        %3242 = vmatprep.subr.bf16.mxu0 %v2328
        %3243 = vmatpush1.bf16.msra.mxu0 %v2327
        %3244 = vmatprep.subr.bf16.mxu0 %v2334
        %3245 = vmatpush1.bf16.msra.mxu0 %v2333
        %3246 = vmatprep.subr.bf16.mxu0 %v2340
        %3247 = vmatpush1.bf16.msra.mxu0 %v2339
        %3248 = vmatprep.subr.bf16.mxu0 %v2346
        %3249 = vmatpush1.bf16.msra.mxu0 %v2345
        %3250 = vmatprep.subr.bf16.mxu0 %v2352
        %3251 = vmatpush1.bf16.msra.mxu0 %v2351
        %3252 = vmatprep.subr.bf16.mxu0 %v2358
        %3253 = vmatpush1.bf16.msra.mxu0 %v2357
        %3254 = vmatprep.subr.bf16.mxu0 %v2364
        %3255 = vmatpush1.bf16.msra.mxu0 %v2363
        %3256 = vmatprep.subr.bf16.mxu0 %v2370
        %3257 = vmatpush1.bf16.msra.mxu0 %v2369
        %3258 = vmatprep.subr.bf16.mxu0 %v2376
        %3259 = vmatpush1.bf16.msra.mxu0 %v2375
        %3260 = vmatprep.subr.bf16.mxu0 %v2382
        %3261 = vmatpush1.bf16.msra.mxu0 %v2381
        %3262 = vmatprep.subr.bf16.mxu0 %v2388
        %3263 = vmatpush1.bf16.msra.mxu0 %v2387
        %3264 = vmatprep.subr.bf16.mxu0 %v2394
        %3265 = vmatpush1.bf16.msra.mxu0 %v2393
        %3266 = vmatprep.subr.bf16.mxu0 %v2400
        %3267 = vmatpush1.bf16.msra.mxu0 %v2399
        %3268 = vmatprep.mubr.bf16.mxu0 %v856
        %3269 = vmatmul.mubr.bf16.gmra.mrb[0].mxu0 %v855
        %v3270 = vpop.f32.mrb[0].mxu0
        %v3271 = vadd.f32 %v3230, %v3270
        %v3272 = vpop.f32.mrb[0].mxu0
        %v3273 = vadd.f32 %v3232, %v3272
        %v3274 = vpop.f32.mrb[0].mxu0
        %v3275 = vpop.f32.mrb[0].mxu0
        %3276 = vdwg.mxu0
        %v3277 = vld [vmem:[%s444] sm:$0xff]
        %3279 = vset.pattern.permute.xlu0 0
        %3280 = vperm.xlu0 %3279, %v3277
        %v3281 = vpop.permute.xlu0 %3280
        %v3283 = vmul.f32 %v2943, %v3281
        %v3284 = vmul.f32 %v2945, %v3281
        %v3285 = vmul.f32 %v3107, %v3281
        %v3286 = vmul.f32 %v3109, %v3281
        %v3287 = vmul.f32 %v3271, %v3281
        %v3288 = vmul.f32 %v3273, %v3281
        %v3289 = vpack.c.bf16 %v3283, %v3283
        %v3290 = vpack.c.bf16 %v3284, %v3284
        %v3291 = vpack.c.bf16 %v3285, %v3285
        %v3292 = vpack.c.bf16 %v3286, %v3286
        %v3293 = vpack.c.bf16 %v3287, %v3287
        %v3294 = vpack.c.bf16 %v3288, %v3288
        %v3295 = vld [vmem:[#allocation7] sm:$0xff]
        %v3296 = vld [vmem:[#allocation7 + $0x8] sm:$0xff]
        %v3297 = vld [vmem:[#allocation7 + $0x10] sm:$0xff]
        %v3298 = vld [vmem:[#allocation7 + $0x18] sm:$0xff]
        %v3299 = vld [vmem:[#allocation7 + $0x20] sm:$0xff]
        %v3300 = vld [vmem:[#allocation7 + $0x28] sm:$0xff]
        %v3301 = vld [vmem:[#allocation7 + $0x30] sm:$0xff]
        %v3302 = vld [vmem:[#allocation7 + $0x38] sm:$0xff]
        %v3303 = vld [vmem:[#allocation7 + $0x40] sm:$0xff]
        %v3304 = vld [vmem:[#allocation7 + $0x48] sm:$0xff]
        %v3305 = vld [vmem:[#allocation7 + $0x50] sm:$0xff]
        %v3306 = vld [vmem:[#allocation7 + $0x58] sm:$0xff]
        %v3307 = vld [vmem:[#allocation7 + $0x60] sm:$0xff]
        %v3308 = vld [vmem:[#allocation7 + $0x68] sm:$0xff]
        %v3309 = vld [vmem:[#allocation7 + $0x70] sm:$0xff]
        %v3310 = vld [vmem:[#allocation7 + $0x78] sm:$0xff]
        %v3311 = vld [vmem:[#allocation7 + $0x80] sm:$0xff]
        %v3312 = vld [vmem:[#allocation7 + $0x88] sm:$0xff]
        %v3313 = vld [vmem:[#allocation7 + $0x90] sm:$0xff]
        %v3314 = vld [vmem:[#allocation7 + $0x98] sm:$0xff]
        %v3315 = vld [vmem:[#allocation7 + $0xa0] sm:$0xff]
        %v3316 = vld [vmem:[#allocation7 + $0xa8] sm:$0xff]
        %v3317 = vld [vmem:[#allocation7 + $0xb0] sm:$0xff]
        %v3318 = vld [vmem:[#allocation7 + $0xb8] sm:$0xff]
        %v3319 = vld [vmem:[#allocation7 + $0xc0] sm:$0xff]
        %v3320 = vld [vmem:[#allocation7 + $0xc8] sm:$0xff]
        %v3321 = vld [vmem:[#allocation7 + $0xd0] sm:$0xff]
        %v3322 = vld [vmem:[#allocation7 + $0xd8] sm:$0xff]
        %v3323 = vld [vmem:[#allocation7 + $0xe0] sm:$0xff]
        %v3324 = vld [vmem:[#allocation7 + $0xe8] sm:$0xff]
        %v3325 = vld [vmem:[#allocation7 + $0xf0] sm:$0xff]
        %v3326 = vld [vmem:[#allocation7 + $0xf8] sm:$0xff]
        %v3327 = vld [vmem:[#allocation7 + $0x100] sm:$0xff]
        %v3328 = vld [vmem:[#allocation7 + $0x108] sm:$0xff]
        %v3329 = vld [vmem:[#allocation7 + $0x110] sm:$0xff]
        %v3330 = vld [vmem:[#allocation7 + $0x118] sm:$0xff]
        %v3331 = vld [vmem:[#allocation7 + $0x120] sm:$0xff]
        %v3332 = vld [vmem:[#allocation7 + $0x128] sm:$0xff]
        %v3333 = vld [vmem:[#allocation7 + $0x130] sm:$0xff]
        %v3334 = vld [vmem:[#allocation7 + $0x138] sm:$0xff]
        %v3335 = vld [vmem:[#allocation7 + $0x140] sm:$0xff]
        %v3336 = vld [vmem:[#allocation7 + $0x148] sm:$0xff]
        %v3337 = vld [vmem:[#allocation7 + $0x150] sm:$0xff]
        %v3338 = vld [vmem:[#allocation7 + $0x158] sm:$0xff]
        %v3339 = vld [vmem:[#allocation7 + $0x160] sm:$0xff]
        %v3340 = vld [vmem:[#allocation7 + $0x168] sm:$0xff]
        %v3341 = vld [vmem:[#allocation7 + $0x170] sm:$0xff]
        %v3342 = vld [vmem:[#allocation7 + $0x178] sm:$0xff]
        %v3343 = vld [vmem:[#allocation7 + $0x180] sm:$0xff]
        %v3344 = vld [vmem:[#allocation7 + $0x188] sm:$0xff]
        %v3345 = vld [vmem:[#allocation7 + $0x190] sm:$0xff]
        %v3346 = vld [vmem:[#allocation7 + $0x198] sm:$0xff]
        %v3347 = vld [vmem:[#allocation7 + $0x1a0] sm:$0xff]
        %v3348 = vld [vmem:[#allocation7 + $0x1a8] sm:$0xff]
        %v3349 = vld [vmem:[#allocation7 + $0x1b0] sm:$0xff]
        %v3350 = vld [vmem:[#allocation7 + $0x1b8] sm:$0xff]
        %v3351 = vld [vmem:[#allocation7 + $0x1c0] sm:$0xff]
        %v3352 = vld [vmem:[#allocation7 + $0x1c8] sm:$0xff]
        %v3353 = vld [vmem:[#allocation7 + $0x1d0] sm:$0xff]
        %v3354 = vld [vmem:[#allocation7 + $0x1d8] sm:$0xff]
        %v3355 = vld [vmem:[#allocation7 + $0x1e0] sm:$0xff]
        %v3356 = vld [vmem:[#allocation7 + $0x1e8] sm:$0xff]
        %v3357 = vld [vmem:[#allocation7 + $0x1f0] sm:$0xff]
        %v3358 = vld [vmem:[#allocation7 + $0x1f8] sm:$0xff]
        %v3359 = vld [vmem:[#allocation7 + $0x200] sm:$0xff]
        %v3360 = vld [vmem:[#allocation7 + $0x208] sm:$0xff]
        %v3361 = vld [vmem:[#allocation7 + $0x210] sm:$0xff]
        %v3362 = vld [vmem:[#allocation7 + $0x218] sm:$0xff]
        %v3363 = vld [vmem:[#allocation7 + $0x220] sm:$0xff]
        %v3364 = vld [vmem:[#allocation7 + $0x228] sm:$0xff]
        %v3365 = vld [vmem:[#allocation7 + $0x230] sm:$0xff]
        %v3366 = vld [vmem:[#allocation7 + $0x238] sm:$0xff]
        %v3367 = vld [vmem:[#allocation7 + $0x240] sm:$0xff]
        %v3368 = vld [vmem:[#allocation7 + $0x248] sm:$0xff]
        %v3369 = vld [vmem:[#allocation7 + $0x250] sm:$0xff]
        %v3370 = vld [vmem:[#allocation7 + $0x258] sm:$0xff]
        %v3371 = vld [vmem:[#allocation7 + $0x260] sm:$0xff]
        %v3372 = vld [vmem:[#allocation7 + $0x268] sm:$0xff]
        %v3373 = vld [vmem:[#allocation7 + $0x270] sm:$0xff]
        %v3374 = vld [vmem:[#allocation7 + $0x278] sm:$0xff]
        %v3375 = vld [vmem:[#allocation7 + $0x280] sm:$0xff]
        %v3376 = vld [vmem:[#allocation7 + $0x288] sm:$0xff]
        %v3377 = vld [vmem:[#allocation7 + $0x290] sm:$0xff]
        %v3378 = vld [vmem:[#allocation7 + $0x298] sm:$0xff]
        %v3379 = vld [vmem:[#allocation7 + $0x2a0] sm:$0xff]
        %v3380 = vld [vmem:[#allocation7 + $0x2a8] sm:$0xff]
        %v3381 = vld [vmem:[#allocation7 + $0x2b0] sm:$0xff]
        %v3382 = vld [vmem:[#allocation7 + $0x2b8] sm:$0xff]
        %v3383 = vld [vmem:[#allocation7 + $0x2c0] sm:$0xff]
        %v3384 = vld [vmem:[#allocation7 + $0x2c8] sm:$0xff]
        %v3385 = vld [vmem:[#allocation7 + $0x2d0] sm:$0xff]
        %v3386 = vld [vmem:[#allocation7 + $0x2d8] sm:$0xff]
        %v3387 = vld [vmem:[#allocation7 + $0x2e0] sm:$0xff]
        %v3388 = vld [vmem:[#allocation7 + $0x2e8] sm:$0xff]
        %v3389 = vld [vmem:[#allocation7 + $0x2f0] sm:$0xff]
        %v3390 = vld [vmem:[#allocation7 + $0x2f8] sm:$0xff]
        %v3391 = vld [vmem:[#allocation7 + $0x300] sm:$0xff]
        %v3392 = vld [vmem:[#allocation7 + $0x308] sm:$0xff]
        %v3393 = vld [vmem:[#allocation7 + $0x310] sm:$0xff]
        %v3394 = vld [vmem:[#allocation7 + $0x318] sm:$0xff]
        %v3395 = vld [vmem:[#allocation7 + $0x320] sm:$0xff]
        %v3396 = vld [vmem:[#allocation7 + $0x328] sm:$0xff]
        %v3397 = vld [vmem:[#allocation7 + $0x330] sm:$0xff]
        %v3398 = vld [vmem:[#allocation7 + $0x338] sm:$0xff]
        %v3399 = vld [vmem:[#allocation7 + $0x340] sm:$0xff]
        %v3400 = vld [vmem:[#allocation7 + $0x348] sm:$0xff]
        %v3401 = vld [vmem:[#allocation7 + $0x350] sm:$0xff]
        %v3402 = vld [vmem:[#allocation7 + $0x358] sm:$0xff]
        %v3403 = vld [vmem:[#allocation7 + $0x360] sm:$0xff]
        %v3404 = vld [vmem:[#allocation7 + $0x368] sm:$0xff]
        %v3405 = vld [vmem:[#allocation7 + $0x370] sm:$0xff]
        %v3406 = vld [vmem:[#allocation7 + $0x378] sm:$0xff]
        %v3407 = vld [vmem:[#allocation7 + $0x380] sm:$0xff]
        %v3408 = vld [vmem:[#allocation7 + $0x388] sm:$0xff]
        %v3409 = vld [vmem:[#allocation7 + $0x390] sm:$0xff]
        %v3410 = vld [vmem:[#allocation7 + $0x398] sm:$0xff]
        %v3411 = vld [vmem:[#allocation7 + $0x3a0] sm:$0xff]
        %v3412 = vld [vmem:[#allocation7 + $0x3a8] sm:$0xff]
        %v3413 = vld [vmem:[#allocation7 + $0x3b0] sm:$0xff]
        %v3414 = vld [vmem:[#allocation7 + $0x3b8] sm:$0xff]
        %v3415 = vld [vmem:[#allocation7 + $0x3c0] sm:$0xff]
        %v3416 = vld [vmem:[#allocation7 + $0x3c8] sm:$0xff]
        %v3417 = vld [vmem:[#allocation7 + $0x3d0] sm:$0xff]
        %v3418 = vld [vmem:[#allocation7 + $0x3d8] sm:$0xff]
        %v3419 = vld [vmem:[#allocation7 + $0x3e0] sm:$0xff]
        %v3420 = vld [vmem:[#allocation7 + $0x3e8] sm:$0xff]
        %v3421 = vld [vmem:[#allocation7 + $0x3f0] sm:$0xff]
        %v3422 = vld [vmem:[#allocation7 + $0x3f8] sm:$0xff]
        %v3423 = vld [vmem:[#allocation7 + $0x400] sm:$0xff]
        %v3424 = vld [vmem:[#allocation7 + $0x408] sm:$0xff]
        %v3425 = vld [vmem:[#allocation7 + $0x410] sm:$0xff]
        %v3426 = vld [vmem:[#allocation7 + $0x418] sm:$0xff]
        %v3427 = vld [vmem:[#allocation7 + $0x420] sm:$0xff]
        %v3428 = vld [vmem:[#allocation7 + $0x428] sm:$0xff]
        %v3429 = vld [vmem:[#allocation7 + $0x430] sm:$0xff]
        %v3430 = vld [vmem:[#allocation7 + $0x438] sm:$0xff]
        %v3431 = vld [vmem:[#allocation7 + $0x440] sm:$0xff]
        %v3432 = vld [vmem:[#allocation7 + $0x448] sm:$0xff]
        %v3433 = vld [vmem:[#allocation7 + $0x450] sm:$0xff]
        %v3434 = vld [vmem:[#allocation7 + $0x458] sm:$0xff]
        %v3435 = vld [vmem:[#allocation7 + $0x460] sm:$0xff]
        %v3436 = vld [vmem:[#allocation7 + $0x468] sm:$0xff]
        %v3437 = vld [vmem:[#allocation7 + $0x470] sm:$0xff]
        %v3438 = vld [vmem:[#allocation7 + $0x478] sm:$0xff]
        %v3439 = vld [vmem:[#allocation7 + $0x480] sm:$0xff]
        %v3440 = vld [vmem:[#allocation7 + $0x488] sm:$0xff]
        %v3441 = vld [vmem:[#allocation7 + $0x490] sm:$0xff]
        %v3442 = vld [vmem:[#allocation7 + $0x498] sm:$0xff]
        %v3443 = vld [vmem:[#allocation7 + $0x4a0] sm:$0xff]
        %v3444 = vld [vmem:[#allocation7 + $0x4a8] sm:$0xff]
        %v3445 = vld [vmem:[#allocation7 + $0x4b0] sm:$0xff]
        %v3446 = vld [vmem:[#allocation7 + $0x4b8] sm:$0xff]
        %v3447 = vld [vmem:[#allocation7 + $0x4c0] sm:$0xff]
        %v3448 = vld [vmem:[#allocation7 + $0x4c8] sm:$0xff]
        %v3449 = vld [vmem:[#allocation7 + $0x4d0] sm:$0xff]
        %v3450 = vld [vmem:[#allocation7 + $0x4d8] sm:$0xff]
        %v3451 = vld [vmem:[#allocation7 + $0x4e0] sm:$0xff]
        %v3452 = vld [vmem:[#allocation7 + $0x4e8] sm:$0xff]
        %v3453 = vld [vmem:[#allocation7 + $0x4f0] sm:$0xff]
        %v3454 = vld [vmem:[#allocation7 + $0x4f8] sm:$0xff]
        %v3455 = vld [vmem:[#allocation7 + $0x500] sm:$0xff]
        %v3456 = vld [vmem:[#allocation7 + $0x508] sm:$0xff]
        %v3457 = vld [vmem:[#allocation7 + $0x510] sm:$0xff]
        %v3458 = vld [vmem:[#allocation7 + $0x518] sm:$0xff]
        %v3459 = vld [vmem:[#allocation7 + $0x520] sm:$0xff]
        %v3460 = vld [vmem:[#allocation7 + $0x528] sm:$0xff]
        %v3461 = vld [vmem:[#allocation7 + $0x530] sm:$0xff]
        %v3462 = vld [vmem:[#allocation7 + $0x538] sm:$0xff]
        %v3463 = vld [vmem:[#allocation7 + $0x540] sm:$0xff]
        %v3464 = vld [vmem:[#allocation7 + $0x548] sm:$0xff]
        %v3465 = vld [vmem:[#allocation7 + $0x550] sm:$0xff]
        %v3466 = vld [vmem:[#allocation7 + $0x558] sm:$0xff]
        %v3467 = vld [vmem:[#allocation7 + $0x560] sm:$0xff]
        %v3468 = vld [vmem:[#allocation7 + $0x568] sm:$0xff]
        %v3469 = vld [vmem:[#allocation7 + $0x570] sm:$0xff]
        %v3470 = vld [vmem:[#allocation7 + $0x578] sm:$0xff]
        %v3471 = vld [vmem:[#allocation7 + $0x580] sm:$0xff]
        %v3472 = vld [vmem:[#allocation7 + $0x588] sm:$0xff]
        %v3473 = vld [vmem:[#allocation7 + $0x590] sm:$0xff]
        %v3474 = vld [vmem:[#allocation7 + $0x598] sm:$0xff]
        %v3475 = vld [vmem:[#allocation7 + $0x5a0] sm:$0xff]
        %v3476 = vld [vmem:[#allocation7 + $0x5a8] sm:$0xff]
        %v3477 = vld [vmem:[#allocation7 + $0x5b0] sm:$0xff]
        %v3478 = vld [vmem:[#allocation7 + $0x5b8] sm:$0xff]
        %v3479 = vld [vmem:[#allocation7 + $0x5c0] sm:$0xff]
        %v3480 = vld [vmem:[#allocation7 + $0x5c8] sm:$0xff]
        %v3481 = vld [vmem:[#allocation7 + $0x5d0] sm:$0xff]
        %v3482 = vld [vmem:[#allocation7 + $0x5d8] sm:$0xff]
        %v3483 = vld [vmem:[#allocation7 + $0x5e0] sm:$0xff]
        %v3484 = vld [vmem:[#allocation7 + $0x5e8] sm:$0xff]
        %v3485 = vld [vmem:[#allocation7 + $0x5f0] sm:$0xff]
        %v3486 = vld [vmem:[#allocation7 + $0x5f8] sm:$0xff]
        %v3487 = vld [vmem:[#allocation7 + $0x600] sm:$0xff]
        %v3488 = vld [vmem:[#allocation7 + $0x608] sm:$0xff]
        %v3489 = vld [vmem:[#allocation7 + $0x610] sm:$0xff]
        %v3490 = vld [vmem:[#allocation7 + $0x618] sm:$0xff]
        %v3491 = vld [vmem:[#allocation7 + $0x620] sm:$0xff]
        %v3492 = vld [vmem:[#allocation7 + $0x628] sm:$0xff]
        %v3493 = vld [vmem:[#allocation7 + $0x630] sm:$0xff]
        %v3494 = vld [vmem:[#allocation7 + $0x638] sm:$0xff]
        %v3495 = vld [vmem:[#allocation7 + $0x640] sm:$0xff]
        %v3496 = vld [vmem:[#allocation7 + $0x648] sm:$0xff]
        %v3497 = vld [vmem:[#allocation7 + $0x650] sm:$0xff]
        %v3498 = vld [vmem:[#allocation7 + $0x658] sm:$0xff]
        %v3499 = vld [vmem:[#allocation7 + $0x660] sm:$0xff]
        %v3500 = vld [vmem:[#allocation7 + $0x668] sm:$0xff]
        %v3501 = vld [vmem:[#allocation7 + $0x670] sm:$0xff]
        %v3502 = vld [vmem:[#allocation7 + $0x678] sm:$0xff]
        %v3503 = vld [vmem:[#allocation7 + $0x680] sm:$0xff]
        %v3504 = vld [vmem:[#allocation7 + $0x688] sm:$0xff]
        %v3505 = vld [vmem:[#allocation7 + $0x690] sm:$0xff]
        %v3506 = vld [vmem:[#allocation7 + $0x698] sm:$0xff]
        %v3507 = vld [vmem:[#allocation7 + $0x6a0] sm:$0xff]
        %v3508 = vld [vmem:[#allocation7 + $0x6a8] sm:$0xff]
        %v3509 = vld [vmem:[#allocation7 + $0x6b0] sm:$0xff]
        %v3510 = vld [vmem:[#allocation7 + $0x6b8] sm:$0xff]
        %v3511 = vld [vmem:[#allocation7 + $0x6c0] sm:$0xff]
        %v3512 = vld [vmem:[#allocation7 + $0x6c8] sm:$0xff]
        %v3513 = vld [vmem:[#allocation7 + $0x6d0] sm:$0xff]
        %v3514 = vld [vmem:[#allocation7 + $0x6d8] sm:$0xff]
        %v3515 = vld [vmem:[#allocation7 + $0x6e0] sm:$0xff]
        %v3516 = vld [vmem:[#allocation7 + $0x6e8] sm:$0xff]
        %v3517 = vld [vmem:[#allocation7 + $0x6f0] sm:$0xff]
        %v3518 = vld [vmem:[#allocation7 + $0x6f8] sm:$0xff]
        %v3519 = vld [vmem:[#allocation7 + $0x700] sm:$0xff]
        %v3520 = vld [vmem:[#allocation7 + $0x708] sm:$0xff]
        %v3521 = vld [vmem:[#allocation7 + $0x710] sm:$0xff]
        %v3522 = vld [vmem:[#allocation7 + $0x718] sm:$0xff]
        %v3523 = vld [vmem:[#allocation7 + $0x720] sm:$0xff]
        %v3524 = vld [vmem:[#allocation7 + $0x728] sm:$0xff]
        %v3525 = vld [vmem:[#allocation7 + $0x730] sm:$0xff]
        %v3526 = vld [vmem:[#allocation7 + $0x738] sm:$0xff]
        %v3527 = vld [vmem:[#allocation7 + $0x740] sm:$0xff]
        %v3528 = vld [vmem:[#allocation7 + $0x748] sm:$0xff]
        %v3529 = vld [vmem:[#allocation7 + $0x750] sm:$0xff]
        %v3530 = vld [vmem:[#allocation7 + $0x758] sm:$0xff]
        %v3531 = vld [vmem:[#allocation7 + $0x760] sm:$0xff]
        %v3532 = vld [vmem:[#allocation7 + $0x768] sm:$0xff]
        %v3533 = vld [vmem:[#allocation7 + $0x770] sm:$0xff]
        %v3534 = vld [vmem:[#allocation7 + $0x778] sm:$0xff]
        %v3535 = vld [vmem:[#allocation7 + $0x780] sm:$0xff]
        %v3536 = vld [vmem:[#allocation7 + $0x788] sm:$0xff]
        %v3537 = vld [vmem:[#allocation7 + $0x790] sm:$0xff]
        %v3538 = vld [vmem:[#allocation7 + $0x798] sm:$0xff]
        %v3539 = vld [vmem:[#allocation7 + $0x7a0] sm:$0xff]
        %v3540 = vld [vmem:[#allocation7 + $0x7a8] sm:$0xff]
        %v3541 = vld [vmem:[#allocation7 + $0x7b0] sm:$0xff]
        %v3542 = vld [vmem:[#allocation7 + $0x7b8] sm:$0xff]
        %v3543 = vld [vmem:[#allocation7 + $0x7c0] sm:$0xff]
        %v3544 = vld [vmem:[#allocation7 + $0x7c8] sm:$0xff]
        %v3545 = vld [vmem:[#allocation7 + $0x7d0] sm:$0xff]
        %v3546 = vld [vmem:[#allocation7 + $0x7d8] sm:$0xff]
        %v3547 = vld [vmem:[#allocation7 + $0x7e0] sm:$0xff]
        %v3548 = vld [vmem:[#allocation7 + $0x7e8] sm:$0xff]
        %v3549 = vld [vmem:[#allocation7 + $0x7f0] sm:$0xff]
        %v3550 = vld [vmem:[#allocation7 + $0x7f8] sm:$0xff]
        %v3551 = vld [vmem:[#allocation7 + $0x800] sm:$0xff]
        %v3552 = vld [vmem:[#allocation7 + $0x808] sm:$0xff]
        %v3553 = vld [vmem:[#allocation7 + $0x810] sm:$0xff]
        %v3554 = vld [vmem:[#allocation7 + $0x818] sm:$0xff]
        %v3555 = vld [vmem:[#allocation7 + $0x820] sm:$0xff]
        %v3556 = vld [vmem:[#allocation7 + $0x828] sm:$0xff]
        %v3557 = vld [vmem:[#allocation7 + $0x830] sm:$0xff]
        %v3558 = vld [vmem:[#allocation7 + $0x838] sm:$0xff]
        %v3559 = vld [vmem:[#allocation7 + $0x840] sm:$0xff]
        %v3560 = vld [vmem:[#allocation7 + $0x848] sm:$0xff]
        %v3561 = vld [vmem:[#allocation7 + $0x850] sm:$0xff]
        %v3562 = vld [vmem:[#allocation7 + $0x858] sm:$0xff]
        %v3563 = vld [vmem:[#allocation7 + $0x860] sm:$0xff]
        %v3564 = vld [vmem:[#allocation7 + $0x868] sm:$0xff]
        %v3565 = vld [vmem:[#allocation7 + $0x870] sm:$0xff]
        %v3566 = vld [vmem:[#allocation7 + $0x878] sm:$0xff]
        %v3567 = vld [vmem:[#allocation7 + $0x880] sm:$0xff]
        %v3568 = vld [vmem:[#allocation7 + $0x888] sm:$0xff]
        %v3569 = vld [vmem:[#allocation7 + $0x890] sm:$0xff]
        %v3570 = vld [vmem:[#allocation7 + $0x898] sm:$0xff]
        %v3571 = vld [vmem:[#allocation7 + $0x8a0] sm:$0xff]
        %v3572 = vld [vmem:[#allocation7 + $0x8a8] sm:$0xff]
        %v3573 = vld [vmem:[#allocation7 + $0x8b0] sm:$0xff]
        %v3574 = vld [vmem:[#allocation7 + $0x8b8] sm:$0xff]
        %v3575 = vld [vmem:[#allocation7 + $0x8c0] sm:$0xff]
        %v3576 = vld [vmem:[#allocation7 + $0x8c8] sm:$0xff]
        %v3577 = vld [vmem:[#allocation7 + $0x8d0] sm:$0xff]
        %v3578 = vld [vmem:[#allocation7 + $0x8d8] sm:$0xff]
        %v3579 = vld [vmem:[#allocation7 + $0x8e0] sm:$0xff]
        %v3580 = vld [vmem:[#allocation7 + $0x8e8] sm:$0xff]
        %v3581 = vld [vmem:[#allocation7 + $0x8f0] sm:$0xff]
        %v3582 = vld [vmem:[#allocation7 + $0x8f8] sm:$0xff]
        %v3583 = vld [vmem:[#allocation8] sm:$0x3f]
        %v3585 = vlaneseq
        %v3586 = vshrl.u32 %v3585, 7
        %v3587 = vsub.s32 0, %v3586
        %v3588 = vrot.slane %v3583, %v3587
        %v3589 = vlaneseq
        %v3590 = vshrl.u32 %v3589, 7
        %v3591 = vsub.s32 1, %v3590
        %v3592 = vrot.slane %v3583, %v3591
        %v3593 = vlaneseq
        %v3594 = vshrl.u32 %v3593, 7
        %v3595 = vsub.s32 2, %v3594
        %v3596 = vrot.slane %v3583, %v3595
        %v3597 = vlaneseq
        %v3598 = vshrl.u32 %v3597, 7
        %v3599 = vsub.s32 3, %v3598
        %v3600 = vrot.slane %v3583, %v3599
        %v3601 = vlaneseq
        %v3602 = vshrl.u32 %v3601, 7
        %v3603 = vsub.s32 4, %v3602
        %v3604 = vrot.slane %v3583, %v3603
        %v3605 = vlaneseq
        %v3606 = vshrl.u32 %v3605, 7
        %v3607 = vsub.s32 5, %v3606
        %v3608 = vrot.slane %v3583, %v3607
        %v3903 = vunpack.c.l.b16 %v3295
        %v3904 = vunpack.c.h.b16 %v3295
        %v3905 = vunpack.c.l.b16 %v3296
        %v3906 = vunpack.c.h.b16 %v3296
        %v3907 = vunpack.c.l.b16 %v3297
        %v3908 = vunpack.c.h.b16 %v3297
        %v3909 = vunpack.c.l.b16 %v3298
        %v3910 = vunpack.c.h.b16 %v3298
        %v3911 = vunpack.c.l.b16 %v3299
        %v3912 = vunpack.c.h.b16 %v3299
        %v3913 = vunpack.c.l.b16 %v3300
        %v3914 = vunpack.c.h.b16 %v3300
        %v3915 = vunpack.c.l.b16 %v3301
        %v3916 = vunpack.c.h.b16 %v3301
        %v3917 = vunpack.c.l.b16 %v3302
        %v3918 = vunpack.c.h.b16 %v3302
        %v3919 = vunpack.c.l.b16 %v3303
        %v3920 = vunpack.c.h.b16 %v3303
        %v3921 = vunpack.c.l.b16 %v3304
        %v3922 = vunpack.c.h.b16 %v3304
        %v3923 = vunpack.c.l.b16 %v3305
        %v3924 = vunpack.c.h.b16 %v3305
        %v3925 = vunpack.c.l.b16 %v3306
        %v3926 = vunpack.c.h.b16 %v3306
        %v3927 = vunpack.c.l.b16 %v3307
        %v3928 = vunpack.c.h.b16 %v3307
        %v3929 = vunpack.c.l.b16 %v3308
        %v3930 = vunpack.c.h.b16 %v3308
        %v3931 = vunpack.c.l.b16 %v3309
        %v3932 = vunpack.c.h.b16 %v3309
        %v3933 = vunpack.c.l.b16 %v3310
        %v3934 = vunpack.c.h.b16 %v3310
        %v3935 = vunpack.c.l.b16 %v3311
        %v3936 = vunpack.c.h.b16 %v3311
        %v3937 = vunpack.c.l.b16 %v3312
        %v3938 = vunpack.c.h.b16 %v3312
        %v3939 = vunpack.c.l.b16 %v3313
        %v3940 = vunpack.c.h.b16 %v3313
        %v3941 = vunpack.c.l.b16 %v3314
        %v3942 = vunpack.c.h.b16 %v3314
        %v3943 = vunpack.c.l.b16 %v3315
        %v3944 = vunpack.c.h.b16 %v3315
        %v3945 = vunpack.c.l.b16 %v3316
        %v3946 = vunpack.c.h.b16 %v3316
        %v3947 = vunpack.c.l.b16 %v3317
        %v3948 = vunpack.c.h.b16 %v3317
        %v3949 = vunpack.c.l.b16 %v3318
        %v3950 = vunpack.c.h.b16 %v3318
        %v3951 = vunpack.c.l.b16 %v3319
        %v3952 = vunpack.c.h.b16 %v3319
        %v3953 = vunpack.c.l.b16 %v3320
        %v3954 = vunpack.c.h.b16 %v3320
        %v3955 = vunpack.c.l.b16 %v3321
        %v3956 = vunpack.c.h.b16 %v3321
        %v3957 = vunpack.c.l.b16 %v3322
        %v3958 = vunpack.c.h.b16 %v3322
        %v3959 = vunpack.c.l.b16 %v3323
        %v3960 = vunpack.c.h.b16 %v3323
        %v3961 = vunpack.c.l.b16 %v3324
        %v3962 = vunpack.c.h.b16 %v3324
        %v3963 = vunpack.c.l.b16 %v3325
        %v3964 = vunpack.c.h.b16 %v3325
        %v3965 = vunpack.c.l.b16 %v3326
        %v3966 = vunpack.c.h.b16 %v3326
        %v3967 = vunpack.c.l.b16 %v3327
        %v3968 = vunpack.c.h.b16 %v3327
        %v3969 = vunpack.c.l.b16 %v3328
        %v3970 = vunpack.c.h.b16 %v3328
        %v3971 = vunpack.c.l.b16 %v3329
        %v3972 = vunpack.c.h.b16 %v3329
        %v3973 = vunpack.c.l.b16 %v3330
        %v3974 = vunpack.c.h.b16 %v3330
        %v3975 = vunpack.c.l.b16 %v3331
        %v3976 = vunpack.c.h.b16 %v3331
        %v3977 = vunpack.c.l.b16 %v3332
        %v3978 = vunpack.c.h.b16 %v3332
        %v3979 = vunpack.c.l.b16 %v3333
        %v3980 = vunpack.c.h.b16 %v3333
        %v3981 = vunpack.c.l.b16 %v3334
        %v3982 = vunpack.c.h.b16 %v3334
        %v3983 = vunpack.c.l.b16 %v3335
        %v3984 = vunpack.c.h.b16 %v3335
        %v3985 = vunpack.c.l.b16 %v3336
        %v3986 = vunpack.c.h.b16 %v3336
        %v3987 = vunpack.c.l.b16 %v3337
        %v3988 = vunpack.c.h.b16 %v3337
        %v3989 = vunpack.c.l.b16 %v3338
        %v3990 = vunpack.c.h.b16 %v3338
        %v3991 = vunpack.c.l.b16 %v3339
        %v3992 = vunpack.c.h.b16 %v3339
        %v3993 = vunpack.c.l.b16 %v3340
        %v3994 = vunpack.c.h.b16 %v3340
        %v3995 = vunpack.c.l.b16 %v3341
        %v3996 = vunpack.c.h.b16 %v3341
        %v3997 = vunpack.c.l.b16 %v3342
        %v3998 = vunpack.c.h.b16 %v3342
        %v3999 = vunpack.c.l.b16 %v3343
        %v4000 = vunpack.c.h.b16 %v3343
        %v4001 = vunpack.c.l.b16 %v3344
        %v4002 = vunpack.c.h.b16 %v3344
        %v4003 = vunpack.c.l.b16 %v3345
        %v4004 = vunpack.c.h.b16 %v3345
        %v4005 = vunpack.c.l.b16 %v3346
        %v4006 = vunpack.c.h.b16 %v3346
        %v4007 = vunpack.c.l.b16 %v3347
        %v4008 = vunpack.c.h.b16 %v3347
        %v4009 = vunpack.c.l.b16 %v3348
        %v4010 = vunpack.c.h.b16 %v3348
        %v4011 = vunpack.c.l.b16 %v3349
        %v4012 = vunpack.c.h.b16 %v3349
        %v4013 = vunpack.c.l.b16 %v3350
        %v4014 = vunpack.c.h.b16 %v3350
        %v4015 = vunpack.c.l.b16 %v3351
        %v4016 = vunpack.c.h.b16 %v3351
        %v4017 = vunpack.c.l.b16 %v3352
        %v4018 = vunpack.c.h.b16 %v3352
        %v4019 = vunpack.c.l.b16 %v3353
        %v4020 = vunpack.c.h.b16 %v3353
        %v4021 = vunpack.c.l.b16 %v3354
        %v4022 = vunpack.c.h.b16 %v3354
        %v4023 = vunpack.c.l.b16 %v3355
        %v4024 = vunpack.c.h.b16 %v3355
        %v4025 = vunpack.c.l.b16 %v3356
        %v4026 = vunpack.c.h.b16 %v3356
        %v4027 = vunpack.c.l.b16 %v3357
        %v4028 = vunpack.c.h.b16 %v3357
        %v4029 = vunpack.c.l.b16 %v3358
        %v4030 = vunpack.c.h.b16 %v3358
        %v4031 = vunpack.c.l.b16 %v3359
        %v4032 = vunpack.c.h.b16 %v3359
        %v4033 = vunpack.c.l.b16 %v3360
        %v4034 = vunpack.c.h.b16 %v3360
        %v4035 = vunpack.c.l.b16 %v3361
        %v4036 = vunpack.c.h.b16 %v3361
        %v4037 = vunpack.c.l.b16 %v3362
        %v4038 = vunpack.c.h.b16 %v3362
        %v4039 = vunpack.c.l.b16 %v3363
        %v4040 = vunpack.c.h.b16 %v3363
        %v4041 = vunpack.c.l.b16 %v3364
        %v4042 = vunpack.c.h.b16 %v3364
        %v4043 = vunpack.c.l.b16 %v3365
        %v4044 = vunpack.c.h.b16 %v3365
        %v4045 = vunpack.c.l.b16 %v3366
        %v4046 = vunpack.c.h.b16 %v3366
        %v4047 = vunpack.c.l.b16 %v3367
        %v4048 = vunpack.c.h.b16 %v3367
        %v4049 = vunpack.c.l.b16 %v3368
        %v4050 = vunpack.c.h.b16 %v3368
        %v4051 = vunpack.c.l.b16 %v3369
        %v4052 = vunpack.c.h.b16 %v3369
        %v4053 = vunpack.c.l.b16 %v3370
        %v4054 = vunpack.c.h.b16 %v3370
        %v4055 = vunpack.c.l.b16 %v3371
        %v4056 = vunpack.c.h.b16 %v3371
        %v4057 = vunpack.c.l.b16 %v3372
        %v4058 = vunpack.c.h.b16 %v3372
        %v4059 = vunpack.c.l.b16 %v3373
        %v4060 = vunpack.c.h.b16 %v3373
        %v4061 = vunpack.c.l.b16 %v3374
        %v4062 = vunpack.c.h.b16 %v3374
        %v4063 = vunpack.c.l.b16 %v3375
        %v4064 = vunpack.c.h.b16 %v3375
        %v4065 = vunpack.c.l.b16 %v3376
        %v4066 = vunpack.c.h.b16 %v3376
        %v4067 = vunpack.c.l.b16 %v3377
        %v4068 = vunpack.c.h.b16 %v3377
        %v4069 = vunpack.c.l.b16 %v3378
        %v4070 = vunpack.c.h.b16 %v3378
        %v4071 = vunpack.c.l.b16 %v3379
        %v4072 = vunpack.c.h.b16 %v3379
        %v4073 = vunpack.c.l.b16 %v3380
        %v4074 = vunpack.c.h.b16 %v3380
        %v4075 = vunpack.c.l.b16 %v3381
        %v4076 = vunpack.c.h.b16 %v3381
        %v4077 = vunpack.c.l.b16 %v3382
        %v4078 = vunpack.c.h.b16 %v3382
        %v4079 = vunpack.c.l.b16 %v3383
        %v4080 = vunpack.c.h.b16 %v3383
        %v4081 = vunpack.c.l.b16 %v3384
        %v4082 = vunpack.c.h.b16 %v3384
        %v4083 = vunpack.c.l.b16 %v3385
        %v4084 = vunpack.c.h.b16 %v3385
        %v4085 = vunpack.c.l.b16 %v3386
        %v4086 = vunpack.c.h.b16 %v3386
        %v4087 = vunpack.c.l.b16 %v3387
        %v4088 = vunpack.c.h.b16 %v3387
        %v4089 = vunpack.c.l.b16 %v3388
        %v4090 = vunpack.c.h.b16 %v3388
        %v4091 = vunpack.c.l.b16 %v3389
        %v4092 = vunpack.c.h.b16 %v3389
        %v4093 = vunpack.c.l.b16 %v3390
        %v4094 = vunpack.c.h.b16 %v3390
        %v4095 = vunpack.c.l.b16 %v3391
        %v4096 = vunpack.c.h.b16 %v3391
        %v4097 = vunpack.c.l.b16 %v3392
        %v4098 = vunpack.c.h.b16 %v3392
        %v4099 = vunpack.c.l.b16 %v3393
        %v4100 = vunpack.c.h.b16 %v3393
        %v4101 = vunpack.c.l.b16 %v3394
        %v4102 = vunpack.c.h.b16 %v3394
        %v4103 = vunpack.c.l.b16 %v3395
        %v4104 = vunpack.c.h.b16 %v3395
        %v4105 = vunpack.c.l.b16 %v3396
        %v4106 = vunpack.c.h.b16 %v3396
        %v4107 = vunpack.c.l.b16 %v3397
        %v4108 = vunpack.c.h.b16 %v3397
        %v4109 = vunpack.c.l.b16 %v3398
        %v4110 = vunpack.c.h.b16 %v3398
        %v4111 = vunpack.c.l.b16 %v3399
        %v4112 = vunpack.c.h.b16 %v3399
        %v4113 = vunpack.c.l.b16 %v3400
        %v4114 = vunpack.c.h.b16 %v3400
        %v4115 = vunpack.c.l.b16 %v3401
        %v4116 = vunpack.c.h.b16 %v3401
        %v4117 = vunpack.c.l.b16 %v3402
        %v4118 = vunpack.c.h.b16 %v3402
        %v4119 = vunpack.c.l.b16 %v3403
        %v4120 = vunpack.c.h.b16 %v3403
        %v4121 = vunpack.c.l.b16 %v3404
        %v4122 = vunpack.c.h.b16 %v3404
        %v4123 = vunpack.c.l.b16 %v3405
        %v4124 = vunpack.c.h.b16 %v3405
        %v4125 = vunpack.c.l.b16 %v3406
        %v4126 = vunpack.c.h.b16 %v3406
        %v4127 = vunpack.c.l.b16 %v3407
        %v4128 = vunpack.c.h.b16 %v3407
        %v4129 = vunpack.c.l.b16 %v3408
        %v4130 = vunpack.c.h.b16 %v3408
        %v4131 = vunpack.c.l.b16 %v3409
        %v4132 = vunpack.c.h.b16 %v3409
        %v4133 = vunpack.c.l.b16 %v3410
        %v4134 = vunpack.c.h.b16 %v3410
        %v4135 = vunpack.c.l.b16 %v3411
        %v4136 = vunpack.c.h.b16 %v3411
        %v4137 = vunpack.c.l.b16 %v3412
        %v4138 = vunpack.c.h.b16 %v3412
        %v4139 = vunpack.c.l.b16 %v3413
        %v4140 = vunpack.c.h.b16 %v3413
        %v4141 = vunpack.c.l.b16 %v3414
        %v4142 = vunpack.c.h.b16 %v3414
        %v4143 = vunpack.c.l.b16 %v3415
        %v4144 = vunpack.c.h.b16 %v3415
        %v4145 = vunpack.c.l.b16 %v3416
        %v4146 = vunpack.c.h.b16 %v3416
        %v4147 = vunpack.c.l.b16 %v3417
        %v4148 = vunpack.c.h.b16 %v3417
        %v4149 = vunpack.c.l.b16 %v3418
        %v4150 = vunpack.c.h.b16 %v3418
        %v4151 = vunpack.c.l.b16 %v3419
        %v4152 = vunpack.c.h.b16 %v3419
        %v4153 = vunpack.c.l.b16 %v3420
        %v4154 = vunpack.c.h.b16 %v3420
        %v4155 = vunpack.c.l.b16 %v3421
        %v4156 = vunpack.c.h.b16 %v3421
        %v4157 = vunpack.c.l.b16 %v3422
        %v4158 = vunpack.c.h.b16 %v3422
        %v4159 = vunpack.c.l.b16 %v3423
        %v4160 = vunpack.c.h.b16 %v3423
        %v4161 = vunpack.c.l.b16 %v3424
        %v4162 = vunpack.c.h.b16 %v3424
        %v4163 = vunpack.c.l.b16 %v3425
        %v4164 = vunpack.c.h.b16 %v3425
        %v4165 = vunpack.c.l.b16 %v3426
        %v4166 = vunpack.c.h.b16 %v3426
        %v4167 = vunpack.c.l.b16 %v3427
        %v4168 = vunpack.c.h.b16 %v3427
        %v4169 = vunpack.c.l.b16 %v3428
        %v4170 = vunpack.c.h.b16 %v3428
        %v4171 = vunpack.c.l.b16 %v3429
        %v4172 = vunpack.c.h.b16 %v3429
        %v4173 = vunpack.c.l.b16 %v3430
        %v4174 = vunpack.c.h.b16 %v3430
        %v4175 = vunpack.c.l.b16 %v3431
        %v4176 = vunpack.c.h.b16 %v3431
        %v4177 = vunpack.c.l.b16 %v3432
        %v4178 = vunpack.c.h.b16 %v3432
        %v4179 = vunpack.c.l.b16 %v3433
        %v4180 = vunpack.c.h.b16 %v3433
        %v4181 = vunpack.c.l.b16 %v3434
        %v4182 = vunpack.c.h.b16 %v3434
        %v4183 = vunpack.c.l.b16 %v3435
        %v4184 = vunpack.c.h.b16 %v3435
        %v4185 = vunpack.c.l.b16 %v3436
        %v4186 = vunpack.c.h.b16 %v3436
        %v4187 = vunpack.c.l.b16 %v3437
        %v4188 = vunpack.c.h.b16 %v3437
        %v4189 = vunpack.c.l.b16 %v3438
        %v4190 = vunpack.c.h.b16 %v3438
        %v4191 = vunpack.c.l.b16 %v3439
        %v4192 = vunpack.c.h.b16 %v3439
        %v4193 = vunpack.c.l.b16 %v3440
        %v4194 = vunpack.c.h.b16 %v3440
        %v4195 = vunpack.c.l.b16 %v3441
        %v4196 = vunpack.c.h.b16 %v3441
        %v4197 = vunpack.c.l.b16 %v3442
        %v4198 = vunpack.c.h.b16 %v3442
        %v4199 = vunpack.c.l.b16 %v3443
        %v4200 = vunpack.c.h.b16 %v3443
        %v4201 = vunpack.c.l.b16 %v3444
        %v4202 = vunpack.c.h.b16 %v3444
        %v4203 = vunpack.c.l.b16 %v3445
        %v4204 = vunpack.c.h.b16 %v3445
        %v4205 = vunpack.c.l.b16 %v3446
        %v4206 = vunpack.c.h.b16 %v3446
        %v4207 = vunpack.c.l.b16 %v3447
        %v4208 = vunpack.c.h.b16 %v3447
        %v4209 = vunpack.c.l.b16 %v3448
        %v4210 = vunpack.c.h.b16 %v3448
        %v4211 = vunpack.c.l.b16 %v3449
        %v4212 = vunpack.c.h.b16 %v3449
        %v4213 = vunpack.c.l.b16 %v3450
        %v4214 = vunpack.c.h.b16 %v3450
        %v4215 = vunpack.c.l.b16 %v3451
        %v4216 = vunpack.c.h.b16 %v3451
        %v4217 = vunpack.c.l.b16 %v3452
        %v4218 = vunpack.c.h.b16 %v3452
        %v4219 = vunpack.c.l.b16 %v3453
        %v4220 = vunpack.c.h.b16 %v3453
        %v4221 = vunpack.c.l.b16 %v3454
        %v4222 = vunpack.c.h.b16 %v3454
        %v4223 = vunpack.c.l.b16 %v3455
        %v4224 = vunpack.c.h.b16 %v3455
        %v4225 = vunpack.c.l.b16 %v3456
        %v4226 = vunpack.c.h.b16 %v3456
        %v4227 = vunpack.c.l.b16 %v3457
        %v4228 = vunpack.c.h.b16 %v3457
        %v4229 = vunpack.c.l.b16 %v3458
        %v4230 = vunpack.c.h.b16 %v3458
        %v4231 = vunpack.c.l.b16 %v3459
        %v4232 = vunpack.c.h.b16 %v3459
        %v4233 = vunpack.c.l.b16 %v3460
        %v4234 = vunpack.c.h.b16 %v3460
        %v4235 = vunpack.c.l.b16 %v3461
        %v4236 = vunpack.c.h.b16 %v3461
        %v4237 = vunpack.c.l.b16 %v3462
        %v4238 = vunpack.c.h.b16 %v3462
        %v4239 = vunpack.c.l.b16 %v3463
        %v4240 = vunpack.c.h.b16 %v3463
        %v4241 = vunpack.c.l.b16 %v3464
        %v4242 = vunpack.c.h.b16 %v3464
        %v4243 = vunpack.c.l.b16 %v3465
        %v4244 = vunpack.c.h.b16 %v3465
        %v4245 = vunpack.c.l.b16 %v3466
        %v4246 = vunpack.c.h.b16 %v3466
        %v4247 = vunpack.c.l.b16 %v3467
        %v4248 = vunpack.c.h.b16 %v3467
        %v4249 = vunpack.c.l.b16 %v3468
        %v4250 = vunpack.c.h.b16 %v3468
        %v4251 = vunpack.c.l.b16 %v3469
        %v4252 = vunpack.c.h.b16 %v3469
        %v4253 = vunpack.c.l.b16 %v3470
        %v4254 = vunpack.c.h.b16 %v3470
        %v4255 = vunpack.c.l.b16 %v3471
        %v4256 = vunpack.c.h.b16 %v3471
        %v4257 = vunpack.c.l.b16 %v3472
        %v4258 = vunpack.c.h.b16 %v3472
        %v4259 = vunpack.c.l.b16 %v3473
        %v4260 = vunpack.c.h.b16 %v3473
        %v4261 = vunpack.c.l.b16 %v3474
        %v4262 = vunpack.c.h.b16 %v3474
        %v4263 = vunpack.c.l.b16 %v3475
        %v4264 = vunpack.c.h.b16 %v3475
        %v4265 = vunpack.c.l.b16 %v3476
        %v4266 = vunpack.c.h.b16 %v3476
        %v4267 = vunpack.c.l.b16 %v3477
        %v4268 = vunpack.c.h.b16 %v3477
        %v4269 = vunpack.c.l.b16 %v3478
        %v4270 = vunpack.c.h.b16 %v3478
        %v4271 = vunpack.c.l.b16 %v3479
        %v4272 = vunpack.c.h.b16 %v3479
        %v4273 = vunpack.c.l.b16 %v3480
        %v4274 = vunpack.c.h.b16 %v3480
        %v4275 = vunpack.c.l.b16 %v3481
        %v4276 = vunpack.c.h.b16 %v3481
        %v4277 = vunpack.c.l.b16 %v3482
        %v4278 = vunpack.c.h.b16 %v3482
        %v4279 = vunpack.c.l.b16 %v3483
        %v4280 = vunpack.c.h.b16 %v3483
        %v4281 = vunpack.c.l.b16 %v3484
        %v4282 = vunpack.c.h.b16 %v3484
        %v4283 = vunpack.c.l.b16 %v3485
        %v4284 = vunpack.c.h.b16 %v3485
        %v4285 = vunpack.c.l.b16 %v3486
        %v4286 = vunpack.c.h.b16 %v3486
        %v4287 = vunpack.c.l.b16 %v3487
        %v4288 = vunpack.c.h.b16 %v3487
        %v4289 = vunpack.c.l.b16 %v3488
        %v4290 = vunpack.c.h.b16 %v3488
        %v4291 = vunpack.c.l.b16 %v3489
        %v4292 = vunpack.c.h.b16 %v3489
        %v4293 = vunpack.c.l.b16 %v3490
        %v4294 = vunpack.c.h.b16 %v3490
        %v4295 = vunpack.c.l.b16 %v3491
        %v4296 = vunpack.c.h.b16 %v3491
        %v4297 = vunpack.c.l.b16 %v3492
        %v4298 = vunpack.c.h.b16 %v3492
        %v4299 = vunpack.c.l.b16 %v3493
        %v4300 = vunpack.c.h.b16 %v3493
        %v4301 = vunpack.c.l.b16 %v3494
        %v4302 = vunpack.c.h.b16 %v3494
        %v4303 = vunpack.c.l.b16 %v3495
        %v4304 = vunpack.c.h.b16 %v3495
        %v4305 = vunpack.c.l.b16 %v3496
        %v4306 = vunpack.c.h.b16 %v3496
        %v4307 = vunpack.c.l.b16 %v3497
        %v4308 = vunpack.c.h.b16 %v3497
        %v4309 = vunpack.c.l.b16 %v3498
        %v4310 = vunpack.c.h.b16 %v3498
        %v4311 = vunpack.c.l.b16 %v3499
        %v4312 = vunpack.c.h.b16 %v3499
        %v4313 = vunpack.c.l.b16 %v3500
        %v4314 = vunpack.c.h.b16 %v3500
        %v4315 = vunpack.c.l.b16 %v3501
        %v4316 = vunpack.c.h.b16 %v3501
        %v4317 = vunpack.c.l.b16 %v3502
        %v4318 = vunpack.c.h.b16 %v3502
        %v4319 = vunpack.c.l.b16 %v3503
        %v4320 = vunpack.c.h.b16 %v3503
        %v4321 = vunpack.c.l.b16 %v3504
        %v4322 = vunpack.c.h.b16 %v3504
        %v4323 = vunpack.c.l.b16 %v3505
        %v4324 = vunpack.c.h.b16 %v3505
        %v4325 = vunpack.c.l.b16 %v3506
        %v4326 = vunpack.c.h.b16 %v3506
        %v4327 = vunpack.c.l.b16 %v3507
        %v4328 = vunpack.c.h.b16 %v3507
        %v4329 = vunpack.c.l.b16 %v3508
        %v4330 = vunpack.c.h.b16 %v3508
        %v4331 = vunpack.c.l.b16 %v3509
        %v4332 = vunpack.c.h.b16 %v3509
        %v4333 = vunpack.c.l.b16 %v3510
        %v4334 = vunpack.c.h.b16 %v3510
        %v4335 = vunpack.c.l.b16 %v3511
        %v4336 = vunpack.c.h.b16 %v3511
        %v4337 = vunpack.c.l.b16 %v3512
        %v4338 = vunpack.c.h.b16 %v3512
        %v4339 = vunpack.c.l.b16 %v3513
        %v4340 = vunpack.c.h.b16 %v3513
        %v4341 = vunpack.c.l.b16 %v3514
        %v4342 = vunpack.c.h.b16 %v3514
        %v4343 = vunpack.c.l.b16 %v3515
        %v4344 = vunpack.c.h.b16 %v3515
        %v4345 = vunpack.c.l.b16 %v3516
        %v4346 = vunpack.c.h.b16 %v3516
        %v4347 = vunpack.c.l.b16 %v3517
        %v4348 = vunpack.c.h.b16 %v3517
        %v4349 = vunpack.c.l.b16 %v3518
        %v4350 = vunpack.c.h.b16 %v3518
        %v4351 = vunpack.c.l.b16 %v3519
        %v4352 = vunpack.c.h.b16 %v3519
        %v4353 = vunpack.c.l.b16 %v3520
        %v4354 = vunpack.c.h.b16 %v3520
        %v4355 = vunpack.c.l.b16 %v3521
        %v4356 = vunpack.c.h.b16 %v3521
        %v4357 = vunpack.c.l.b16 %v3522
        %v4358 = vunpack.c.h.b16 %v3522
        %v4359 = vunpack.c.l.b16 %v3523
        %v4360 = vunpack.c.h.b16 %v3523
        %v4361 = vunpack.c.l.b16 %v3524
        %v4362 = vunpack.c.h.b16 %v3524
        %v4363 = vunpack.c.l.b16 %v3525
        %v4364 = vunpack.c.h.b16 %v3525
        %v4365 = vunpack.c.l.b16 %v3526
        %v4366 = vunpack.c.h.b16 %v3526
        %v4367 = vunpack.c.l.b16 %v3527
        %v4368 = vunpack.c.h.b16 %v3527
        %v4369 = vunpack.c.l.b16 %v3528
        %v4370 = vunpack.c.h.b16 %v3528
        %v4371 = vunpack.c.l.b16 %v3529
        %v4372 = vunpack.c.h.b16 %v3529
        %v4373 = vunpack.c.l.b16 %v3530
        %v4374 = vunpack.c.h.b16 %v3530
        %v4375 = vunpack.c.l.b16 %v3531
        %v4376 = vunpack.c.h.b16 %v3531
        %v4377 = vunpack.c.l.b16 %v3532
        %v4378 = vunpack.c.h.b16 %v3532
        %v4379 = vunpack.c.l.b16 %v3533
        %v4380 = vunpack.c.h.b16 %v3533
        %v4381 = vunpack.c.l.b16 %v3534
        %v4382 = vunpack.c.h.b16 %v3534
        %v4383 = vunpack.c.l.b16 %v3535
        %v4384 = vunpack.c.h.b16 %v3535
        %v4385 = vunpack.c.l.b16 %v3536
        %v4386 = vunpack.c.h.b16 %v3536
        %v4387 = vunpack.c.l.b16 %v3537
        %v4388 = vunpack.c.h.b16 %v3537
        %v4389 = vunpack.c.l.b16 %v3538
        %v4390 = vunpack.c.h.b16 %v3538
        %v4391 = vunpack.c.l.b16 %v3539
        %v4392 = vunpack.c.h.b16 %v3539
        %v4393 = vunpack.c.l.b16 %v3540
        %v4394 = vunpack.c.h.b16 %v3540
        %v4395 = vunpack.c.l.b16 %v3541
        %v4396 = vunpack.c.h.b16 %v3541
        %v4397 = vunpack.c.l.b16 %v3542
        %v4398 = vunpack.c.h.b16 %v3542
        %v4399 = vunpack.c.l.b16 %v3543
        %v4400 = vunpack.c.h.b16 %v3543
        %v4401 = vunpack.c.l.b16 %v3544
        %v4402 = vunpack.c.h.b16 %v3544
        %v4403 = vunpack.c.l.b16 %v3545
        %v4404 = vunpack.c.h.b16 %v3545
        %v4405 = vunpack.c.l.b16 %v3546
        %v4406 = vunpack.c.h.b16 %v3546
        %v4407 = vunpack.c.l.b16 %v3547
        %v4408 = vunpack.c.h.b16 %v3547
        %v4409 = vunpack.c.l.b16 %v3548
        %v4410 = vunpack.c.h.b16 %v3548
        %v4411 = vunpack.c.l.b16 %v3549
        %v4412 = vunpack.c.h.b16 %v3549
        %v4413 = vunpack.c.l.b16 %v3550
        %v4414 = vunpack.c.h.b16 %v3550
        %v4415 = vunpack.c.l.b16 %v3551
        %v4416 = vunpack.c.h.b16 %v3551
        %v4417 = vunpack.c.l.b16 %v3552
        %v4418 = vunpack.c.h.b16 %v3552
        %v4419 = vunpack.c.l.b16 %v3553
        %v4420 = vunpack.c.h.b16 %v3553
        %v4421 = vunpack.c.l.b16 %v3554
        %v4422 = vunpack.c.h.b16 %v3554
        %v4423 = vunpack.c.l.b16 %v3555
        %v4424 = vunpack.c.h.b16 %v3555
        %v4425 = vunpack.c.l.b16 %v3556
        %v4426 = vunpack.c.h.b16 %v3556
        %v4427 = vunpack.c.l.b16 %v3557
        %v4428 = vunpack.c.h.b16 %v3557
        %v4429 = vunpack.c.l.b16 %v3558
        %v4430 = vunpack.c.h.b16 %v3558
        %v4431 = vunpack.c.l.b16 %v3559
        %v4432 = vunpack.c.h.b16 %v3559
        %v4433 = vunpack.c.l.b16 %v3560
        %v4434 = vunpack.c.h.b16 %v3560
        %v4435 = vunpack.c.l.b16 %v3561
        %v4436 = vunpack.c.h.b16 %v3561
        %v4437 = vunpack.c.l.b16 %v3562
        %v4438 = vunpack.c.h.b16 %v3562
        %v4439 = vunpack.c.l.b16 %v3563
        %v4440 = vunpack.c.h.b16 %v3563
        %v4441 = vunpack.c.l.b16 %v3564
        %v4442 = vunpack.c.h.b16 %v3564
        %v4443 = vunpack.c.l.b16 %v3565
        %v4444 = vunpack.c.h.b16 %v3565
        %v4445 = vunpack.c.l.b16 %v3566
        %v4446 = vunpack.c.h.b16 %v3566
        %v4447 = vunpack.c.l.b16 %v3567
        %v4448 = vunpack.c.h.b16 %v3567
        %v4449 = vunpack.c.l.b16 %v3568
        %v4450 = vunpack.c.h.b16 %v3568
        %v4451 = vunpack.c.l.b16 %v3569
        %v4452 = vunpack.c.h.b16 %v3569
        %v4453 = vunpack.c.l.b16 %v3570
        %v4454 = vunpack.c.h.b16 %v3570
        %v4455 = vunpack.c.l.b16 %v3571
        %v4456 = vunpack.c.h.b16 %v3571
        %v4457 = vunpack.c.l.b16 %v3572
        %v4458 = vunpack.c.h.b16 %v3572
        %v4459 = vunpack.c.l.b16 %v3573
        %v4460 = vunpack.c.h.b16 %v3573
        %v4461 = vunpack.c.l.b16 %v3574
        %v4462 = vunpack.c.h.b16 %v3574
        %v4463 = vunpack.c.l.b16 %v3575
        %v4464 = vunpack.c.h.b16 %v3575
        %v4465 = vunpack.c.l.b16 %v3576
        %v4466 = vunpack.c.h.b16 %v3576
        %v4467 = vunpack.c.l.b16 %v3577
        %v4468 = vunpack.c.h.b16 %v3577
        %v4469 = vunpack.c.l.b16 %v3578
        %v4470 = vunpack.c.h.b16 %v3578
        %v4471 = vunpack.c.l.b16 %v3579
        %v4472 = vunpack.c.h.b16 %v3579
        %v4473 = vunpack.c.l.b16 %v3580
        %v4474 = vunpack.c.h.b16 %v3580
        %v4475 = vunpack.c.l.b16 %v3581
        %v4476 = vunpack.c.h.b16 %v3581
        %v4477 = vunpack.c.l.b16 %v3582
        %v4478 = vunpack.c.h.b16 %v3582
        %v4479 = vpack.c.b16 %v3909, %v3903
        %v4480 = vpack.c.b16 %v3910, %v3904
        %v4481 = vpack.c.b16 %v3911, %v3905
        %v4482 = vpack.c.b16 %v3912, %v3906
        %v4483 = vpack.c.b16 %v3913, %v3907
        %v4484 = vpack.c.b16 %v3914, %v3908
        %v4485 = vpack.c.b16 %v3921, %v3915
        %v4486 = vpack.c.b16 %v3922, %v3916
        %v4487 = vpack.c.b16 %v3923, %v3917
        %v4488 = vpack.c.b16 %v3924, %v3918
        %v4489 = vpack.c.b16 %v3925, %v3919
        %v4490 = vpack.c.b16 %v3926, %v3920
        %v4491 = vpack.c.b16 %v3933, %v3927
        %v4492 = vpack.c.b16 %v3934, %v3928
        %v4493 = vpack.c.b16 %v3935, %v3929
        %v4494 = vpack.c.b16 %v3936, %v3930
        %v4495 = vpack.c.b16 %v3937, %v3931
        %v4496 = vpack.c.b16 %v3938, %v3932
        %v4497 = vpack.c.b16 %v3945, %v3939
        %v4498 = vpack.c.b16 %v3946, %v3940
        %v4499 = vpack.c.b16 %v3947, %v3941
        %v4500 = vpack.c.b16 %v3948, %v3942
        %v4501 = vpack.c.b16 %v3949, %v3943
        %v4502 = vpack.c.b16 %v3950, %v3944
        %v4503 = vpack.c.b16 %v3957, %v3951
        %v4504 = vpack.c.b16 %v3958, %v3952
        %v4505 = vpack.c.b16 %v3959, %v3953
        %v4506 = vpack.c.b16 %v3960, %v3954
        %v4507 = vpack.c.b16 %v3961, %v3955
        %v4508 = vpack.c.b16 %v3962, %v3956
        %v4509 = vpack.c.b16 %v3969, %v3963
        %v4510 = vpack.c.b16 %v3970, %v3964
        %v4511 = vpack.c.b16 %v3971, %v3965
        %v4512 = vpack.c.b16 %v3972, %v3966
        %v4513 = vpack.c.b16 %v3973, %v3967
        %v4514 = vpack.c.b16 %v3974, %v3968
        %v4515 = vpack.c.b16 %v3981, %v3975
        %v4516 = vpack.c.b16 %v3982, %v3976
        %v4517 = vpack.c.b16 %v3983, %v3977
        %v4518 = vpack.c.b16 %v3984, %v3978
        %v4519 = vpack.c.b16 %v3985, %v3979
        %v4520 = vpack.c.b16 %v3986, %v3980
        %v4521 = vpack.c.b16 %v3993, %v3987
        %v4522 = vpack.c.b16 %v3994, %v3988
        %v4523 = vpack.c.b16 %v3995, %v3989
        %v4524 = vpack.c.b16 %v3996, %v3990
        %v4525 = vpack.c.b16 %v3997, %v3991
        %v4526 = vpack.c.b16 %v3998, %v3992
        %v4527 = vpack.c.b16 %v4005, %v3999
        %v4528 = vpack.c.b16 %v4006, %v4000
        %v4529 = vpack.c.b16 %v4007, %v4001
        %v4530 = vpack.c.b16 %v4008, %v4002
        %v4531 = vpack.c.b16 %v4009, %v4003
        %v4532 = vpack.c.b16 %v4010, %v4004
        %v4533 = vpack.c.b16 %v4017, %v4011
        %v4534 = vpack.c.b16 %v4018, %v4012
        %v4535 = vpack.c.b16 %v4019, %v4013
        %v4536 = vpack.c.b16 %v4020, %v4014
        %v4537 = vpack.c.b16 %v4021, %v4015
        %v4538 = vpack.c.b16 %v4022, %v4016
        %v4539 = vpack.c.b16 %v4029, %v4023
        %v4540 = vpack.c.b16 %v4030, %v4024
        %v4541 = vpack.c.b16 %v4031, %v4025
        %v4542 = vpack.c.b16 %v4032, %v4026
        %v4543 = vpack.c.b16 %v4033, %v4027
        %v4544 = vpack.c.b16 %v4034, %v4028
        %v4545 = vpack.c.b16 %v4041, %v4035
        %v4546 = vpack.c.b16 %v4042, %v4036
        %v4547 = vpack.c.b16 %v4043, %v4037
        %v4548 = vpack.c.b16 %v4044, %v4038
        %v4549 = vpack.c.b16 %v4045, %v4039
        %v4550 = vpack.c.b16 %v4046, %v4040
        %v4551 = vpack.c.b16 %v4053, %v4047
        %v4552 = vpack.c.b16 %v4054, %v4048
        %v4553 = vpack.c.b16 %v4055, %v4049
        %v4554 = vpack.c.b16 %v4056, %v4050
        %v4555 = vpack.c.b16 %v4057, %v4051
        %v4556 = vpack.c.b16 %v4058, %v4052
        %v4557 = vpack.c.b16 %v4065, %v4059
        %v4558 = vpack.c.b16 %v4066, %v4060
        %v4559 = vpack.c.b16 %v4067, %v4061
        %v4560 = vpack.c.b16 %v4068, %v4062
        %v4561 = vpack.c.b16 %v4069, %v4063
        %v4562 = vpack.c.b16 %v4070, %v4064
        %v4563 = vpack.c.b16 %v4077, %v4071
        %v4564 = vpack.c.b16 %v4078, %v4072
        %v4565 = vpack.c.b16 %v4079, %v4073
        %v4566 = vpack.c.b16 %v4080, %v4074
        %v4567 = vpack.c.b16 %v4081, %v4075
        %v4568 = vpack.c.b16 %v4082, %v4076
        %v4569 = vpack.c.b16 %v4089, %v4083
        %v4570 = vpack.c.b16 %v4090, %v4084
        %v4571 = vpack.c.b16 %v4091, %v4085
        %v4572 = vpack.c.b16 %v4092, %v4086
        %v4573 = vpack.c.b16 %v4093, %v4087
        %v4574 = vpack.c.b16 %v4094, %v4088
        %v4575 = vpack.c.b16 %v4101, %v4095
        %v4576 = vpack.c.b16 %v4102, %v4096
        %v4577 = vpack.c.b16 %v4103, %v4097
        %v4578 = vpack.c.b16 %v4104, %v4098
        %v4579 = vpack.c.b16 %v4105, %v4099
        %v4580 = vpack.c.b16 %v4106, %v4100
        %v4581 = vpack.c.b16 %v4113, %v4107
        %v4582 = vpack.c.b16 %v4114, %v4108
        %v4583 = vpack.c.b16 %v4115, %v4109
        %v4584 = vpack.c.b16 %v4116, %v4110
        %v4585 = vpack.c.b16 %v4117, %v4111
        %v4586 = vpack.c.b16 %v4118, %v4112
        %v4587 = vpack.c.b16 %v4125, %v4119
        %v4588 = vpack.c.b16 %v4126, %v4120
        %v4589 = vpack.c.b16 %v4127, %v4121
        %v4590 = vpack.c.b16 %v4128, %v4122
        %v4591 = vpack.c.b16 %v4129, %v4123
        %v4592 = vpack.c.b16 %v4130, %v4124
        %v4593 = vpack.c.b16 %v4137, %v4131
        %v4594 = vpack.c.b16 %v4138, %v4132
        %v4595 = vpack.c.b16 %v4139, %v4133
        %v4596 = vpack.c.b16 %v4140, %v4134
        %v4597 = vpack.c.b16 %v4141, %v4135
        %v4598 = vpack.c.b16 %v4142, %v4136
        %v4599 = vpack.c.b16 %v4149, %v4143
        %v4600 = vpack.c.b16 %v4150, %v4144
        %v4601 = vpack.c.b16 %v4151, %v4145
        %v4602 = vpack.c.b16 %v4152, %v4146
        %v4603 = vpack.c.b16 %v4153, %v4147
        %v4604 = vpack.c.b16 %v4154, %v4148
        %v4605 = vpack.c.b16 %v4161, %v4155
        %v4606 = vpack.c.b16 %v4162, %v4156
        %v4607 = vpack.c.b16 %v4163, %v4157
        %v4608 = vpack.c.b16 %v4164, %v4158
        %v4609 = vpack.c.b16 %v4165, %v4159
        %v4610 = vpack.c.b16 %v4166, %v4160
        %v4611 = vpack.c.b16 %v4173, %v4167
        %v4612 = vpack.c.b16 %v4174, %v4168
        %v4613 = vpack.c.b16 %v4175, %v4169
        %v4614 = vpack.c.b16 %v4176, %v4170
        %v4615 = vpack.c.b16 %v4177, %v4171
        %v4616 = vpack.c.b16 %v4178, %v4172
        %v4617 = vpack.c.b16 %v4185, %v4179
        %v4618 = vpack.c.b16 %v4186, %v4180
        %v4619 = vpack.c.b16 %v4187, %v4181
        %v4620 = vpack.c.b16 %v4188, %v4182
        %v4621 = vpack.c.b16 %v4189, %v4183
        %v4622 = vpack.c.b16 %v4190, %v4184
        %v4623 = vpack.c.b16 %v4197, %v4191
        %v4624 = vpack.c.b16 %v4198, %v4192
        %v4625 = vpack.c.b16 %v4199, %v4193
        %v4626 = vpack.c.b16 %v4200, %v4194
        %v4627 = vpack.c.b16 %v4201, %v4195
        %v4628 = vpack.c.b16 %v4202, %v4196
        %v4629 = vpack.c.b16 %v4209, %v4203
        %v4630 = vpack.c.b16 %v4210, %v4204
        %v4631 = vpack.c.b16 %v4211, %v4205
        %v4632 = vpack.c.b16 %v4212, %v4206
        %v4633 = vpack.c.b16 %v4213, %v4207
        %v4634 = vpack.c.b16 %v4214, %v4208
        %v4635 = vpack.c.b16 %v4221, %v4215
        %v4636 = vpack.c.b16 %v4222, %v4216
        %v4637 = vpack.c.b16 %v4223, %v4217
        %v4638 = vpack.c.b16 %v4224, %v4218
        %v4639 = vpack.c.b16 %v4225, %v4219
        %v4640 = vpack.c.b16 %v4226, %v4220
        %v4641 = vpack.c.b16 %v4233, %v4227
        %v4642 = vpack.c.b16 %v4234, %v4228
        %v4643 = vpack.c.b16 %v4235, %v4229
        %v4644 = vpack.c.b16 %v4236, %v4230
        %v4645 = vpack.c.b16 %v4237, %v4231
        %v4646 = vpack.c.b16 %v4238, %v4232
        %v4647 = vpack.c.b16 %v4245, %v4239
        %v4648 = vpack.c.b16 %v4246, %v4240
        %v4649 = vpack.c.b16 %v4247, %v4241
        %v4650 = vpack.c.b16 %v4248, %v4242
        %v4651 = vpack.c.b16 %v4249, %v4243
        %v4652 = vpack.c.b16 %v4250, %v4244
        %v4653 = vpack.c.b16 %v4257, %v4251
        %v4654 = vpack.c.b16 %v4258, %v4252
        %v4655 = vpack.c.b16 %v4259, %v4253
        %v4656 = vpack.c.b16 %v4260, %v4254
        %v4657 = vpack.c.b16 %v4261, %v4255
        %v4658 = vpack.c.b16 %v4262, %v4256
        %v4659 = vpack.c.b16 %v4269, %v4263
        %v4660 = vpack.c.b16 %v4270, %v4264
        %v4661 = vpack.c.b16 %v4271, %v4265
        %v4662 = vpack.c.b16 %v4272, %v4266
        %v4663 = vpack.c.b16 %v4273, %v4267
        %v4664 = vpack.c.b16 %v4274, %v4268
        %v4665 = vpack.c.b16 %v4281, %v4275
        %v4666 = vpack.c.b16 %v4282, %v4276
        %v4667 = vpack.c.b16 %v4283, %v4277
        %v4668 = vpack.c.b16 %v4284, %v4278
        %v4669 = vpack.c.b16 %v4285, %v4279
        %v4670 = vpack.c.b16 %v4286, %v4280
        %v4671 = vpack.c.b16 %v4293, %v4287
        %v4672 = vpack.c.b16 %v4294, %v4288
        %v4673 = vpack.c.b16 %v4295, %v4289
        %v4674 = vpack.c.b16 %v4296, %v4290
        %v4675 = vpack.c.b16 %v4297, %v4291
        %v4676 = vpack.c.b16 %v4298, %v4292
        %v4677 = vpack.c.b16 %v4305, %v4299
        %v4678 = vpack.c.b16 %v4306, %v4300
        %v4679 = vpack.c.b16 %v4307, %v4301
        %v4680 = vpack.c.b16 %v4308, %v4302
        %v4681 = vpack.c.b16 %v4309, %v4303
        %v4682 = vpack.c.b16 %v4310, %v4304
        %v4683 = vpack.c.b16 %v4317, %v4311
        %v4684 = vpack.c.b16 %v4318, %v4312
        %v4685 = vpack.c.b16 %v4319, %v4313
        %v4686 = vpack.c.b16 %v4320, %v4314
        %v4687 = vpack.c.b16 %v4321, %v4315
        %v4688 = vpack.c.b16 %v4322, %v4316
        %v4689 = vpack.c.b16 %v4329, %v4323
        %v4690 = vpack.c.b16 %v4330, %v4324
        %v4691 = vpack.c.b16 %v4331, %v4325
        %v4692 = vpack.c.b16 %v4332, %v4326
        %v4693 = vpack.c.b16 %v4333, %v4327
        %v4694 = vpack.c.b16 %v4334, %v4328
        %v4695 = vpack.c.b16 %v4341, %v4335
        %v4696 = vpack.c.b16 %v4342, %v4336
        %v4697 = vpack.c.b16 %v4343, %v4337
        %v4698 = vpack.c.b16 %v4344, %v4338
        %v4699 = vpack.c.b16 %v4345, %v4339
        %v4700 = vpack.c.b16 %v4346, %v4340
        %v4701 = vpack.c.b16 %v4353, %v4347
        %v4702 = vpack.c.b16 %v4354, %v4348
        %v4703 = vpack.c.b16 %v4355, %v4349
        %v4704 = vpack.c.b16 %v4356, %v4350
        %v4705 = vpack.c.b16 %v4357, %v4351
        %v4706 = vpack.c.b16 %v4358, %v4352
        %v4707 = vpack.c.b16 %v4365, %v4359
        %v4708 = vpack.c.b16 %v4366, %v4360
        %v4709 = vpack.c.b16 %v4367, %v4361
        %v4710 = vpack.c.b16 %v4368, %v4362
        %v4711 = vpack.c.b16 %v4369, %v4363
        %v4712 = vpack.c.b16 %v4370, %v4364
        %v4713 = vpack.c.b16 %v4377, %v4371
        %v4714 = vpack.c.b16 %v4378, %v4372
        %v4715 = vpack.c.b16 %v4379, %v4373
        %v4716 = vpack.c.b16 %v4380, %v4374
        %v4717 = vpack.c.b16 %v4381, %v4375
        %v4718 = vpack.c.b16 %v4382, %v4376
        %v4719 = vpack.c.b16 %v4389, %v4383
        %v4720 = vpack.c.b16 %v4390, %v4384
        %v4721 = vpack.c.b16 %v4391, %v4385
        %v4722 = vpack.c.b16 %v4392, %v4386
        %v4723 = vpack.c.b16 %v4393, %v4387
        %v4724 = vpack.c.b16 %v4394, %v4388
        %v4725 = vpack.c.b16 %v4401, %v4395
        %v4726 = vpack.c.b16 %v4402, %v4396
        %v4727 = vpack.c.b16 %v4403, %v4397
        %v4728 = vpack.c.b16 %v4404, %v4398
        %v4729 = vpack.c.b16 %v4405, %v4399
        %v4730 = vpack.c.b16 %v4406, %v4400
        %v4731 = vpack.c.b16 %v4413, %v4407
        %v4732 = vpack.c.b16 %v4414, %v4408
        %v4733 = vpack.c.b16 %v4415, %v4409
        %v4734 = vpack.c.b16 %v4416, %v4410
        %v4735 = vpack.c.b16 %v4417, %v4411
        %v4736 = vpack.c.b16 %v4418, %v4412
        %v4737 = vpack.c.b16 %v4425, %v4419
        %v4738 = vpack.c.b16 %v4426, %v4420
        %v4739 = vpack.c.b16 %v4427, %v4421
        %v4740 = vpack.c.b16 %v4428, %v4422
        %v4741 = vpack.c.b16 %v4429, %v4423
        %v4742 = vpack.c.b16 %v4430, %v4424
        %v4743 = vpack.c.b16 %v4437, %v4431
        %v4744 = vpack.c.b16 %v4438, %v4432
        %v4745 = vpack.c.b16 %v4439, %v4433
        %v4746 = vpack.c.b16 %v4440, %v4434
        %v4747 = vpack.c.b16 %v4441, %v4435
        %v4748 = vpack.c.b16 %v4442, %v4436
        %v4749 = vpack.c.b16 %v4449, %v4443
        %v4750 = vpack.c.b16 %v4450, %v4444
        %v4751 = vpack.c.b16 %v4451, %v4445
        %v4752 = vpack.c.b16 %v4452, %v4446
        %v4753 = vpack.c.b16 %v4453, %v4447
        %v4754 = vpack.c.b16 %v4454, %v4448
        %v4755 = vpack.c.b16 %v4461, %v4455
        %v4756 = vpack.c.b16 %v4462, %v4456
        %v4757 = vpack.c.b16 %v4463, %v4457
        %v4758 = vpack.c.b16 %v4464, %v4458
        %v4759 = vpack.c.b16 %v4465, %v4459
        %v4760 = vpack.c.b16 %v4466, %v4460
        %v4761 = vpack.c.b16 %v4473, %v4467
        %v4762 = vpack.c.b16 %v4474, %v4468
        %v4763 = vpack.c.b16 %v4475, %v4469
        %v4764 = vpack.c.b16 %v4476, %v4470
        %v4765 = vpack.c.b16 %v4477, %v4471
        %v4766 = vpack.c.b16 %v4478, %v4472
        %5055 = vmatprep.subr.bf16.mxu0 %v4480
        %5056 = vmatpush1.bf16.msra.mxu0 %v4479
        %5057 = vmatprep.subr.bf16.mxu0 %v4486
        %5058 = vmatpush1.bf16.msra.mxu0 %v4485
        %5059 = vmatprep.subr.bf16.mxu0 %v4492
        %5060 = vmatpush1.bf16.msra.mxu0 %v4491
        %5061 = vmatprep.subr.bf16.mxu0 %v4498
        %5062 = vmatpush1.bf16.msra.mxu0 %v4497
        %5063 = vmatprep.subr.bf16.mxu0 %v4504
        %5064 = vmatpush1.bf16.msra.mxu0 %v4503
        %5065 = vmatprep.subr.bf16.mxu0 %v4510
        %5066 = vmatpush1.bf16.msra.mxu0 %v4509
        %5067 = vmatprep.subr.bf16.mxu0 %v4516
        %5068 = vmatpush1.bf16.msra.mxu0 %v4515
        %5069 = vmatprep.subr.bf16.mxu0 %v4522
        %5070 = vmatpush1.bf16.msra.mxu0 %v4521
        %5071 = vmatprep.subr.bf16.mxu0 %v4528
        %5072 = vmatpush1.bf16.msra.mxu0 %v4527
        %5073 = vmatprep.subr.bf16.mxu0 %v4534
        %5074 = vmatpush1.bf16.msra.mxu0 %v4533
        %5075 = vmatprep.subr.bf16.mxu0 %v4540
        %5076 = vmatpush1.bf16.msra.mxu0 %v4539
        %5077 = vmatprep.subr.bf16.mxu0 %v4546
        %5078 = vmatpush1.bf16.msra.mxu0 %v4545
        %5079 = vmatprep.subr.bf16.mxu0 %v4552
        %5080 = vmatpush1.bf16.msra.mxu0 %v4551
        %5081 = vmatprep.subr.bf16.mxu0 %v4558
        %5082 = vmatpush1.bf16.msra.mxu0 %v4557
        %5083 = vmatprep.subr.bf16.mxu0 %v4564
        %5084 = vmatpush1.bf16.msra.mxu0 %v4563
        %5085 = vmatprep.subr.bf16.mxu0 %v4570
        %5086 = vmatpush1.bf16.msra.mxu0 %v4569
        %5087 = vmatprep.mubr.bf16.mxu0 %v3290
        %5088 = vmatmul.mubr.bf16.gmra.mrb[0].mxu0 %v3289
        %v5089 = vpop.f32.mrb[0].mxu0
        %v5090 = vadd.f32 %v3588, %v5089
        %v5091 = vpop.f32.mrb[0].mxu0
        %v5092 = vadd.f32 %v3592, %v5091
        %v5093 = vpop.f32.mrb[0].mxu0
        %v5094 = vpop.f32.mrb[0].mxu0
        %5095 = vdwg.mxu0
        %5096 = vmatprep.subr.bf16.mxu0 %v4576
        %5097 = vmatpush1.bf16.msra.mxu0 %v4575
        %5098 = vmatprep.subr.bf16.mxu0 %v4582
        %5099 = vmatpush1.bf16.msra.mxu0 %v4581
        %5100 = vmatprep.subr.bf16.mxu0 %v4588
        %5101 = vmatpush1.bf16.msra.mxu0 %v4587
        %5102 = vmatprep.subr.bf16.mxu0 %v4594
        %5103 = vmatpush1.bf16.msra.mxu0 %v4593
        %5104 = vmatprep.subr.bf16.mxu0 %v4600
        %5105 = vmatpush1.bf16.msra.mxu0 %v4599
        %5106 = vmatprep.subr.bf16.mxu0 %v4606
        %5107 = vmatpush1.bf16.msra.mxu0 %v4605
        %5108 = vmatprep.subr.bf16.mxu0 %v4612
        %5109 = vmatpush1.bf16.msra.mxu0 %v4611
        %5110 = vmatprep.subr.bf16.mxu0 %v4618
        %5111 = vmatpush1.bf16.msra.mxu0 %v4617
        %5112 = vmatprep.subr.bf16.mxu0 %v4624
        %5113 = vmatpush1.bf16.msra.mxu0 %v4623
        %5114 = vmatprep.subr.bf16.mxu0 %v4630
        %5115 = vmatpush1.bf16.msra.mxu0 %v4629
        %5116 = vmatprep.subr.bf16.mxu0 %v4636
        %5117 = vmatpush1.bf16.msra.mxu0 %v4635
        %5118 = vmatprep.subr.bf16.mxu0 %v4642
        %5119 = vmatpush1.bf16.msra.mxu0 %v4641
        %5120 = vmatprep.subr.bf16.mxu0 %v4648
        %5121 = vmatpush1.bf16.msra.mxu0 %v4647
        %5122 = vmatprep.subr.bf16.mxu0 %v4654
        %5123 = vmatpush1.bf16.msra.mxu0 %v4653
        %5124 = vmatprep.subr.bf16.mxu0 %v4660
        %5125 = vmatpush1.bf16.msra.mxu0 %v4659
        %5126 = vmatprep.subr.bf16.mxu0 %v4666
        %5127 = vmatpush1.bf16.msra.mxu0 %v4665
        %5128 = vmatprep.mubr.bf16.mxu0 %v3292
        %5129 = vmatmul.mubr.bf16.gmra.mrb[0].mxu0 %v3291
        %v5130 = vpop.f32.mrb[0].mxu0
        %v5131 = vadd.f32 %v5090, %v5130
        %v5132 = vpop.f32.mrb[0].mxu0
        %v5133 = vadd.f32 %v5092, %v5132
        %v5134 = vpop.f32.mrb[0].mxu0
        %v5135 = vpop.f32.mrb[0].mxu0
        %5136 = vdwg.mxu0
        %5137 = vmatprep.subr.bf16.mxu0 %v4672
        %5138 = vmatpush1.bf16.msra.mxu0 %v4671
        %5139 = vmatprep.subr.bf16.mxu0 %v4678
        %5140 = vmatpush1.bf16.msra.mxu0 %v4677
        %5141 = vmatprep.subr.bf16.mxu0 %v4684
        %5142 = vmatpush1.bf16.msra.mxu0 %v4683
        %5143 = vmatprep.subr.bf16.mxu0 %v4690
        %5144 = vmatpush1.bf16.msra.mxu0 %v4689
        %5145 = vmatprep.subr.bf16.mxu0 %v4696
        %5146 = vmatpush1.bf16.msra.mxu0 %v4695
        %5147 = vmatprep.subr.bf16.mxu0 %v4702
        %5148 = vmatpush1.bf16.msra.mxu0 %v4701
        %5149 = vmatprep.subr.bf16.mxu0 %v4708
        %5150 = vmatpush1.bf16.msra.mxu0 %v4707
        %5151 = vmatprep.subr.bf16.mxu0 %v4714
        %5152 = vmatpush1.bf16.msra.mxu0 %v4713
        %5153 = vmatprep.subr.bf16.mxu0 %v4720
        %5154 = vmatpush1.bf16.msra.mxu0 %v4719
        %5155 = vmatprep.subr.bf16.mxu0 %v4726
        %5156 = vmatpush1.bf16.msra.mxu0 %v4725
        %5157 = vmatprep.subr.bf16.mxu0 %v4732
        %5158 = vmatpush1.bf16.msra.mxu0 %v4731
        %5159 = vmatprep.subr.bf16.mxu0 %v4738
        %5160 = vmatpush1.bf16.msra.mxu0 %v4737
        %5161 = vmatprep.subr.bf16.mxu0 %v4744
        %5162 = vmatpush1.bf16.msra.mxu0 %v4743
        %5163 = vmatprep.subr.bf16.mxu0 %v4750
        %5164 = vmatpush1.bf16.msra.mxu0 %v4749
        %5165 = vmatprep.subr.bf16.mxu0 %v4756
        %5166 = vmatpush1.bf16.msra.mxu0 %v4755
        %5167 = vmatprep.subr.bf16.mxu0 %v4762
        %5168 = vmatpush1.bf16.msra.mxu0 %v4761
        %5169 = vmatprep.mubr.bf16.mxu0 %v3294
        %5170 = vmatmul.mubr.bf16.gmra.mrb[0].mxu0 %v3293
        %v5171 = vpop.f32.mrb[0].mxu0
        %v5172 = vadd.f32 %v5131, %v5171
        %v5173 = vpop.f32.mrb[0].mxu0
        %v5174 = vadd.f32 %v5133, %v5173
        %v5175 = vpop.f32.mrb[0].mxu0
        %v5176 = vpop.f32.mrb[0].mxu0
        %5177 = vdwg.mxu0
        %5178 = vmatprep.subr.bf16.mxu0 %v4482
        %5179 = vmatpush1.bf16.msra.mxu0 %v4481
        %5180 = vmatprep.subr.bf16.mxu0 %v4488
        %5181 = vmatpush1.bf16.msra.mxu0 %v4487
        %5182 = vmatprep.subr.bf16.mxu0 %v4494
        %5183 = vmatpush1.bf16.msra.mxu0 %v4493
        %5184 = vmatprep.subr.bf16.mxu0 %v4500
        %5185 = vmatpush1.bf16.msra.mxu0 %v4499
        %5186 = vmatprep.subr.bf16.mxu0 %v4506
        %5187 = vmatpush1.bf16.msra.mxu0 %v4505
        %5188 = vmatprep.subr.bf16.mxu0 %v4512
        %5189 = vmatpush1.bf16.msra.mxu0 %v4511
        %5190 = vmatprep.subr.bf16.mxu0 %v4518
        %5191 = vmatpush1.bf16.msra.mxu0 %v4517
        %5192 = vmatprep.subr.bf16.mxu0 %v4524
        %5193 = vmatpush1.bf16.msra.mxu0 %v4523
        %5194 = vmatprep.subr.bf16.mxu0 %v4530
        %5195 = vmatpush1.bf16.msra.mxu0 %v4529
        %5196 = vmatprep.subr.bf16.mxu0 %v4536
        %5197 = vmatpush1.bf16.msra.mxu0 %v4535
        %5198 = vmatprep.subr.bf16.mxu0 %v4542
        %5199 = vmatpush1.bf16.msra.mxu0 %v4541
        %5200 = vmatprep.subr.bf16.mxu0 %v4548
        %5201 = vmatpush1.bf16.msra.mxu0 %v4547
        %5202 = vmatprep.subr.bf16.mxu0 %v4554
        %5203 = vmatpush1.bf16.msra.mxu0 %v4553
        %5204 = vmatprep.subr.bf16.mxu0 %v4560
        %5205 = vmatpush1.bf16.msra.mxu0 %v4559
        %5206 = vmatprep.subr.bf16.mxu0 %v4566
        %5207 = vmatpush1.bf16.msra.mxu0 %v4565
        %5208 = vmatprep.subr.bf16.mxu0 %v4572
        %5209 = vmatpush1.bf16.msra.mxu0 %v4571
        %5210 = vmatprep.mubr.bf16.mxu0 %v3290
        %5211 = vmatmul.mubr.bf16.gmra.mrb[0].mxu0 %v3289
        %v5212 = vpop.f32.mrb[0].mxu0
        %v5213 = vadd.f32 %v3596, %v5212
        %v5214 = vpop.f32.mrb[0].mxu0
        %v5215 = vadd.f32 %v3600, %v5214
        %v5216 = vpop.f32.mrb[0].mxu0
        %v5217 = vpop.f32.mrb[0].mxu0
        %5218 = vdwg.mxu0
        %5219 = vmatprep.subr.bf16.mxu0 %v4578
        %5220 = vmatpush1.bf16.msra.mxu0 %v4577
        %5221 = vmatprep.subr.bf16.mxu0 %v4584
        %5222 = vmatpush1.bf16.msra.mxu0 %v4583
        %5223 = vmatprep.subr.bf16.mxu0 %v4590
        %5224 = vmatpush1.bf16.msra.mxu0 %v4589
        %5225 = vmatprep.subr.bf16.mxu0 %v4596
        %5226 = vmatpush1.bf16.msra.mxu0 %v4595
        %5227 = vmatprep.subr.bf16.mxu0 %v4602
        %5228 = vmatpush1.bf16.msra.mxu0 %v4601
        %5229 = vmatprep.subr.bf16.mxu0 %v4608
        %5230 = vmatpush1.bf16.msra.mxu0 %v4607
        %5231 = vmatprep.subr.bf16.mxu0 %v4614
        %5232 = vmatpush1.bf16.msra.mxu0 %v4613
        %5233 = vmatprep.subr.bf16.mxu0 %v4620
        %5234 = vmatpush1.bf16.msra.mxu0 %v4619
        %5235 = vmatprep.subr.bf16.mxu0 %v4626
        %5236 = vmatpush1.bf16.msra.mxu0 %v4625
        %5237 = vmatprep.subr.bf16.mxu0 %v4632
        %5238 = vmatpush1.bf16.msra.mxu0 %v4631
        %5239 = vmatprep.subr.bf16.mxu0 %v4638
        %5240 = vmatpush1.bf16.msra.mxu0 %v4637
        %5241 = vmatprep.subr.bf16.mxu0 %v4644
        %5242 = vmatpush1.bf16.msra.mxu0 %v4643
        %5243 = vmatprep.subr.bf16.mxu0 %v4650
        %5244 = vmatpush1.bf16.msra.mxu0 %v4649
        %5245 = vmatprep.subr.bf16.mxu0 %v4656
        %5246 = vmatpush1.bf16.msra.mxu0 %v4655
        %5247 = vmatprep.subr.bf16.mxu0 %v4662
        %5248 = vmatpush1.bf16.msra.mxu0 %v4661
        %5249 = vmatprep.subr.bf16.mxu0 %v4668
        %5250 = vmatpush1.bf16.msra.mxu0 %v4667
        %5251 = vmatprep.mubr.bf16.mxu0 %v3292
        %5252 = vmatmul.mubr.bf16.gmra.mrb[0].mxu0 %v3291
        %v5253 = vpop.f32.mrb[0].mxu0
        %v5254 = vadd.f32 %v5213, %v5253
        %v5255 = vpop.f32.mrb[0].mxu0
        %v5256 = vadd.f32 %v5215, %v5255
        %v5257 = vpop.f32.mrb[0].mxu0
        %v5258 = vpop.f32.mrb[0].mxu0
        %5259 = vdwg.mxu0
        %5260 = vmatprep.subr.bf16.mxu0 %v4674
        %5261 = vmatpush1.bf16.msra.mxu0 %v4673
        %5262 = vmatprep.subr.bf16.mxu0 %v4680
        %5263 = vmatpush1.bf16.msra.mxu0 %v4679
        %5264 = vmatprep.subr.bf16.mxu0 %v4686
        %5265 = vmatpush1.bf16.msra.mxu0 %v4685
        %5266 = vmatprep.subr.bf16.mxu0 %v4692
        %5267 = vmatpush1.bf16.msra.mxu0 %v4691
        %5268 = vmatprep.subr.bf16.mxu0 %v4698
        %5269 = vmatpush1.bf16.msra.mxu0 %v4697
        %5270 = vmatprep.subr.bf16.mxu0 %v4704
        %5271 = vmatpush1.bf16.msra.mxu0 %v4703
        %5272 = vmatprep.subr.bf16.mxu0 %v4710
        %5273 = vmatpush1.bf16.msra.mxu0 %v4709
        %5274 = vmatprep.subr.bf16.mxu0 %v4716
        %5275 = vmatpush1.bf16.msra.mxu0 %v4715
        %5276 = vmatprep.subr.bf16.mxu0 %v4722
        %5277 = vmatpush1.bf16.msra.mxu0 %v4721
        %5278 = vmatprep.subr.bf16.mxu0 %v4728
        %5279 = vmatpush1.bf16.msra.mxu0 %v4727
        %5280 = vmatprep.subr.bf16.mxu0 %v4734
        %5281 = vmatpush1.bf16.msra.mxu0 %v4733
        %5282 = vmatprep.subr.bf16.mxu0 %v4740
        %5283 = vmatpush1.bf16.msra.mxu0 %v4739
        %5284 = vmatprep.subr.bf16.mxu0 %v4746
        %5285 = vmatpush1.bf16.msra.mxu0 %v4745
        %5286 = vmatprep.subr.bf16.mxu0 %v4752
        %5287 = vmatpush1.bf16.msra.mxu0 %v4751
        %5288 = vmatprep.subr.bf16.mxu0 %v4758
        %5289 = vmatpush1.bf16.msra.mxu0 %v4757
        %5290 = vmatprep.subr.bf16.mxu0 %v4764
        %5291 = vmatpush1.bf16.msra.mxu0 %v4763
        %5292 = vmatprep.mubr.bf16.mxu0 %v3294
        %5293 = vmatmul.mubr.bf16.gmra.mrb[0].mxu0 %v3293
        %v5294 = vpop.f32.mrb[0].mxu0
        %v5295 = vadd.f32 %v5254, %v5294
        %v5296 = vpop.f32.mrb[0].mxu0
        %v5297 = vadd.f32 %v5256, %v5296
        %v5298 = vpop.f32.mrb[0].mxu0
        %v5299 = vpop.f32.mrb[0].mxu0
        %5300 = vdwg.mxu0
        %5301 = vmatprep.subr.bf16.mxu0 %v4484
        %5302 = vmatpush1.bf16.msra.mxu0 %v4483
        %5303 = vmatprep.subr.bf16.mxu0 %v4490
        %5304 = vmatpush1.bf16.msra.mxu0 %v4489
        %5305 = vmatprep.subr.bf16.mxu0 %v4496
        %5306 = vmatpush1.bf16.msra.mxu0 %v4495
        %5307 = vmatprep.subr.bf16.mxu0 %v4502
        %5308 = vmatpush1.bf16.msra.mxu0 %v4501
        %5309 = vmatprep.subr.bf16.mxu0 %v4508
        %5310 = vmatpush1.bf16.msra.mxu0 %v4507
        %5311 = vmatprep.subr.bf16.mxu0 %v4514
        %5312 = vmatpush1.bf16.msra.mxu0 %v4513
        %5313 = vmatprep.subr.bf16.mxu0 %v4520
        %5314 = vmatpush1.bf16.msra.mxu0 %v4519
        %5315 = vmatprep.subr.bf16.mxu0 %v4526
        %5316 = vmatpush1.bf16.msra.mxu0 %v4525
        %5317 = vmatprep.subr.bf16.mxu0 %v4532
        %5318 = vmatpush1.bf16.msra.mxu0 %v4531
        %5319 = vmatprep.subr.bf16.mxu0 %v4538
        %5320 = vmatpush1.bf16.msra.mxu0 %v4537
        %5321 = vmatprep.subr.bf16.mxu0 %v4544
        %5322 = vmatpush1.bf16.msra.mxu0 %v4543
        %5323 = vmatprep.subr.bf16.mxu0 %v4550
        %5324 = vmatpush1.bf16.msra.mxu0 %v4549
        %5325 = vmatprep.subr.bf16.mxu0 %v4556
        %5326 = vmatpush1.bf16.msra.mxu0 %v4555
        %5327 = vmatprep.subr.bf16.mxu0 %v4562
        %5328 = vmatpush1.bf16.msra.mxu0 %v4561
        %5329 = vmatprep.subr.bf16.mxu0 %v4568
        %5330 = vmatpush1.bf16.msra.mxu0 %v4567
        %5331 = vmatprep.subr.bf16.mxu0 %v4574
        %5332 = vmatpush1.bf16.msra.mxu0 %v4573
        %5333 = vmatprep.mubr.bf16.mxu0 %v3290
        %5334 = vmatmul.mubr.bf16.gmra.mrb[0].mxu0 %v3289
        %v5335 = vpop.f32.mrb[0].mxu0
        %v5336 = vadd.f32 %v3604, %v5335
        %v5337 = vpop.f32.mrb[0].mxu0
        %v5338 = vadd.f32 %v3608, %v5337
        %v5339 = vpop.f32.mrb[0].mxu0
        %v5340 = vpop.f32.mrb[0].mxu0
        %5341 = vdwg.mxu0
        %5342 = vmatprep.subr.bf16.mxu0 %v4580
        %5343 = vmatpush1.bf16.msra.mxu0 %v4579
        %5344 = vmatprep.subr.bf16.mxu0 %v4586
        %5345 = vmatpush1.bf16.msra.mxu0 %v4585
        %5346 = vmatprep.subr.bf16.mxu0 %v4592
        %5347 = vmatpush1.bf16.msra.mxu0 %v4591
        %5348 = vmatprep.subr.bf16.mxu0 %v4598
        %5349 = vmatpush1.bf16.msra.mxu0 %v4597
        %5350 = vmatprep.subr.bf16.mxu0 %v4604
        %5351 = vmatpush1.bf16.msra.mxu0 %v4603
        %5352 = vmatprep.subr.bf16.mxu0 %v4610
        %5353 = vmatpush1.bf16.msra.mxu0 %v4609
        %5354 = vmatprep.subr.bf16.mxu0 %v4616
        %5355 = vmatpush1.bf16.msra.mxu0 %v4615
        %5356 = vmatprep.subr.bf16.mxu0 %v4622
        %5357 = vmatpush1.bf16.msra.mxu0 %v4621
        %5358 = vmatprep.subr.bf16.mxu0 %v4628
        %5359 = vmatpush1.bf16.msra.mxu0 %v4627
        %5360 = vmatprep.subr.bf16.mxu0 %v4634
        %5361 = vmatpush1.bf16.msra.mxu0 %v4633
        %5362 = vmatprep.subr.bf16.mxu0 %v4640
        %5363 = vmatpush1.bf16.msra.mxu0 %v4639
        %5364 = vmatprep.subr.bf16.mxu0 %v4646
        %5365 = vmatpush1.bf16.msra.mxu0 %v4645
        %5366 = vmatprep.subr.bf16.mxu0 %v4652
        %5367 = vmatpush1.bf16.msra.mxu0 %v4651
        %5368 = vmatprep.subr.bf16.mxu0 %v4658
        %5369 = vmatpush1.bf16.msra.mxu0 %v4657
        %5370 = vmatprep.subr.bf16.mxu0 %v4664
        %5371 = vmatpush1.bf16.msra.mxu0 %v4663
        %5372 = vmatprep.subr.bf16.mxu0 %v4670
        %5373 = vmatpush1.bf16.msra.mxu0 %v4669
        %5374 = vmatprep.mubr.bf16.mxu0 %v3292
        %5375 = vmatmul.mubr.bf16.gmra.mrb[0].mxu0 %v3291
        %v5376 = vpop.f32.mrb[0].mxu0
        %v5377 = vadd.f32 %v5336, %v5376
        %v5378 = vpop.f32.mrb[0].mxu0
        %v5379 = vadd.f32 %v5338, %v5378
        %v5380 = vpop.f32.mrb[0].mxu0
        %v5381 = vpop.f32.mrb[0].mxu0
        %5382 = vdwg.mxu0
        %5383 = vmatprep.subr.bf16.mxu0 %v4676
        %5384 = vmatpush1.bf16.msra.mxu0 %v4675
        %5385 = vmatprep.subr.bf16.mxu0 %v4682
        %5386 = vmatpush1.bf16.msra.mxu0 %v4681
        %5387 = vmatprep.subr.bf16.mxu0 %v4688
        %5388 = vmatpush1.bf16.msra.mxu0 %v4687
        %5389 = vmatprep.subr.bf16.mxu0 %v4694
        %5390 = vmatpush1.bf16.msra.mxu0 %v4693
        %5391 = vmatprep.subr.bf16.mxu0 %v4700
        %5392 = vmatpush1.bf16.msra.mxu0 %v4699
        %5393 = vmatprep.subr.bf16.mxu0 %v4706
        %5394 = vmatpush1.bf16.msra.mxu0 %v4705
        %5395 = vmatprep.subr.bf16.mxu0 %v4712
        %5396 = vmatpush1.bf16.msra.mxu0 %v4711
        %5397 = vmatprep.subr.bf16.mxu0 %v4718
        %5398 = vmatpush1.bf16.msra.mxu0 %v4717
        %5399 = vmatprep.subr.bf16.mxu0 %v4724
        %5400 = vmatpush1.bf16.msra.mxu0 %v4723
        %5401 = vmatprep.subr.bf16.mxu0 %v4730
        %5402 = vmatpush1.bf16.msra.mxu0 %v4729
        %5403 = vmatprep.subr.bf16.mxu0 %v4736
        %5404 = vmatpush1.bf16.msra.mxu0 %v4735
        %5405 = vmatprep.subr.bf16.mxu0 %v4742
        %5406 = vmatpush1.bf16.msra.mxu0 %v4741
        %5407 = vmatprep.subr.bf16.mxu0 %v4748
        %5408 = vmatpush1.bf16.msra.mxu0 %v4747
        %5409 = vmatprep.subr.bf16.mxu0 %v4754
        %5410 = vmatpush1.bf16.msra.mxu0 %v4753
        %5411 = vmatprep.subr.bf16.mxu0 %v4760
        %5412 = vmatpush1.bf16.msra.mxu0 %v4759
        %5413 = vmatprep.subr.bf16.mxu0 %v4766
        %5414 = vmatpush1.bf16.msra.mxu0 %v4765
        %5415 = vmatprep.mubr.bf16.mxu0 %v3294
        %5416 = vmatmul.mubr.bf16.gmra.mrb[0].mxu0 %v3293
        %v5417 = vpop.f32.mrb[0].mxu0
        %v5418 = vadd.f32 %v5377, %v5417
        %v5419 = vpop.f32.mrb[0].mxu0
        %v5420 = vadd.f32 %v5379, %v5419
        %v5421 = vpop.f32.mrb[0].mxu0
        %v5422 = vpop.f32.mrb[0].mxu0
        %5423 = vdwg.mxu0
        %v5424 = vtanh.pop %v5172
        %v5425 = vtanh.pop %v5174
        %v5426 = vtanh.pop %v5295
        %v5427 = vtanh.pop %v5297
        %v5428 = vtanh.pop %v5418
        %v5429 = vtanh.pop %v5420
        %v5430 = vpack.c.bf16 %v5424, %v5424
        %v5431 = vpack.c.bf16 %v5425, %v5425
        %v5432 = vpack.c.bf16 %v5426, %v5426
        %v5433 = vpack.c.bf16 %v5427, %v5427
        %v5434 = vpack.c.bf16 %v5428, %v5428
        %v5435 = vpack.c.bf16 %v5429, %v5429
        %v5436 = vld [vmem:[#allocation10] sm:$0xff]
        %v5437 = vld [vmem:[#allocation10 + $0x8] sm:$0xff]
        %v5438 = vld [vmem:[#allocation10 + $0x10] sm:$0xff]
        %v5439 = vld [vmem:[#allocation10 + $0x18] sm:$0xff]
        %v5440 = vld [vmem:[#allocation10 + $0x20] sm:$0xff]
        %v5441 = vld [vmem:[#allocation10 + $0x28] sm:$0xff]
        %v5442 = vld [vmem:[#allocation10 + $0x30] sm:$0xff]
        %v5443 = vld [vmem:[#allocation10 + $0x38] sm:$0xff]
        %v5444 = vld [vmem:[#allocation10 + $0x40] sm:$0xff]
        %v5445 = vld [vmem:[#allocation10 + $0x48] sm:$0xff]
        %v5446 = vld [vmem:[#allocation10 + $0x50] sm:$0xff]
        %v5447 = vld [vmem:[#allocation10 + $0x58] sm:$0xff]
        %v5448 = vld [vmem:[#allocation10 + $0x60] sm:$0xff]
        %v5449 = vld [vmem:[#allocation10 + $0x68] sm:$0xff]
        %v5450 = vld [vmem:[#allocation10 + $0x70] sm:$0xff]
        %v5451 = vld [vmem:[#allocation10 + $0x78] sm:$0xff]
        %v5452 = vld [vmem:[#allocation10 + $0x80] sm:$0xff]
        %v5453 = vld [vmem:[#allocation10 + $0x88] sm:$0xff]
        %v5454 = vld [vmem:[#allocation10 + $0x90] sm:$0xff]
        %v5455 = vld [vmem:[#allocation10 + $0x98] sm:$0xff]
        %v5456 = vld [vmem:[#allocation10 + $0xa0] sm:$0xff]
        %v5457 = vld [vmem:[#allocation10 + $0xa8] sm:$0xff]
        %v5458 = vld [vmem:[#allocation10 + $0xb0] sm:$0xff]
        %v5459 = vld [vmem:[#allocation10 + $0xb8] sm:$0xff]
        %v5460 = vld [vmem:[#allocation10 + $0xc0] sm:$0xff]
        %v5461 = vld [vmem:[#allocation10 + $0xc8] sm:$0xff]
        %v5462 = vld [vmem:[#allocation10 + $0xd0] sm:$0xff]
        %v5463 = vld [vmem:[#allocation10 + $0xd8] sm:$0xff]
        %v5464 = vld [vmem:[#allocation10 + $0xe0] sm:$0xff]
        %v5465 = vld [vmem:[#allocation10 + $0xe8] sm:$0xff]
        %v5466 = vld [vmem:[#allocation10 + $0xf0] sm:$0xff]
        %v5467 = vld [vmem:[#allocation10 + $0xf8] sm:$0xff]
        %v5468 = vld [vmem:[#allocation10 + $0x100] sm:$0xff]
        %v5469 = vld [vmem:[#allocation10 + $0x108] sm:$0xff]
        %v5470 = vld [vmem:[#allocation10 + $0x110] sm:$0xff]
        %v5471 = vld [vmem:[#allocation10 + $0x118] sm:$0xff]
        %v5472 = vld [vmem:[#allocation10 + $0x120] sm:$0xff]
        %v5473 = vld [vmem:[#allocation10 + $0x128] sm:$0xff]
        %v5474 = vld [vmem:[#allocation10 + $0x130] sm:$0xff]
        %v5475 = vld [vmem:[#allocation10 + $0x138] sm:$0xff]
        %v5476 = vld [vmem:[#allocation10 + $0x140] sm:$0xff]
        %v5477 = vld [vmem:[#allocation10 + $0x148] sm:$0xff]
        %v5478 = vld [vmem:[#allocation10 + $0x150] sm:$0xff]
        %v5479 = vld [vmem:[#allocation10 + $0x158] sm:$0xff]
        %v5480 = vld [vmem:[#allocation10 + $0x160] sm:$0xff]
        %v5481 = vld [vmem:[#allocation10 + $0x168] sm:$0xff]
        %v5482 = vld [vmem:[#allocation10 + $0x170] sm:$0xff]
        %v5483 = vld [vmem:[#allocation10 + $0x178] sm:$0xff]
        %v5484 = vld [vmem:[#allocation10 + $0x180] sm:$0xff]
        %v5485 = vld [vmem:[#allocation10 + $0x188] sm:$0xff]
        %v5486 = vld [vmem:[#allocation10 + $0x190] sm:$0xff]
        %v5487 = vld [vmem:[#allocation10 + $0x198] sm:$0xff]
        %v5488 = vld [vmem:[#allocation10 + $0x1a0] sm:$0xff]
        %v5489 = vld [vmem:[#allocation10 + $0x1a8] sm:$0xff]
        %v5490 = vld [vmem:[#allocation10 + $0x1b0] sm:$0xff]
        %v5491 = vld [vmem:[#allocation10 + $0x1b8] sm:$0xff]
        %v5492 = vld [vmem:[#allocation10 + $0x1c0] sm:$0xff]
        %v5493 = vld [vmem:[#allocation10 + $0x1c8] sm:$0xff]
        %v5494 = vld [vmem:[#allocation10 + $0x1d0] sm:$0xff]
        %v5495 = vld [vmem:[#allocation10 + $0x1d8] sm:$0xff]
        %v5496 = vld [vmem:[#allocation10 + $0x1e0] sm:$0xff]
        %v5497 = vld [vmem:[#allocation10 + $0x1e8] sm:$0xff]
        %v5498 = vld [vmem:[#allocation10 + $0x1f0] sm:$0xff]
        %v5499 = vld [vmem:[#allocation10 + $0x1f8] sm:$0xff]
        %v5500 = vld [vmem:[#allocation10 + $0x200] sm:$0xff]
        %v5501 = vld [vmem:[#allocation10 + $0x208] sm:$0xff]
        %v5502 = vld [vmem:[#allocation10 + $0x210] sm:$0xff]
        %v5503 = vld [vmem:[#allocation10 + $0x218] sm:$0xff]
        %v5504 = vld [vmem:[#allocation10 + $0x220] sm:$0xff]
        %v5505 = vld [vmem:[#allocation10 + $0x228] sm:$0xff]
        %v5506 = vld [vmem:[#allocation10 + $0x230] sm:$0xff]
        %v5507 = vld [vmem:[#allocation10 + $0x238] sm:$0xff]
        %v5508 = vld [vmem:[#allocation10 + $0x240] sm:$0xff]
        %v5509 = vld [vmem:[#allocation10 + $0x248] sm:$0xff]
        %v5510 = vld [vmem:[#allocation10 + $0x250] sm:$0xff]
        %v5511 = vld [vmem:[#allocation10 + $0x258] sm:$0xff]
        %v5512 = vld [vmem:[#allocation10 + $0x260] sm:$0xff]
        %v5513 = vld [vmem:[#allocation10 + $0x268] sm:$0xff]
        %v5514 = vld [vmem:[#allocation10 + $0x270] sm:$0xff]
        %v5515 = vld [vmem:[#allocation10 + $0x278] sm:$0xff]
        %v5516 = vld [vmem:[#allocation10 + $0x280] sm:$0xff]
        %v5517 = vld [vmem:[#allocation10 + $0x288] sm:$0xff]
        %v5518 = vld [vmem:[#allocation10 + $0x290] sm:$0xff]
        %v5519 = vld [vmem:[#allocation10 + $0x298] sm:$0xff]
        %v5520 = vld [vmem:[#allocation10 + $0x2a0] sm:$0xff]
        %v5521 = vld [vmem:[#allocation10 + $0x2a8] sm:$0xff]
        %v5522 = vld [vmem:[#allocation10 + $0x2b0] sm:$0xff]
        %v5523 = vld [vmem:[#allocation10 + $0x2b8] sm:$0xff]
        %v5524 = vld [vmem:[#allocation10 + $0x2c0] sm:$0xff]
        %v5525 = vld [vmem:[#allocation10 + $0x2c8] sm:$0xff]
        %v5526 = vld [vmem:[#allocation10 + $0x2d0] sm:$0xff]
        %v5527 = vld [vmem:[#allocation10 + $0x2d8] sm:$0xff]
        %v5528 = vld [vmem:[#allocation10 + $0x2e0] sm:$0xff]
        %v5529 = vld [vmem:[#allocation10 + $0x2e8] sm:$0xff]
        %v5530 = vld [vmem:[#allocation10 + $0x2f0] sm:$0xff]
        %v5531 = vld [vmem:[#allocation10 + $0x2f8] sm:$0xff]
        %v5532 = vld [vmem:[#allocation11] sm:$0x3]
        %v5534 = vlaneseq
        %v5535 = vshrl.u32 %v5534, 7
        %v5536 = vsub.s32 0, %v5535
        %v5537 = vrot.slane %v5532, %v5536
        %v5538 = vlaneseq
        %v5539 = vshrl.u32 %v5538, 7
        %v5540 = vsub.s32 1, %v5539
        %v5541 = vrot.slane %v5532, %v5540
        %v5640 = vunpack.c.l.b16 %v5436
        %v5641 = vunpack.c.h.b16 %v5436
        %v5642 = vunpack.c.l.b16 %v5437
        %v5643 = vunpack.c.h.b16 %v5437
        %v5644 = vunpack.c.l.b16 %v5438
        %v5645 = vunpack.c.h.b16 %v5438
        %v5646 = vunpack.c.l.b16 %v5439
        %v5647 = vunpack.c.h.b16 %v5439
        %v5648 = vunpack.c.l.b16 %v5440
        %v5649 = vunpack.c.h.b16 %v5440
        %v5650 = vunpack.c.l.b16 %v5441
        %v5651 = vunpack.c.h.b16 %v5441
        %v5652 = vunpack.c.l.b16 %v5442
        %v5653 = vunpack.c.h.b16 %v5442
        %v5654 = vunpack.c.l.b16 %v5443
        %v5655 = vunpack.c.h.b16 %v5443
        %v5656 = vunpack.c.l.b16 %v5444
        %v5657 = vunpack.c.h.b16 %v5444
        %v5658 = vunpack.c.l.b16 %v5445
        %v5659 = vunpack.c.h.b16 %v5445
        %v5660 = vunpack.c.l.b16 %v5446
        %v5661 = vunpack.c.h.b16 %v5446
        %v5662 = vunpack.c.l.b16 %v5447
        %v5663 = vunpack.c.h.b16 %v5447
        %v5664 = vunpack.c.l.b16 %v5448
        %v5665 = vunpack.c.h.b16 %v5448
        %v5666 = vunpack.c.l.b16 %v5449
        %v5667 = vunpack.c.h.b16 %v5449
        %v5668 = vunpack.c.l.b16 %v5450
        %v5669 = vunpack.c.h.b16 %v5450
        %v5670 = vunpack.c.l.b16 %v5451
        %v5671 = vunpack.c.h.b16 %v5451
        %v5672 = vunpack.c.l.b16 %v5452
        %v5673 = vunpack.c.h.b16 %v5452
        %v5674 = vunpack.c.l.b16 %v5453
        %v5675 = vunpack.c.h.b16 %v5453
        %v5676 = vunpack.c.l.b16 %v5454
        %v5677 = vunpack.c.h.b16 %v5454
        %v5678 = vunpack.c.l.b16 %v5455
        %v5679 = vunpack.c.h.b16 %v5455
        %v5680 = vunpack.c.l.b16 %v5456
        %v5681 = vunpack.c.h.b16 %v5456
        %v5682 = vunpack.c.l.b16 %v5457
        %v5683 = vunpack.c.h.b16 %v5457
        %v5684 = vunpack.c.l.b16 %v5458
        %v5685 = vunpack.c.h.b16 %v5458
        %v5686 = vunpack.c.l.b16 %v5459
        %v5687 = vunpack.c.h.b16 %v5459
        %v5688 = vunpack.c.l.b16 %v5460
        %v5689 = vunpack.c.h.b16 %v5460
        %v5690 = vunpack.c.l.b16 %v5461
        %v5691 = vunpack.c.h.b16 %v5461
        %v5692 = vunpack.c.l.b16 %v5462
        %v5693 = vunpack.c.h.b16 %v5462
        %v5694 = vunpack.c.l.b16 %v5463
        %v5695 = vunpack.c.h.b16 %v5463
        %v5696 = vunpack.c.l.b16 %v5464
        %v5697 = vunpack.c.h.b16 %v5464
        %v5698 = vunpack.c.l.b16 %v5465
        %v5699 = vunpack.c.h.b16 %v5465
        %v5700 = vunpack.c.l.b16 %v5466
        %v5701 = vunpack.c.h.b16 %v5466
        %v5702 = vunpack.c.l.b16 %v5467
        %v5703 = vunpack.c.h.b16 %v5467
        %v5704 = vunpack.c.l.b16 %v5468
        %v5705 = vunpack.c.h.b16 %v5468
        %v5706 = vunpack.c.l.b16 %v5469
        %v5707 = vunpack.c.h.b16 %v5469
        %v5708 = vunpack.c.l.b16 %v5470
        %v5709 = vunpack.c.h.b16 %v5470
        %v5710 = vunpack.c.l.b16 %v5471
        %v5711 = vunpack.c.h.b16 %v5471
        %v5712 = vunpack.c.l.b16 %v5472
        %v5713 = vunpack.c.h.b16 %v5472
        %v5714 = vunpack.c.l.b16 %v5473
        %v5715 = vunpack.c.h.b16 %v5473
        %v5716 = vunpack.c.l.b16 %v5474
        %v5717 = vunpack.c.h.b16 %v5474
        %v5718 = vunpack.c.l.b16 %v5475
        %v5719 = vunpack.c.h.b16 %v5475
        %v5720 = vunpack.c.l.b16 %v5476
        %v5721 = vunpack.c.h.b16 %v5476
        %v5722 = vunpack.c.l.b16 %v5477
        %v5723 = vunpack.c.h.b16 %v5477
        %v5724 = vunpack.c.l.b16 %v5478
        %v5725 = vunpack.c.h.b16 %v5478
        %v5726 = vunpack.c.l.b16 %v5479
        %v5727 = vunpack.c.h.b16 %v5479
        %v5728 = vunpack.c.l.b16 %v5480
        %v5729 = vunpack.c.h.b16 %v5480
        %v5730 = vunpack.c.l.b16 %v5481
        %v5731 = vunpack.c.h.b16 %v5481
        %v5732 = vunpack.c.l.b16 %v5482
        %v5733 = vunpack.c.h.b16 %v5482
        %v5734 = vunpack.c.l.b16 %v5483
        %v5735 = vunpack.c.h.b16 %v5483
        %v5736 = vunpack.c.l.b16 %v5484
        %v5737 = vunpack.c.h.b16 %v5484
        %v5738 = vunpack.c.l.b16 %v5485
        %v5739 = vunpack.c.h.b16 %v5485
        %v5740 = vunpack.c.l.b16 %v5486
        %v5741 = vunpack.c.h.b16 %v5486
        %v5742 = vunpack.c.l.b16 %v5487
        %v5743 = vunpack.c.h.b16 %v5487
        %v5744 = vunpack.c.l.b16 %v5488
        %v5745 = vunpack.c.h.b16 %v5488
        %v5746 = vunpack.c.l.b16 %v5489
        %v5747 = vunpack.c.h.b16 %v5489
        %v5748 = vunpack.c.l.b16 %v5490
        %v5749 = vunpack.c.h.b16 %v5490
        %v5750 = vunpack.c.l.b16 %v5491
        %v5751 = vunpack.c.h.b16 %v5491
        %v5752 = vunpack.c.l.b16 %v5492
        %v5753 = vunpack.c.h.b16 %v5492
        %v5754 = vunpack.c.l.b16 %v5493
        %v5755 = vunpack.c.h.b16 %v5493
        %v5756 = vunpack.c.l.b16 %v5494
        %v5757 = vunpack.c.h.b16 %v5494
        %v5758 = vunpack.c.l.b16 %v5495
        %v5759 = vunpack.c.h.b16 %v5495
        %v5760 = vunpack.c.l.b16 %v5496
        %v5761 = vunpack.c.h.b16 %v5496
        %v5762 = vunpack.c.l.b16 %v5497
        %v5763 = vunpack.c.h.b16 %v5497
        %v5764 = vunpack.c.l.b16 %v5498
        %v5765 = vunpack.c.h.b16 %v5498
        %v5766 = vunpack.c.l.b16 %v5499
        %v5767 = vunpack.c.h.b16 %v5499
        %v5768 = vunpack.c.l.b16 %v5500
        %v5769 = vunpack.c.h.b16 %v5500
        %v5770 = vunpack.c.l.b16 %v5501
        %v5771 = vunpack.c.h.b16 %v5501
        %v5772 = vunpack.c.l.b16 %v5502
        %v5773 = vunpack.c.h.b16 %v5502
        %v5774 = vunpack.c.l.b16 %v5503
        %v5775 = vunpack.c.h.b16 %v5503
        %v5776 = vunpack.c.l.b16 %v5504
        %v5777 = vunpack.c.h.b16 %v5504
        %v5778 = vunpack.c.l.b16 %v5505
        %v5779 = vunpack.c.h.b16 %v5505
        %v5780 = vunpack.c.l.b16 %v5506
        %v5781 = vunpack.c.h.b16 %v5506
        %v5782 = vunpack.c.l.b16 %v5507
        %v5783 = vunpack.c.h.b16 %v5507
        %v5784 = vunpack.c.l.b16 %v5508
        %v5785 = vunpack.c.h.b16 %v5508
        %v5786 = vunpack.c.l.b16 %v5509
        %v5787 = vunpack.c.h.b16 %v5509
        %v5788 = vunpack.c.l.b16 %v5510
        %v5789 = vunpack.c.h.b16 %v5510
        %v5790 = vunpack.c.l.b16 %v5511
        %v5791 = vunpack.c.h.b16 %v5511
        %v5792 = vunpack.c.l.b16 %v5512
        %v5793 = vunpack.c.h.b16 %v5512
        %v5794 = vunpack.c.l.b16 %v5513
        %v5795 = vunpack.c.h.b16 %v5513
        %v5796 = vunpack.c.l.b16 %v5514
        %v5797 = vunpack.c.h.b16 %v5514
        %v5798 = vunpack.c.l.b16 %v5515
        %v5799 = vunpack.c.h.b16 %v5515
        %v5800 = vunpack.c.l.b16 %v5516
        %v5801 = vunpack.c.h.b16 %v5516
        %v5802 = vunpack.c.l.b16 %v5517
        %v5803 = vunpack.c.h.b16 %v5517
        %v5804 = vunpack.c.l.b16 %v5518
        %v5805 = vunpack.c.h.b16 %v5518
        %v5806 = vunpack.c.l.b16 %v5519
        %v5807 = vunpack.c.h.b16 %v5519
        %v5808 = vunpack.c.l.b16 %v5520
        %v5809 = vunpack.c.h.b16 %v5520
        %v5810 = vunpack.c.l.b16 %v5521
        %v5811 = vunpack.c.h.b16 %v5521
        %v5812 = vunpack.c.l.b16 %v5522
        %v5813 = vunpack.c.h.b16 %v5522
        %v5814 = vunpack.c.l.b16 %v5523
        %v5815 = vunpack.c.h.b16 %v5523
        %v5816 = vunpack.c.l.b16 %v5524
        %v5817 = vunpack.c.h.b16 %v5524
        %v5818 = vunpack.c.l.b16 %v5525
        %v5819 = vunpack.c.h.b16 %v5525
        %v5820 = vunpack.c.l.b16 %v5526
        %v5821 = vunpack.c.h.b16 %v5526
        %v5822 = vunpack.c.l.b16 %v5527
        %v5823 = vunpack.c.h.b16 %v5527
        %v5824 = vunpack.c.l.b16 %v5528
        %v5825 = vunpack.c.h.b16 %v5528
        %v5826 = vunpack.c.l.b16 %v5529
        %v5827 = vunpack.c.h.b16 %v5529
        %v5828 = vunpack.c.l.b16 %v5530
        %v5829 = vunpack.c.h.b16 %v5530
        %v5830 = vunpack.c.l.b16 %v5531
        %v5831 = vunpack.c.h.b16 %v5531
        %v5832 = vpack.c.b16 %v5642, %v5640
        %v5833 = vpack.c.b16 %v5643, %v5641
        %v5834 = vpack.c.b16 %v5646, %v5644
        %v5835 = vpack.c.b16 %v5647, %v5645
        %v5836 = vpack.c.b16 %v5650, %v5648
        %v5837 = vpack.c.b16 %v5651, %v5649
        %v5838 = vpack.c.b16 %v5654, %v5652
        %v5839 = vpack.c.b16 %v5655, %v5653
        %v5840 = vpack.c.b16 %v5658, %v5656
        %v5841 = vpack.c.b16 %v5659, %v5657
        %v5842 = vpack.c.b16 %v5662, %v5660
        %v5843 = vpack.c.b16 %v5663, %v5661
        %v5844 = vpack.c.b16 %v5666, %v5664
        %v5845 = vpack.c.b16 %v5667, %v5665
        %v5846 = vpack.c.b16 %v5670, %v5668
        %v5847 = vpack.c.b16 %v5671, %v5669
        %v5848 = vpack.c.b16 %v5674, %v5672
        %v5849 = vpack.c.b16 %v5675, %v5673
        %v5850 = vpack.c.b16 %v5678, %v5676
        %v5851 = vpack.c.b16 %v5679, %v5677
        %v5852 = vpack.c.b16 %v5682, %v5680
        %v5853 = vpack.c.b16 %v5683, %v5681
        %v5854 = vpack.c.b16 %v5686, %v5684
        %v5855 = vpack.c.b16 %v5687, %v5685
        %v5856 = vpack.c.b16 %v5690, %v5688
        %v5857 = vpack.c.b16 %v5691, %v5689
        %v5858 = vpack.c.b16 %v5694, %v5692
        %v5859 = vpack.c.b16 %v5695, %v5693
        %v5860 = vpack.c.b16 %v5698, %v5696
        %v5861 = vpack.c.b16 %v5699, %v5697
        %v5862 = vpack.c.b16 %v5702, %v5700
        %v5863 = vpack.c.b16 %v5703, %v5701
        %v5864 = vpack.c.b16 %v5706, %v5704
        %v5865 = vpack.c.b16 %v5707, %v5705
        %v5866 = vpack.c.b16 %v5710, %v5708
        %v5867 = vpack.c.b16 %v5711, %v5709
        %v5868 = vpack.c.b16 %v5714, %v5712
        %v5869 = vpack.c.b16 %v5715, %v5713
        %v5870 = vpack.c.b16 %v5718, %v5716
        %v5871 = vpack.c.b16 %v5719, %v5717
        %v5872 = vpack.c.b16 %v5722, %v5720
        %v5873 = vpack.c.b16 %v5723, %v5721
        %v5874 = vpack.c.b16 %v5726, %v5724
        %v5875 = vpack.c.b16 %v5727, %v5725
        %v5876 = vpack.c.b16 %v5730, %v5728
        %v5877 = vpack.c.b16 %v5731, %v5729
        %v5878 = vpack.c.b16 %v5734, %v5732
        %v5879 = vpack.c.b16 %v5735, %v5733
        %v5880 = vpack.c.b16 %v5738, %v5736
        %v5881 = vpack.c.b16 %v5739, %v5737
        %v5882 = vpack.c.b16 %v5742, %v5740
        %v5883 = vpack.c.b16 %v5743, %v5741
        %v5884 = vpack.c.b16 %v5746, %v5744
        %v5885 = vpack.c.b16 %v5747, %v5745
        %v5886 = vpack.c.b16 %v5750, %v5748
        %v5887 = vpack.c.b16 %v5751, %v5749
        %v5888 = vpack.c.b16 %v5754, %v5752
        %v5889 = vpack.c.b16 %v5755, %v5753
        %v5890 = vpack.c.b16 %v5758, %v5756
        %v5891 = vpack.c.b16 %v5759, %v5757
        %v5892 = vpack.c.b16 %v5762, %v5760
        %v5893 = vpack.c.b16 %v5763, %v5761
        %v5894 = vpack.c.b16 %v5766, %v5764
        %v5895 = vpack.c.b16 %v5767, %v5765
        %v5896 = vpack.c.b16 %v5770, %v5768
        %v5897 = vpack.c.b16 %v5771, %v5769
        %v5898 = vpack.c.b16 %v5774, %v5772
        %v5899 = vpack.c.b16 %v5775, %v5773
        %v5900 = vpack.c.b16 %v5778, %v5776
        %v5901 = vpack.c.b16 %v5779, %v5777
        %v5902 = vpack.c.b16 %v5782, %v5780
        %v5903 = vpack.c.b16 %v5783, %v5781
        %v5904 = vpack.c.b16 %v5786, %v5784
        %v5905 = vpack.c.b16 %v5787, %v5785
        %v5906 = vpack.c.b16 %v5790, %v5788
        %v5907 = vpack.c.b16 %v5791, %v5789
        %v5908 = vpack.c.b16 %v5794, %v5792
        %v5909 = vpack.c.b16 %v5795, %v5793
        %v5910 = vpack.c.b16 %v5798, %v5796
        %v5911 = vpack.c.b16 %v5799, %v5797
        %v5912 = vpack.c.b16 %v5802, %v5800
        %v5913 = vpack.c.b16 %v5803, %v5801
        %v5914 = vpack.c.b16 %v5806, %v5804
        %v5915 = vpack.c.b16 %v5807, %v5805
        %v5916 = vpack.c.b16 %v5810, %v5808
        %v5917 = vpack.c.b16 %v5811, %v5809
        %v5918 = vpack.c.b16 %v5814, %v5812
        %v5919 = vpack.c.b16 %v5815, %v5813
        %v5920 = vpack.c.b16 %v5818, %v5816
        %v5921 = vpack.c.b16 %v5819, %v5817
        %v5922 = vpack.c.b16 %v5822, %v5820
        %v5923 = vpack.c.b16 %v5823, %v5821
        %v5924 = vpack.c.b16 %v5826, %v5824
        %v5925 = vpack.c.b16 %v5827, %v5825
        %v5926 = vpack.c.b16 %v5830, %v5828
        %v5927 = vpack.c.b16 %v5831, %v5829
        %6024 = vmatprep.subr.bf16.mxu0 %v5833
        %6025 = vmatpush1.bf16.msra.mxu0 %v5832
        %6026 = vmatprep.subr.bf16.mxu0 %v5835
        %6027 = vmatpush1.bf16.msra.mxu0 %v5834
        %6028 = vmatprep.subr.bf16.mxu0 %v5837
        %6029 = vmatpush1.bf16.msra.mxu0 %v5836
        %6030 = vmatprep.subr.bf16.mxu0 %v5839
        %6031 = vmatpush1.bf16.msra.mxu0 %v5838
        %6032 = vmatprep.subr.bf16.mxu0 %v5841
        %6033 = vmatpush1.bf16.msra.mxu0 %v5840
        %6034 = vmatprep.subr.bf16.mxu0 %v5843
        %6035 = vmatpush1.bf16.msra.mxu0 %v5842
        %6036 = vmatprep.subr.bf16.mxu0 %v5845
        %6037 = vmatpush1.bf16.msra.mxu0 %v5844
        %6038 = vmatprep.subr.bf16.mxu0 %v5847
        %6039 = vmatpush1.bf16.msra.mxu0 %v5846
        %6040 = vmatprep.subr.bf16.mxu0 %v5849
        %6041 = vmatpush1.bf16.msra.mxu0 %v5848
        %6042 = vmatprep.subr.bf16.mxu0 %v5851
        %6043 = vmatpush1.bf16.msra.mxu0 %v5850
        %6044 = vmatprep.subr.bf16.mxu0 %v5853
        %6045 = vmatpush1.bf16.msra.mxu0 %v5852
        %6046 = vmatprep.subr.bf16.mxu0 %v5855
        %6047 = vmatpush1.bf16.msra.mxu0 %v5854
        %6048 = vmatprep.subr.bf16.mxu0 %v5857
        %6049 = vmatpush1.bf16.msra.mxu0 %v5856
        %6050 = vmatprep.subr.bf16.mxu0 %v5859
        %6051 = vmatpush1.bf16.msra.mxu0 %v5858
        %6052 = vmatprep.subr.bf16.mxu0 %v5861
        %6053 = vmatpush1.bf16.msra.mxu0 %v5860
        %6054 = vmatprep.subr.bf16.mxu0 %v5863
        %6055 = vmatpush1.bf16.msra.mxu0 %v5862
        %6056 = vmatprep.mubr.bf16.mxu0 %v5431
        %6057 = vmatmul.mubr.bf16.gmra.mrb[0].mxu0 %v5430
        %v6058 = vpop.f32.mrb[0].mxu0
        %v6059 = vadd.f32 %v5537, %v6058
        %v6060 = vpop.f32.mrb[0].mxu0
        %v6061 = vadd.f32 %v5541, %v6060
        %v6062 = vpop.f32.mrb[0].mxu0
        %v6063 = vpop.f32.mrb[0].mxu0
        %6064 = vdwg.mxu0
        %6065 = vmatprep.subr.bf16.mxu0 %v5865
        %6066 = vmatpush1.bf16.msra.mxu0 %v5864
        %6067 = vmatprep.subr.bf16.mxu0 %v5867
        %6068 = vmatpush1.bf16.msra.mxu0 %v5866
        %6069 = vmatprep.subr.bf16.mxu0 %v5869
        %6070 = vmatpush1.bf16.msra.mxu0 %v5868
        %6071 = vmatprep.subr.bf16.mxu0 %v5871
        %6072 = vmatpush1.bf16.msra.mxu0 %v5870
        %6073 = vmatprep.subr.bf16.mxu0 %v5873
        %6074 = vmatpush1.bf16.msra.mxu0 %v5872
        %6075 = vmatprep.subr.bf16.mxu0 %v5875
        %6076 = vmatpush1.bf16.msra.mxu0 %v5874
        %6077 = vmatprep.subr.bf16.mxu0 %v5877
        %6078 = vmatpush1.bf16.msra.mxu0 %v5876
        %6079 = vmatprep.subr.bf16.mxu0 %v5879
        %6080 = vmatpush1.bf16.msra.mxu0 %v5878
        %6081 = vmatprep.subr.bf16.mxu0 %v5881
        %6082 = vmatpush1.bf16.msra.mxu0 %v5880
        %6083 = vmatprep.subr.bf16.mxu0 %v5883
        %6084 = vmatpush1.bf16.msra.mxu0 %v5882
        %6085 = vmatprep.subr.bf16.mxu0 %v5885
        %6086 = vmatpush1.bf16.msra.mxu0 %v5884
        %6087 = vmatprep.subr.bf16.mxu0 %v5887
        %6088 = vmatpush1.bf16.msra.mxu0 %v5886
        %6089 = vmatprep.subr.bf16.mxu0 %v5889
        %6090 = vmatpush1.bf16.msra.mxu0 %v5888
        %6091 = vmatprep.subr.bf16.mxu0 %v5891
        %6092 = vmatpush1.bf16.msra.mxu0 %v5890
        %6093 = vmatprep.subr.bf16.mxu0 %v5893
        %6094 = vmatpush1.bf16.msra.mxu0 %v5892
        %6095 = vmatprep.subr.bf16.mxu0 %v5895
        %6096 = vmatpush1.bf16.msra.mxu0 %v5894
        %6097 = vmatprep.mubr.bf16.mxu0 %v5433
        %6098 = vmatmul.mubr.bf16.gmra.mrb[0].mxu0 %v5432
        %v6099 = vpop.f32.mrb[0].mxu0
        %v6100 = vadd.f32 %v6059, %v6099
        %v6101 = vpop.f32.mrb[0].mxu0
        %v6102 = vadd.f32 %v6061, %v6101
        %v6103 = vpop.f32.mrb[0].mxu0
        %v6104 = vpop.f32.mrb[0].mxu0
        %6105 = vdwg.mxu0
        %6106 = vmatprep.subr.bf16.mxu0 %v5897
        %6107 = vmatpush1.bf16.msra.mxu0 %v5896
        %6108 = vmatprep.subr.bf16.mxu0 %v5899
        %6109 = vmatpush1.bf16.msra.mxu0 %v5898
        %6110 = vmatprep.subr.bf16.mxu0 %v5901
        %6111 = vmatpush1.bf16.msra.mxu0 %v5900
        %6112 = vmatprep.subr.bf16.mxu0 %v5903
        %6113 = vmatpush1.bf16.msra.mxu0 %v5902
        %6114 = vmatprep.subr.bf16.mxu0 %v5905
        %6115 = vmatpush1.bf16.msra.mxu0 %v5904
        %6116 = vmatprep.subr.bf16.mxu0 %v5907
        %6117 = vmatpush1.bf16.msra.mxu0 %v5906
        %6118 = vmatprep.subr.bf16.mxu0 %v5909
        %6119 = vmatpush1.bf16.msra.mxu0 %v5908
        %6120 = vmatprep.subr.bf16.mxu0 %v5911
        %6121 = vmatpush1.bf16.msra.mxu0 %v5910
        %6122 = vmatprep.subr.bf16.mxu0 %v5913
        %6123 = vmatpush1.bf16.msra.mxu0 %v5912
        %6124 = vmatprep.subr.bf16.mxu0 %v5915
        %6125 = vmatpush1.bf16.msra.mxu0 %v5914
        %6126 = vmatprep.subr.bf16.mxu0 %v5917
        %6127 = vmatpush1.bf16.msra.mxu0 %v5916
        %6128 = vmatprep.subr.bf16.mxu0 %v5919
        %6129 = vmatpush1.bf16.msra.mxu0 %v5918
        %6130 = vmatprep.subr.bf16.mxu0 %v5921
        %6131 = vmatpush1.bf16.msra.mxu0 %v5920
        %6132 = vmatprep.subr.bf16.mxu0 %v5923
        %6133 = vmatpush1.bf16.msra.mxu0 %v5922
        %6134 = vmatprep.subr.bf16.mxu0 %v5925
        %6135 = vmatpush1.bf16.msra.mxu0 %v5924
        %6136 = vmatprep.subr.bf16.mxu0 %v5927
        %6137 = vmatpush1.bf16.msra.mxu0 %v5926
        %6138 = vmatprep.mubr.bf16.mxu0 %v5435
        %6139 = vmatmul.mubr.bf16.gmra.mrb[0].mxu0 %v5434
        %v6140 = vpop.f32.mrb[0].mxu0
        %v6141 = vadd.f32 %v6100, %v6140
        %v6142 = vpop.f32.mrb[0].mxu0
        %v6143 = vadd.f32 %v6102, %v6142
        %v6144 = vpop.f32.mrb[0].mxu0
        %v6145 = vpop.f32.mrb[0].mxu0
        %6146 = vdwg.mxu0
        %v6147 = vld [vmem:[#allocation13] sm:$0x3]
        %v6149 = vlaneseq
        %v6150 = vshrl.u32 %v6149, 7
        %v6151 = vsub.s32 0, %v6150
        %v6152 = vrot.slane %v6147, %v6151
        %v6153 = vlaneseq
        %v6154 = vshrl.u32 %v6153, 7
        %v6155 = vsub.s32 1, %v6154
        %v6156 = vrot.slane %v6147, %v6155
        %v6159 = vmul.f32 %v6141, %v6152
        %v6160 = vmul.f32 %v6143, %v6156
        %v6161 = vadd.f32 %v6159, %v6160
        %6162 = vadd.xlane.f32.xlu0 %v6161
        %v6163 = vpop.xlane.xlu0 %6162
        %v6164 = vld [vmem:[#allocation2] sm:$0x1]
        %v6166 = vlaneseq
        %v6167 = vshrl.u32 %v6166, 7
        %v6168 = vsub.s32 0, %v6167
        %v6169 = vrot.slane %v6164, %v6168
        %v6171 = vadd.f32 %v6163, %v6169
        %v6172 = vxor.u32 %v6171, 2147483648
        %v6173 = vmul.f32 %v6172, 1.442695
        %v6174 = vpow.pop %v6173
        %v6175 = vadd.f32 %v6174, 1.0
        %v6176 = vrcp.pop %v6175
        %v6177 = vmul.f32 1.0, %v6176
        %vm6178 = vcmask 7168
        %6179 = vst.msk [vmem:[%s448] sm:$0xff] %vm6178, %v6177
        %p6180 = scmp.lt.s32.totalorder %s28, 2
        %s6181 = scalar_select %p6180, %s28, 2
        %s6182 = smul.addr %s6181, 8
        %s6183 = scalar_lea.vmem %s9, %s6182
        // Predicated region
        $region85: #{tpu_custom_call.1} parent=55 // pred_check
          %p6184 = pneg %p245
        $region86: #{tpu_custom_call.1} parent=55 // pred_check_branch
          %6186 = sbr.rel (%p6184) target = $region88
        $region87: #{tpu_custom_call.1} parent=55 // pred_region
          _
        $region88: #{tpu_custom_call.1} parent=55 // pred_fallthru
          _
      $region56: #{tpu_custom_call.1} parent=5 // pred_fallthru
        _
      %p6187 = scmp.le.s32.totalorder 2, %s23
      // Predicated region
      $region89: #{tpu_custom_call.1} parent=5 // pred_check
        %p6188 = pneg %p6187
      $region90: #{tpu_custom_call.1} parent=5 // pred_check_branch
        %6190 = sbr.rel (%p6188) target = $region92
      $region91: #{tpu_custom_call.1} parent=5 // pred_region
        %s6191 = ssub.s32 %s23, 2
        // Predicated region
        $region93: #{tpu_custom_call.1} parent=91 // pred_check
          %p6192 = pneg %p251
        $region94: #{tpu_custom_call.1} parent=91 // pred_check_branch
          %6194 = sbr.rel (%p6192) target = $region96
        $region95: #{tpu_custom_call.1} parent=91 // pred_region
          %p6195 = scmp.lt.s32.totalorder %s29, 2
          %s6196 = scalar_select %p6195, %s29, 2
          %s6197 = smul.addr %s6196, 8
          %s6198 = scalar_lea.vmem %s9, %s6197
        $region96: #{tpu_custom_call.1} parent=91 // pred_fallthru
          _
      $region92: #{tpu_custom_call.1} parent=5 // pred_fallthru
        _
    $region6: #{tpu_custom_call.1} parent=1 // loop_footer
      %s27 = sadd.s32 1, %s23
    $region7: #{tpu_custom_call.1} parent=1 // loop_footer_branch
      %22 = sbr.rel target = $region3
    $region8: #{tpu_custom_call.1} parent=1 // loop_exit
      _
    %6199 = vsyncpa [#allocation4], 1
    %s6200 = scalar_lea.sflag [#allocation4], 1
    %6201 = vsyncpa %s6200, 1
    %6202 = vsyncpa [#allocation6], 1
    %6203 = vsyncpa [#allocation9], 1
    %6204 = vsyncpa [#allocation12], 1

</llo_original>
